<compile_context>
chip_gen: v7x
topology: tpu7x:2x2x1
jax: 0.10.0
libtpu: 0.0.40
codegen_flags: <defaults>
</compile_context>

<pallas_src>
import functools
import math

import jax
import jax.numpy as jnp
import numpy as np
from jax.experimental import pallas as pl
from jax.experimental.pallas import tpu as pltpu

BN_EPS = 1e-5


# ------------------- constant spatial shift/gather matrices ------------------
# P1[k] : (64, 64) — 3x3 stride-1 zero-padded tap k on an 8x8 image flattened
#                    to 64 pixels (row-major h*8+w).
# P2[k] : (16, 64) — 3x3 stride-2 zero-padded tap k, 8x8 -> 4x4 output pixels.
def _shift_matrices():
    p1 = np.zeros((9, 64, 64), np.float32)
    p2 = np.zeros((9, 16, 64), np.float32)
    for di in range(3):
        for dj in range(3):
            k = 3 * di + dj
            for h in range(8):
                for w in range(8):
                    hs, ws = h + di - 1, w + dj - 1
                    if 0 <= hs < 8 and 0 <= ws < 8:
                        p1[k, h * 8 + w, hs * 8 + ws] = 1.0
            for i in range(4):
                for j in range(4):
                    hs, ws = 2 * i + di - 1, 2 * j + dj - 1
                    if 0 <= hs < 8 and 0 <= ws < 8:
                        p2[k, i * 4 + j, hs * 8 + ws] = 1.0
    return p1, p2


_P1, _P2 = _shift_matrices()

_WEIGHT_NAMES = ("w_stem", "b_stem", "w1", "b1", "wp1", "bp1", "we2", "be2",
                 "wd2", "bd2", "wse1", "bse1", "wse2", "bse2", "wp2", "bp2",
                 "wl", "bl", "wf", "bf")


# ------------------------------ fused kernel ---------------------------------
def _effnet_kernel(sp_ref,                 # (1, 64, 9)  stem im2col patches
                   p1_ref,                 # (9, 64, 64) stride-1 shift matrices
                   p2_ref,                 # (9, 16, 64) stride-2 shift matrices
                   w_stem, b_stem,         # (9, 8), (1, 8)        stem (BN folded)
                   w1, b1,                 # (9, 8, 16), (1, 16)   stage1 fused 3x3
                   wp1, bp1,               # (16, 8), (1, 8)       stage1 1x1 project
                   we2, be2,               # (8, 32), (1, 32)      stage2 1x1 expand
                   wd2, bd2,               # (9, 32), (1, 32)      stage2 depthwise 3x3 s2
                   wse1, bse1,             # (32, 2), (1, 2)       SE reduce
                   wse2, bse2,             # (2, 32), (1, 32)      SE expand
                   wp2, bp2,               # (32, 16), (1, 16)     stage2 1x1 project
                   wl, bl,                 # (16, 64), (1, 64)     last conv 1x1
                   wf, bf,                 # (64, 1), (1, 1)       classifier
                   o_ref):                 # (1, 1, 1)
    f32 = jnp.float32
    dot = functools.partial(jnp.dot, preferred_element_type=f32)

    def silu(v):
        return v * jax.nn.sigmoid(v)

    # ---- stem: 3x3 s2 conv (patches prepared host-side, Cin=1) + BN + SiLU
    x0 = silu(dot(sp_ref[0], w_stem[...]) + b_stem[...])            # (64, 8)

    # ---- stage 1: FusedMBConv (3x3 s1 8->16 + SiLU, 1x1 16->8, residual)
    acc1 = jnp.zeros((64, 16), f32)
    for k in range(9):
        acc1 = acc1 + dot(p1_ref[k], dot(x0, w1[k]))                # (64, 16)
    y1 = silu(acc1 + b1[...])
    x1 = dot(y1, wp1[...]) + bp1[...] + x0                          # project + residual

    # ---- stage 2: MBConv — 1x1 expand 8->32 + SiLU
    e = silu(dot(x1, we2[...]) + be2[...])                          # (64, 32)

    # depthwise 3x3 stride-2 (8x8 -> 4x4) via constant gather matrices
    dw = jnp.zeros((16, 32), f32)
    for k in range(9):
        dw = dw + dot(p2_ref[k], e * wd2[k:k + 1, :])               # (16, 32)
    dw = silu(dw + bd2[...])

    # squeeze-excitation (fully in-register)
    pooled = jnp.sum(dw, axis=0, keepdims=True) * (1.0 / 16.0)      # (1, 32)
    hse = silu(dot(pooled, wse1[...]) + bse1[...])                  # (1, 2)
    gate = jax.nn.sigmoid(dot(hse, wse2[...]) + bse2[...])          # (1, 32)
    dw = dw * gate

    # 1x1 project 32->16, last conv 1x1 16->64 + SiLU, global avg pool, classifier
    x2 = dot(dw, wp2[...]) + bp2[...]                               # (16, 16)
    x3 = silu(dot(x2, wl[...]) + bl[...])                           # (16, 64)
    feat = jnp.sum(x3, axis=0, keepdims=True) * (1.0 / 16.0)        # (1, 64)
    logit = dot(feat, wf[...]) + bf[...]                            # (1, 1)
    o_ref[...] = logit.reshape(1, 1, 1)


# ------------------------------- parameters ----------------------------------
def _kaiming(key, k, cin, cout):
    # kaiming_normal_(mode='fan_out'): std = sqrt(2 / (cout * k * k))
    std = math.sqrt(2.0 / (cout * k * k))
    return std * jax.random.normal(key, (k, k, cin, cout), jnp.float32)


def _fold_bn(w_flat, c):
    # eval-mode BatchNorm with fresh stats folded into the conv: gamma=1, beta=0,
    # running_mean=0, running_var=1  =>  scale = 1/sqrt(1+eps), bias = 0.
    gamma = jnp.ones((c,), jnp.float32)
    beta = jnp.zeros((c,), jnp.float32)
    mean = jnp.zeros((c,), jnp.float32)
    var = jnp.ones((c,), jnp.float32)
    scale = gamma / jnp.sqrt(var + BN_EPS)
    bias = beta - mean * scale
    return w_flat * scale, bias.reshape(1, c)


def init_params(key):
    ks = jax.random.split(key, 10)
    p = {}
    # stem: 1 -> 8, k3 s2
    p["w_stem"], p["b_stem"] = _fold_bn(_kaiming(ks[0], 3, 1, 8).reshape(9, 8), 8)
    # stage1: FusedMBConv in=8 out=8 expanded=16, k3 s1
    p["w1"], p["b1"] = _fold_bn(_kaiming(ks[1], 3, 8, 16).reshape(9, 8, 16), 16)
    p["wp1"], p["bp1"] = _fold_bn(_kaiming(ks[2], 1, 16, 8).reshape(16, 8), 8)
    # stage2: MBConv in=8 out=16 expanded=32, k3 s2, SE squeeze=2
    p["we2"], p["be2"] = _fold_bn(_kaiming(ks[3], 1, 8, 32).reshape(8, 32), 32)
    p["wd2"], p["bd2"] = _fold_bn(_kaiming(ks[4], 3, 1, 32).reshape(9, 32), 32)
    p["wse1"] = _kaiming(ks[5], 1, 32, 2).reshape(32, 2)
    p["bse1"] = jnp.zeros((1, 2), jnp.float32)
    p["wse2"] = _kaiming(ks[6], 1, 2, 32).reshape(2, 32)
    p["bse2"] = jnp.zeros((1, 32), jnp.float32)
    p["wp2"], p["bp2"] = _fold_bn(_kaiming(ks[7], 1, 32, 16).reshape(32, 16), 16)
    # last conv: 16 -> 4*16 = 64
    p["wl"], p["bl"] = _fold_bn(_kaiming(ks[8], 1, 16, 64).reshape(16, 64), 64)
    # classifier: Linear(64 -> 1), uniform(-1/sqrt(out), 1/sqrt(out)), bias zeros
    init_range = 1.0 / math.sqrt(1.0)
    p["wf"] = jax.random.uniform(ks[9], (64, 1), jnp.float32, -init_range, init_range)
    p["bf"] = jnp.zeros((1, 1), jnp.float32)
    return p


# -------------------------------- forward ------------------------------------
def efficientnet_forward(params, x_nchw):
    x = x_nchw.astype(jnp.float32)
    N = x.shape[0]

    # Stem im2col (Cin = 1): zero-pad the 16x16 input and extract the 9 stride-2
    # taps -> (N, 64, 9).  This is a few-KB layout transform done once in XLA; all
    # other convs are computed inside the fused kernel.
    xp = jnp.pad(x[:, 0], ((0, 0), (1, 1), (1, 1)))                       # (N, 18, 18)
    taps = [xp[:, di:di + 15:2, dj:dj + 15:2]
            for di in range(3) for dj in range(3)]                        # 9 x (N, 8, 8)
    patches = jnp.stack(taps, axis=-1).reshape(N, 64, 9)

    p1 = jnp.asarray(_P1)
    p2 = jnp.asarray(_P2)
    weights = [params[k] for k in _WEIGHT_NAMES]

    def _full_spec(a):
        if a.ndim == 2:
            return pl.BlockSpec(a.shape, lambda n: (0, 0))
        return pl.BlockSpec(a.shape, lambda n: (0, 0, 0))

    in_specs = ([pl.BlockSpec((1, 64, 9), lambda n: (n, 0, 0)),
                 _full_spec(p1), _full_spec(p2)]
                + [_full_spec(w) for w in weights])

    out = pl.pallas_call(
        _effnet_kernel,
        out_shape=jax.ShapeDtypeStruct((N, 1, 1), jnp.float32),
        grid=(N,),
        in_specs=in_specs,
        out_specs=pl.BlockSpec((1, 1, 1), lambda n: (n, 0, 0)),
        compiler_params=pltpu.CompilerParams(dimension_semantics=("parallel",)),
    )(patches, p1, p2, *weights)
    return out.reshape(N, 1)


if __name__ == "__main__":
    key = jax.random.PRNGKey(0)
    pkey, xkey = jax.random.split(key)
    params = init_params(pkey)
    x = jax.random.normal(xkey, (2, 1, 16, 16), jnp.float32)   # NCHW, like PyTorch
    out = jax.jit(efficientnet_forward)(params, x)
    out = jax.block_until_ready(out)
    assert out.shape == (2, 1), out.shape
    assert bool(jnp.all(jnp.isfinite(out)))
    print("KERNEL_OK")
</pallas_src>

<mosaic_0001>
module attributes {stable_mosaic.version = 11 : i64} {
  func.func @_effnet_kernel(%arg0: i32, %arg1: memref<1x64x9xf32, #tpu.memory_space<vmem>>, %arg2: memref<9x64x64xf32, #tpu.memory_space<vmem>>, %arg3: memref<9x16x64xf32, #tpu.memory_space<vmem>>, %arg4: memref<9x8xf32, #tpu.memory_space<vmem>>, %arg5: memref<1x8xf32, #tpu.memory_space<vmem>>, %arg6: memref<9x8x16xf32, #tpu.memory_space<vmem>>, %arg7: memref<1x16xf32, #tpu.memory_space<vmem>>, %arg8: memref<16x8xf32, #tpu.memory_space<vmem>>, %arg9: memref<1x8xf32, #tpu.memory_space<vmem>>, %arg10: memref<8x32xf32, #tpu.memory_space<vmem>>, %arg11: memref<1x32xf32, #tpu.memory_space<vmem>>, %arg12: memref<9x32xf32, #tpu.memory_space<vmem>>, %arg13: memref<1x32xf32, #tpu.memory_space<vmem>>, %arg14: memref<32x2xf32, #tpu.memory_space<vmem>>, %arg15: memref<1x2xf32, #tpu.memory_space<vmem>>, %arg16: memref<2x32xf32, #tpu.memory_space<vmem>>, %arg17: memref<1x32xf32, #tpu.memory_space<vmem>>, %arg18: memref<32x16xf32, #tpu.memory_space<vmem>>, %arg19: memref<1x16xf32, #tpu.memory_space<vmem>>, %arg20: memref<16x64xf32, #tpu.memory_space<vmem>>, %arg21: memref<1x64xf32, #tpu.memory_space<vmem>>, %arg22: memref<64x1xf32, #tpu.memory_space<vmem>>, %arg23: memref<1x1xf32, #tpu.memory_space<vmem>>, %arg24: memref<1x1x1xf32, #tpu.memory_space<vmem>>) attributes {dimension_semantics = [#tpu.dimension_semantics<parallel>], iteration_bounds = array<i64: 2>, scalar_prefetch = 0 : i64, scratch_operands = 0 : i64, tpu.core_type = #tpu.core_type<tc>, window_params = [{transform_indices = @transform_0, window_bounds = array<i64: 1, 64, 9>}, {pipeline_mode = #tpu.pipeline_mode<synchronous>, transform_indices = @transform_1, window_bounds = array<i64: 9, 64, 64>}, {pipeline_mode = #tpu.pipeline_mode<synchronous>, transform_indices = @transform_2, window_bounds = array<i64: 9, 16, 64>}, {pipeline_mode = #tpu.pipeline_mode<synchronous>, transform_indices = @transform_3, window_bounds = array<i64: 9, 8>}, {pipeline_mode = #tpu.pipeline_mode<synchronous>, transform_indices = @transform_4, window_bounds = array<i64: 1, 8>}, {pipeline_mode = #tpu.pipeline_mode<synchronous>, transform_indices = @transform_5, window_bounds = array<i64: 9, 8, 16>}, {pipeline_mode = #tpu.pipeline_mode<synchronous>, transform_indices = @transform_6, window_bounds = array<i64: 1, 16>}, {pipeline_mode = #tpu.pipeline_mode<synchronous>, transform_indices = @transform_7, window_bounds = array<i64: 16, 8>}, {pipeline_mode = #tpu.pipeline_mode<synchronous>, transform_indices = @transform_8, window_bounds = array<i64: 1, 8>}, {pipeline_mode = #tpu.pipeline_mode<synchronous>, transform_indices = @transform_9, window_bounds = array<i64: 8, 32>}, {pipeline_mode = #tpu.pipeline_mode<synchronous>, transform_indices = @transform_10, window_bounds = array<i64: 1, 32>}, {pipeline_mode = #tpu.pipeline_mode<synchronous>, transform_indices = @transform_11, window_bounds = array<i64: 9, 32>}, {pipeline_mode = #tpu.pipeline_mode<synchronous>, transform_indices = @transform_12, window_bounds = array<i64: 1, 32>}, {pipeline_mode = #tpu.pipeline_mode<synchronous>, transform_indices = @transform_13, window_bounds = array<i64: 32, 2>}, {pipeline_mode = #tpu.pipeline_mode<synchronous>, transform_indices = @transform_14, window_bounds = array<i64: 1, 2>}, {pipeline_mode = #tpu.pipeline_mode<synchronous>, transform_indices = @transform_15, window_bounds = array<i64: 2, 32>}, {pipeline_mode = #tpu.pipeline_mode<synchronous>, transform_indices = @transform_16, window_bounds = array<i64: 1, 32>}, {pipeline_mode = #tpu.pipeline_mode<synchronous>, transform_indices = @transform_17, window_bounds = array<i64: 32, 16>}, {pipeline_mode = #tpu.pipeline_mode<synchronous>, transform_indices = @transform_18, window_bounds = array<i64: 1, 16>}, {pipeline_mode = #tpu.pipeline_mode<synchronous>, transform_indices = @transform_19, window_bounds = array<i64: 16, 64>}, {pipeline_mode = #tpu.pipeline_mode<synchronous>, transform_indices = @transform_20, window_bounds = array<i64: 1, 64>}, {pipeline_mode = #tpu.pipeline_mode<synchronous>, transform_indices = @transform_21, window_bounds = array<i64: 64, 1>}, {pipeline_mode = #tpu.pipeline_mode<synchronous>, transform_indices = @transform_22, window_bounds = array<i64: 1, 1>}, {transform_indices = @transform_23, window_bounds = array<i64: 1, 1, 1>}]} {
    %c0 = arith.constant 0 : index
    %c0_0 = arith.constant 0 : index
    %c0_1 = arith.constant 0 : index
    %0 = vector.load %arg1[%c0, %c0_0, %c0_1] : memref<1x64x9xf32, #tpu.memory_space<vmem>>, vector<1x64x9xf32>
    %1 = vector.shape_cast %0 : vector<1x64x9xf32> to vector<64x9xf32>
    %c0_2 = arith.constant 0 : index
    %c0_3 = arith.constant 0 : index
    %2 = vector.load %arg4[%c0_2, %c0_3] : memref<9x8xf32, #tpu.memory_space<vmem>>, vector<9x8xf32>
    %cst = arith.constant dense<0.000000e+00> : vector<64x8xf32>
    %3 = tpu.matmul %1, %2, %cst {dimension_numbers = #tpu.dot_dimension_numbers<[1], [0], [0], [1], [0, 0, 1, 1], [], []>} : vector<64x9xf32>, vector<9x8xf32>, vector<64x8xf32> -> vector<64x8xf32>
    %c0_4 = arith.constant 0 : index
    %c0_5 = arith.constant 0 : index
    %4 = vector.load %arg5[%c0_4, %c0_5] : memref<1x8xf32, #tpu.memory_space<vmem>>, vector<1x8xf32>
    %5 = vector.broadcast %4 : vector<1x8xf32> to vector<64x8xf32>
    %6 = arith.addf %3, %5 : vector<64x8xf32>
    %7 = arith.negf %6 : vector<64x8xf32>
    %8 = math.exp %7 : vector<64x8xf32>
    %cst_6 = arith.constant 1.000000e+00 : f32
    %9 = vector.broadcast %cst_6 : f32 to vector<64x8xf32>
    %10 = arith.addf %9, %8 : vector<64x8xf32>
    %11 = arith.divf %9, %10 : vector<64x8xf32>
    %12 = arith.mulf %6, %11 : vector<64x8xf32>
    %cst_7 = arith.constant 0.000000e+00 : f32
    %13 = vector.broadcast %cst_7 : f32 to vector<64x16xf32>
    %c0_8 = arith.constant 0 : index
    %c0_9 = arith.constant 0 : index
    %c0_10 = arith.constant 0 : index
    %14 = vector.load %arg2[%c0_8, %c0_9, %c0_10] : memref<9x64x64xf32, #tpu.memory_space<vmem>>, vector<1x64x64xf32>
    %15 = vector.shape_cast %14 : vector<1x64x64xf32> to vector<64x64xf32>
    %c0_11 = arith.constant 0 : index
    %c0_12 = arith.constant 0 : index
    %c0_13 = arith.constant 0 : index
    %16 = vector.load %arg6[%c0_11, %c0_12, %c0_13] : memref<9x8x16xf32, #tpu.memory_space<vmem>>, vector<1x8x16xf32>
    %17 = vector.shape_cast %16 : vector<1x8x16xf32> to vector<8x16xf32>
    %cst_14 = arith.constant dense<0.000000e+00> : vector<64x16xf32>
    %18 = tpu.matmul %12, %17, %cst_14 {dimension_numbers = #tpu.dot_dimension_numbers<[1], [0], [0], [1], [0, 0, 1, 1], [], []>} : vector<64x8xf32>, vector<8x16xf32>, vector<64x16xf32> -> vector<64x16xf32>
    %cst_15 = arith.constant dense<0.000000e+00> : vector<64x16xf32>
    %19 = tpu.matmul %15, %18, %cst_15 {dimension_numbers = #tpu.dot_dimension_numbers<[1], [0], [0], [1], [0, 0, 1, 1], [], []>} : vector<64x64xf32>, vector<64x16xf32>, vector<64x16xf32> -> vector<64x16xf32>
    %20 = arith.addf %13, %19 : vector<64x16xf32>
    %c1 = arith.constant 1 : index
    %c0_16 = arith.constant 0 : index
    %c0_17 = arith.constant 0 : index
    %21 = vector.load %arg2[%c1, %c0_16, %c0_17] : memref<9x64x64xf32, #tpu.memory_space<vmem>>, vector<1x64x64xf32>
    %22 = vector.shape_cast %21 : vector<1x64x64xf32> to vector<64x64xf32>
    %c1_18 = arith.constant 1 : index
    %c0_19 = arith.constant 0 : index
    %c0_20 = arith.constant 0 : index
    %23 = vector.load %arg6[%c1_18, %c0_19, %c0_20] : memref<9x8x16xf32, #tpu.memory_space<vmem>>, vector<1x8x16xf32>
    %24 = vector.shape_cast %23 : vector<1x8x16xf32> to vector<8x16xf32>
    %cst_21 = arith.constant dense<0.000000e+00> : vector<64x16xf32>
    %25 = tpu.matmul %12, %24, %cst_21 {dimension_numbers = #tpu.dot_dimension_numbers<[1], [0], [0], [1], [0, 0, 1, 1], [], []>} : vector<64x8xf32>, vector<8x16xf32>, vector<64x16xf32> -> vector<64x16xf32>
    %cst_22 = arith.constant dense<0.000000e+00> : vector<64x16xf32>
    %26 = tpu.matmul %22, %25, %cst_22 {dimension_numbers = #tpu.dot_dimension_numbers<[1], [0], [0], [1], [0, 0, 1, 1], [], []>} : vector<64x64xf32>, vector<64x16xf32>, vector<64x16xf32> -> vector<64x16xf32>
    %27 = arith.addf %20, %26 : vector<64x16xf32>
    %c2 = arith.constant 2 : index
    %c0_23 = arith.constant 0 : index
    %c0_24 = arith.constant 0 : index
    %28 = vector.load %arg2[%c2, %c0_23, %c0_24] : memref<9x64x64xf32, #tpu.memory_space<vmem>>, vector<1x64x64xf32>
    %29 = vector.shape_cast %28 : vector<1x64x64xf32> to vector<64x64xf32>
    %c2_25 = arith.constant 2 : index
    %c0_26 = arith.constant 0 : index
    %c0_27 = arith.constant 0 : index
    %30 = vector.load %arg6[%c2_25, %c0_26, %c0_27] : memref<9x8x16xf32, #tpu.memory_space<vmem>>, vector<1x8x16xf32>
    %31 = vector.shape_cast %30 : vector<1x8x16xf32> to vector<8x16xf32>
    %cst_28 = arith.constant dense<0.000000e+00> : vector<64x16xf32>
    %32 = tpu.matmul %12, %31, %cst_28 {dimension_numbers = #tpu.dot_dimension_numbers<[1], [0], [0], [1], [0, 0, 1, 1], [], []>} : vector<64x8xf32>, vector<8x16xf32>, vector<64x16xf32> -> vector<64x16xf32>
    %cst_29 = arith.constant dense<0.000000e+00> : vector<64x16xf32>
    %33 = tpu.matmul %29, %32, %cst_29 {dimension_numbers = #tpu.dot_dimension_numbers<[1], [0], [0], [1], [0, 0, 1, 1], [], []>} : vector<64x64xf32>, vector<64x16xf32>, vector<64x16xf32> -> vector<64x16xf32>
    %34 = arith.addf %27, %33 : vector<64x16xf32>
    %c3 = arith.constant 3 : index
    %c0_30 = arith.constant 0 : index
    %c0_31 = arith.constant 0 : index
    %35 = vector.load %arg2[%c3, %c0_30, %c0_31] : memref<9x64x64xf32, #tpu.memory_space<vmem>>, vector<1x64x64xf32>
    %36 = vector.shape_cast %35 : vector<1x64x64xf32> to vector<64x64xf32>
    %c3_32 = arith.constant 3 : index
    %c0_33 = arith.constant 0 : index
    %c0_34 = arith.constant 0 : index
    %37 = vector.load %arg6[%c3_32, %c0_33, %c0_34] : memref<9x8x16xf32, #tpu.memory_space<vmem>>, vector<1x8x16xf32>
    %38 = vector.shape_cast %37 : vector<1x8x16xf32> to vector<8x16xf32>
    %cst_35 = arith.constant dense<0.000000e+00> : vector<64x16xf32>
    %39 = tpu.matmul %12, %38, %cst_35 {dimension_numbers = #tpu.dot_dimension_numbers<[1], [0], [0], [1], [0, 0, 1, 1], [], []>} : vector<64x8xf32>, vector<8x16xf32>, vector<64x16xf32> -> vector<64x16xf32>
    %cst_36 = arith.constant dense<0.000000e+00> : vector<64x16xf32>
    %40 = tpu.matmul %36, %39, %cst_36 {dimension_numbers = #tpu.dot_dimension_numbers<[1], [0], [0], [1], [0, 0, 1, 1], [], []>} : vector<64x64xf32>, vector<64x16xf32>, vector<64x16xf32> -> vector<64x16xf32>
    %41 = arith.addf %34, %40 : vector<64x16xf32>
    %c4 = arith.constant 4 : index
    %c0_37 = arith.constant 0 : index
    %c0_38 = arith.constant 0 : index
    %42 = vector.load %arg2[%c4, %c0_37, %c0_38] : memref<9x64x64xf32, #tpu.memory_space<vmem>>, vector<1x64x64xf32>
    %43 = vector.shape_cast %42 : vector<1x64x64xf32> to vector<64x64xf32>
    %c4_39 = arith.constant 4 : index
    %c0_40 = arith.constant 0 : index
    %c0_41 = arith.constant 0 : index
    %44 = vector.load %arg6[%c4_39, %c0_40, %c0_41] : memref<9x8x16xf32, #tpu.memory_space<vmem>>, vector<1x8x16xf32>
    %45 = vector.shape_cast %44 : vector<1x8x16xf32> to vector<8x16xf32>
    %cst_42 = arith.constant dense<0.000000e+00> : vector<64x16xf32>
    %46 = tpu.matmul %12, %45, %cst_42 {dimension_numbers = #tpu.dot_dimension_numbers<[1], [0], [0], [1], [0, 0, 1, 1], [], []>} : vector<64x8xf32>, vector<8x16xf32>, vector<64x16xf32> -> vector<64x16xf32>
    %cst_43 = arith.constant dense<0.000000e+00> : vector<64x16xf32>
    %47 = tpu.matmul %43, %46, %cst_43 {dimension_numbers = #tpu.dot_dimension_numbers<[1], [0], [0], [1], [0, 0, 1, 1], [], []>} : vector<64x64xf32>, vector<64x16xf32>, vector<64x16xf32> -> vector<64x16xf32>
    %48 = arith.addf %41, %47 : vector<64x16xf32>
    %c5 = arith.constant 5 : index
    %c0_44 = arith.constant 0 : index
    %c0_45 = arith.constant 0 : index
    %49 = vector.load %arg2[%c5, %c0_44, %c0_45] : memref<9x64x64xf32, #tpu.memory_space<vmem>>, vector<1x64x64xf32>
    %50 = vector.shape_cast %49 : vector<1x64x64xf32> to vector<64x64xf32>
    %c5_46 = arith.constant 5 : index
    %c0_47 = arith.constant 0 : index
    %c0_48 = arith.constant 0 : index
    %51 = vector.load %arg6[%c5_46, %c0_47, %c0_48] : memref<9x8x16xf32, #tpu.memory_space<vmem>>, vector<1x8x16xf32>
    %52 = vector.shape_cast %51 : vector<1x8x16xf32> to vector<8x16xf32>
    %cst_49 = arith.constant dense<0.000000e+00> : vector<64x16xf32>
    %53 = tpu.matmul %12, %52, %cst_49 {dimension_numbers = #tpu.dot_dimension_numbers<[1], [0], [0], [1], [0, 0, 1, 1], [], []>} : vector<64x8xf32>, vector<8x16xf32>, vector<64x16xf32> -> vector<64x16xf32>
    %cst_50 = arith.constant dense<0.000000e+00> : vector<64x16xf32>
    %54 = tpu.matmul %50, %53, %cst_50 {dimension_numbers = #tpu.dot_dimension_numbers<[1], [0], [0], [1], [0, 0, 1, 1], [], []>} : vector<64x64xf32>, vector<64x16xf32>, vector<64x16xf32> -> vector<64x16xf32>
    %55 = arith.addf %48, %54 : vector<64x16xf32>
    %c6 = arith.constant 6 : index
    %c0_51 = arith.constant 0 : index
    %c0_52 = arith.constant 0 : index
    %56 = vector.load %arg2[%c6, %c0_51, %c0_52] : memref<9x64x64xf32, #tpu.memory_space<vmem>>, vector<1x64x64xf32>
    %57 = vector.shape_cast %56 : vector<1x64x64xf32> to vector<64x64xf32>
    %c6_53 = arith.constant 6 : index
    %c0_54 = arith.constant 0 : index
    %c0_55 = arith.constant 0 : index
    %58 = vector.load %arg6[%c6_53, %c0_54, %c0_55] : memref<9x8x16xf32, #tpu.memory_space<vmem>>, vector<1x8x16xf32>
    %59 = vector.shape_cast %58 : vector<1x8x16xf32> to vector<8x16xf32>
    %cst_56 = arith.constant dense<0.000000e+00> : vector<64x16xf32>
    %60 = tpu.matmul %12, %59, %cst_56 {dimension_numbers = #tpu.dot_dimension_numbers<[1], [0], [0], [1], [0, 0, 1, 1], [], []>} : vector<64x8xf32>, vector<8x16xf32>, vector<64x16xf32> -> vector<64x16xf32>
    %cst_57 = arith.constant dense<0.000000e+00> : vector<64x16xf32>
    %61 = tpu.matmul %57, %60, %cst_57 {dimension_numbers = #tpu.dot_dimension_numbers<[1], [0], [0], [1], [0, 0, 1, 1], [], []>} : vector<64x64xf32>, vector<64x16xf32>, vector<64x16xf32> -> vector<64x16xf32>
    %62 = arith.addf %55, %61 : vector<64x16xf32>
    %c7 = arith.constant 7 : index
    %c0_58 = arith.constant 0 : index
    %c0_59 = arith.constant 0 : index
    %63 = vector.load %arg2[%c7, %c0_58, %c0_59] : memref<9x64x64xf32, #tpu.memory_space<vmem>>, vector<1x64x64xf32>
    %64 = vector.shape_cast %63 : vector<1x64x64xf32> to vector<64x64xf32>
    %c7_60 = arith.constant 7 : index
    %c0_61 = arith.constant 0 : index
    %c0_62 = arith.constant 0 : index
    %65 = vector.load %arg6[%c7_60, %c0_61, %c0_62] : memref<9x8x16xf32, #tpu.memory_space<vmem>>, vector<1x8x16xf32>
    %66 = vector.shape_cast %65 : vector<1x8x16xf32> to vector<8x16xf32>
    %cst_63 = arith.constant dense<0.000000e+00> : vector<64x16xf32>
    %67 = tpu.matmul %12, %66, %cst_63 {dimension_numbers = #tpu.dot_dimension_numbers<[1], [0], [0], [1], [0, 0, 1, 1], [], []>} : vector<64x8xf32>, vector<8x16xf32>, vector<64x16xf32> -> vector<64x16xf32>
    %cst_64 = arith.constant dense<0.000000e+00> : vector<64x16xf32>
    %68 = tpu.matmul %64, %67, %cst_64 {dimension_numbers = #tpu.dot_dimension_numbers<[1], [0], [0], [1], [0, 0, 1, 1], [], []>} : vector<64x64xf32>, vector<64x16xf32>, vector<64x16xf32> -> vector<64x16xf32>
    %69 = arith.addf %62, %68 : vector<64x16xf32>
    %c8 = arith.constant 8 : index
    %c0_65 = arith.constant 0 : index
    %c0_66 = arith.constant 0 : index
    %70 = vector.load %arg2[%c8, %c0_65, %c0_66] : memref<9x64x64xf32, #tpu.memory_space<vmem>>, vector<1x64x64xf32>
    %71 = vector.shape_cast %70 : vector<1x64x64xf32> to vector<64x64xf32>
    %c8_67 = arith.constant 8 : index
    %c0_68 = arith.constant 0 : index
    %c0_69 = arith.constant 0 : index
    %72 = vector.load %arg6[%c8_67, %c0_68, %c0_69] : memref<9x8x16xf32, #tpu.memory_space<vmem>>, vector<1x8x16xf32>
    %73 = vector.shape_cast %72 : vector<1x8x16xf32> to vector<8x16xf32>
    %cst_70 = arith.constant dense<0.000000e+00> : vector<64x16xf32>
    %74 = tpu.matmul %12, %73, %cst_70 {dimension_numbers = #tpu.dot_dimension_numbers<[1], [0], [0], [1], [0, 0, 1, 1], [], []>} : vector<64x8xf32>, vector<8x16xf32>, vector<64x16xf32> -> vector<64x16xf32>
    %cst_71 = arith.constant dense<0.000000e+00> : vector<64x16xf32>
    %75 = tpu.matmul %71, %74, %cst_71 {dimension_numbers = #tpu.dot_dimension_numbers<[1], [0], [0], [1], [0, 0, 1, 1], [], []>} : vector<64x64xf32>, vector<64x16xf32>, vector<64x16xf32> -> vector<64x16xf32>
    %76 = arith.addf %69, %75 : vector<64x16xf32>
    %c0_72 = arith.constant 0 : index
    %c0_73 = arith.constant 0 : index
    %77 = vector.load %arg7[%c0_72, %c0_73] : memref<1x16xf32, #tpu.memory_space<vmem>>, vector<1x16xf32>
    %78 = vector.broadcast %77 : vector<1x16xf32> to vector<64x16xf32>
    %79 = arith.addf %76, %78 : vector<64x16xf32>
    %80 = arith.negf %79 : vector<64x16xf32>
    %81 = math.exp %80 : vector<64x16xf32>
    %cst_74 = arith.constant 1.000000e+00 : f32
    %82 = vector.broadcast %cst_74 : f32 to vector<64x16xf32>
    %83 = arith.addf %82, %81 : vector<64x16xf32>
    %84 = arith.divf %82, %83 : vector<64x16xf32>
    %85 = arith.mulf %79, %84 : vector<64x16xf32>
    %c0_75 = arith.constant 0 : index
    %c0_76 = arith.constant 0 : index
    %86 = vector.load %arg8[%c0_75, %c0_76] : memref<16x8xf32, #tpu.memory_space<vmem>>, vector<16x8xf32>
    %cst_77 = arith.constant dense<0.000000e+00> : vector<64x8xf32>
    %87 = tpu.matmul %85, %86, %cst_77 {dimension_numbers = #tpu.dot_dimension_numbers<[1], [0], [0], [1], [0, 0, 1, 1], [], []>} : vector<64x16xf32>, vector<16x8xf32>, vector<64x8xf32> -> vector<64x8xf32>
    %c0_78 = arith.constant 0 : index
    %c0_79 = arith.constant 0 : index
    %88 = vector.load %arg9[%c0_78, %c0_79] : memref<1x8xf32, #tpu.memory_space<vmem>>, vector<1x8xf32>
    %89 = vector.broadcast %88 : vector<1x8xf32> to vector<64x8xf32>
    %90 = arith.addf %87, %89 : vector<64x8xf32>
    %91 = arith.addf %90, %12 : vector<64x8xf32>
    %c0_80 = arith.constant 0 : index
    %c0_81 = arith.constant 0 : index
    %92 = vector.load %arg10[%c0_80, %c0_81] : memref<8x32xf32, #tpu.memory_space<vmem>>, vector<8x32xf32>
    %cst_82 = arith.constant dense<0.000000e+00> : vector<64x32xf32>
    %93 = tpu.matmul %91, %92, %cst_82 {dimension_numbers = #tpu.dot_dimension_numbers<[1], [0], [0], [1], [0, 0, 1, 1], [], []>} : vector<64x8xf32>, vector<8x32xf32>, vector<64x32xf32> -> vector<64x32xf32>
    %c0_83 = arith.constant 0 : index
    %c0_84 = arith.constant 0 : index
    %94 = vector.load %arg11[%c0_83, %c0_84] : memref<1x32xf32, #tpu.memory_space<vmem>>, vector<1x32xf32>
    %95 = vector.broadcast %94 : vector<1x32xf32> to vector<64x32xf32>
    %96 = arith.addf %93, %95 : vector<64x32xf32>
    %97 = arith.negf %96 : vector<64x32xf32>
    %98 = math.exp %97 : vector<64x32xf32>
    %cst_85 = arith.constant 1.000000e+00 : f32
    %99 = vector.broadcast %cst_85 : f32 to vector<64x32xf32>
    %100 = arith.addf %99, %98 : vector<64x32xf32>
    %101 = arith.divf %99, %100 : vector<64x32xf32>
    %102 = arith.mulf %96, %101 : vector<64x32xf32>
    %cst_86 = arith.constant 0.000000e+00 : f32
    %103 = vector.broadcast %cst_86 : f32 to vector<16x32xf32>
    %c0_87 = arith.constant 0 : index
    %c0_88 = arith.constant 0 : index
    %c0_89 = arith.constant 0 : index
    %104 = vector.load %arg3[%c0_87, %c0_88, %c0_89] : memref<9x16x64xf32, #tpu.memory_space<vmem>>, vector<1x16x64xf32>
    %105 = vector.shape_cast %104 : vector<1x16x64xf32> to vector<16x64xf32>
    %c0_90 = arith.constant 0 : index
    %c0_91 = arith.constant 0 : index
    %106 = vector.load %arg12[%c0_90, %c0_91] : memref<9x32xf32, #tpu.memory_space<vmem>>, vector<1x32xf32>
    %107 = vector.broadcast %106 : vector<1x32xf32> to vector<64x32xf32>
    %108 = arith.mulf %102, %107 : vector<64x32xf32>
    %cst_92 = arith.constant dense<0.000000e+00> : vector<16x32xf32>
    %109 = tpu.matmul %105, %108, %cst_92 {dimension_numbers = #tpu.dot_dimension_numbers<[1], [0], [0], [1], [0, 0, 1, 1], [], []>} : vector<16x64xf32>, vector<64x32xf32>, vector<16x32xf32> -> vector<16x32xf32>
    %110 = arith.addf %103, %109 : vector<16x32xf32>
    %c1_93 = arith.constant 1 : index
    %c0_94 = arith.constant 0 : index
    %c0_95 = arith.constant 0 : index
    %111 = vector.load %arg3[%c1_93, %c0_94, %c0_95] : memref<9x16x64xf32, #tpu.memory_space<vmem>>, vector<1x16x64xf32>
    %112 = vector.shape_cast %111 : vector<1x16x64xf32> to vector<16x64xf32>
    %c1_96 = arith.constant 1 : index
    %c0_97 = arith.constant 0 : index
    %113 = vector.load %arg12[%c1_96, %c0_97] : memref<9x32xf32, #tpu.memory_space<vmem>>, vector<1x32xf32>
    %114 = vector.broadcast %113 : vector<1x32xf32> to vector<64x32xf32>
    %115 = arith.mulf %102, %114 : vector<64x32xf32>
    %cst_98 = arith.constant dense<0.000000e+00> : vector<16x32xf32>
    %116 = tpu.matmul %112, %115, %cst_98 {dimension_numbers = #tpu.dot_dimension_numbers<[1], [0], [0], [1], [0, 0, 1, 1], [], []>} : vector<16x64xf32>, vector<64x32xf32>, vector<16x32xf32> -> vector<16x32xf32>
    %117 = arith.addf %110, %116 : vector<16x32xf32>
    %c2_99 = arith.constant 2 : index
    %c0_100 = arith.constant 0 : index
    %c0_101 = arith.constant 0 : index
    %118 = vector.load %arg3[%c2_99, %c0_100, %c0_101] : memref<9x16x64xf32, #tpu.memory_space<vmem>>, vector<1x16x64xf32>
    %119 = vector.shape_cast %118 : vector<1x16x64xf32> to vector<16x64xf32>
    %c2_102 = arith.constant 2 : index
    %c0_103 = arith.constant 0 : index
    %120 = vector.load %arg12[%c2_102, %c0_103] : memref<9x32xf32, #tpu.memory_space<vmem>>, vector<1x32xf32>
    %121 = vector.broadcast %120 : vector<1x32xf32> to vector<64x32xf32>
    %122 = arith.mulf %102, %121 : vector<64x32xf32>
    %cst_104 = arith.constant dense<0.000000e+00> : vector<16x32xf32>
    %123 = tpu.matmul %119, %122, %cst_104 {dimension_numbers = #tpu.dot_dimension_numbers<[1], [0], [0], [1], [0, 0, 1, 1], [], []>} : vector<16x64xf32>, vector<64x32xf32>, vector<16x32xf32> -> vector<16x32xf32>
    %124 = arith.addf %117, %123 : vector<16x32xf32>
    %c3_105 = arith.constant 3 : index
    %c0_106 = arith.constant 0 : index
    %c0_107 = arith.constant 0 : index
    %125 = vector.load %arg3[%c3_105, %c0_106, %c0_107] : memref<9x16x64xf32, #tpu.memory_space<vmem>>, vector<1x16x64xf32>
    %126 = vector.shape_cast %125 : vector<1x16x64xf32> to vector<16x64xf32>
    %c3_108 = arith.constant 3 : index
    %c0_109 = arith.constant 0 : index
    %127 = vector.load %arg12[%c3_108, %c0_109] : memref<9x32xf32, #tpu.memory_space<vmem>>, vector<1x32xf32>
    %128 = vector.broadcast %127 : vector<1x32xf32> to vector<64x32xf32>
    %129 = arith.mulf %102, %128 : vector<64x32xf32>
    %cst_110 = arith.constant dense<0.000000e+00> : vector<16x32xf32>
    %130 = tpu.matmul %126, %129, %cst_110 {dimension_numbers = #tpu.dot_dimension_numbers<[1], [0], [0], [1], [0, 0, 1, 1], [], []>} : vector<16x64xf32>, vector<64x32xf32>, vector<16x32xf32> -> vector<16x32xf32>
    %131 = arith.addf %124, %130 : vector<16x32xf32>
    %c4_111 = arith.constant 4 : index
    %c0_112 = arith.constant 0 : index
    %c0_113 = arith.constant 0 : index
    %132 = vector.load %arg3[%c4_111, %c0_112, %c0_113] : memref<9x16x64xf32, #tpu.memory_space<vmem>>, vector<1x16x64xf32>
    %133 = vector.shape_cast %132 : vector<1x16x64xf32> to vector<16x64xf32>
    %c4_114 = arith.constant 4 : index
    %c0_115 = arith.constant 0 : index
    %134 = vector.load %arg12[%c4_114, %c0_115] : memref<9x32xf32, #tpu.memory_space<vmem>>, vector<1x32xf32>
    %135 = vector.broadcast %134 : vector<1x32xf32> to vector<64x32xf32>
    %136 = arith.mulf %102, %135 : vector<64x32xf32>
    %cst_116 = arith.constant dense<0.000000e+00> : vector<16x32xf32>
    %137 = tpu.matmul %133, %136, %cst_116 {dimension_numbers = #tpu.dot_dimension_numbers<[1], [0], [0], [1], [0, 0, 1, 1], [], []>} : vector<16x64xf32>, vector<64x32xf32>, vector<16x32xf32> -> vector<16x32xf32>
    %138 = arith.addf %131, %137 : vector<16x32xf32>
    %c5_117 = arith.constant 5 : index
    %c0_118 = arith.constant 0 : index
    %c0_119 = arith.constant 0 : index
    %139 = vector.load %arg3[%c5_117, %c0_118, %c0_119] : memref<9x16x64xf32, #tpu.memory_space<vmem>>, vector<1x16x64xf32>
    %140 = vector.shape_cast %139 : vector<1x16x64xf32> to vector<16x64xf32>
    %c5_120 = arith.constant 5 : index
    %c0_121 = arith.constant 0 : index
    %141 = vector.load %arg12[%c5_120, %c0_121] : memref<9x32xf32, #tpu.memory_space<vmem>>, vector<1x32xf32>
    %142 = vector.broadcast %141 : vector<1x32xf32> to vector<64x32xf32>
    %143 = arith.mulf %102, %142 : vector<64x32xf32>
    %cst_122 = arith.constant dense<0.000000e+00> : vector<16x32xf32>
    %144 = tpu.matmul %140, %143, %cst_122 {dimension_numbers = #tpu.dot_dimension_numbers<[1], [0], [0], [1], [0, 0, 1, 1], [], []>} : vector<16x64xf32>, vector<64x32xf32>, vector<16x32xf32> -> vector<16x32xf32>
    %145 = arith.addf %138, %144 : vector<16x32xf32>
    %c6_123 = arith.constant 6 : index
    %c0_124 = arith.constant 0 : index
    %c0_125 = arith.constant 0 : index
    %146 = vector.load %arg3[%c6_123, %c0_124, %c0_125] : memref<9x16x64xf32, #tpu.memory_space<vmem>>, vector<1x16x64xf32>
    %147 = vector.shape_cast %146 : vector<1x16x64xf32> to vector<16x64xf32>
    %c6_126 = arith.constant 6 : index
    %c0_127 = arith.constant 0 : index
    %148 = vector.load %arg12[%c6_126, %c0_127] : memref<9x32xf32, #tpu.memory_space<vmem>>, vector<1x32xf32>
    %149 = vector.broadcast %148 : vector<1x32xf32> to vector<64x32xf32>
    %150 = arith.mulf %102, %149 : vector<64x32xf32>
    %cst_128 = arith.constant dense<0.000000e+00> : vector<16x32xf32>
    %151 = tpu.matmul %147, %150, %cst_128 {dimension_numbers = #tpu.dot_dimension_numbers<[1], [0], [0], [1], [0, 0, 1, 1], [], []>} : vector<16x64xf32>, vector<64x32xf32>, vector<16x32xf32> -> vector<16x32xf32>
    %152 = arith.addf %145, %151 : vector<16x32xf32>
    %c7_129 = arith.constant 7 : index
    %c0_130 = arith.constant 0 : index
    %c0_131 = arith.constant 0 : index
    %153 = vector.load %arg3[%c7_129, %c0_130, %c0_131] : memref<9x16x64xf32, #tpu.memory_space<vmem>>, vector<1x16x64xf32>
    %154 = vector.shape_cast %153 : vector<1x16x64xf32> to vector<16x64xf32>
    %c7_132 = arith.constant 7 : index
    %c0_133 = arith.constant 0 : index
    %155 = vector.load %arg12[%c7_132, %c0_133] : memref<9x32xf32, #tpu.memory_space<vmem>>, vector<1x32xf32>
    %156 = vector.broadcast %155 : vector<1x32xf32> to vector<64x32xf32>
    %157 = arith.mulf %102, %156 : vector<64x32xf32>
    %cst_134 = arith.constant dense<0.000000e+00> : vector<16x32xf32>
    %158 = tpu.matmul %154, %157, %cst_134 {dimension_numbers = #tpu.dot_dimension_numbers<[1], [0], [0], [1], [0, 0, 1, 1], [], []>} : vector<16x64xf32>, vector<64x32xf32>, vector<16x32xf32> -> vector<16x32xf32>
    %159 = arith.addf %152, %158 : vector<16x32xf32>
    %c8_135 = arith.constant 8 : index
    %c0_136 = arith.constant 0 : index
    %c0_137 = arith.constant 0 : index
    %160 = vector.load %arg3[%c8_135, %c0_136, %c0_137] : memref<9x16x64xf32, #tpu.memory_space<vmem>>, vector<1x16x64xf32>
    %161 = vector.shape_cast %160 : vector<1x16x64xf32> to vector<16x64xf32>
    %c8_138 = arith.constant 8 : index
    %c0_139 = arith.constant 0 : index
    %162 = vector.load %arg12[%c8_138, %c0_139] : memref<9x32xf32, #tpu.memory_space<vmem>>, vector<1x32xf32>
    %163 = vector.broadcast %162 : vector<1x32xf32> to vector<64x32xf32>
    %164 = arith.mulf %102, %163 : vector<64x32xf32>
    %cst_140 = arith.constant dense<0.000000e+00> : vector<16x32xf32>
    %165 = tpu.matmul %161, %164, %cst_140 {dimension_numbers = #tpu.dot_dimension_numbers<[1], [0], [0], [1], [0, 0, 1, 1], [], []>} : vector<16x64xf32>, vector<64x32xf32>, vector<16x32xf32> -> vector<16x32xf32>
    %166 = arith.addf %159, %165 : vector<16x32xf32>
    %c0_141 = arith.constant 0 : index
    %c0_142 = arith.constant 0 : index
    %167 = vector.load %arg13[%c0_141, %c0_142] : memref<1x32xf32, #tpu.memory_space<vmem>>, vector<1x32xf32>
    %168 = vector.broadcast %167 : vector<1x32xf32> to vector<16x32xf32>
    %169 = arith.addf %166, %168 : vector<16x32xf32>
    %170 = arith.negf %169 : vector<16x32xf32>
    %171 = math.exp %170 : vector<16x32xf32>
    %cst_143 = arith.constant 1.000000e+00 : f32
    %172 = vector.broadcast %cst_143 : f32 to vector<16x32xf32>
    %173 = arith.addf %172, %171 : vector<16x32xf32>
    %174 = arith.divf %172, %173 : vector<16x32xf32>
    %175 = arith.mulf %169, %174 : vector<16x32xf32>
    %cst_144 = arith.constant dense<0.000000e+00> : vector<32xf32>
    %176 = vector.multi_reduction <add>, %175, %cst_144 [0] : vector<16x32xf32> to vector<32xf32>
    %177 = vector.shape_cast %176 : vector<32xf32> to vector<1x32xf32>
    %cst_145 = arith.constant 6.250000e-02 : f32
    %178 = vector.broadcast %cst_145 : f32 to vector<1x32xf32>
    %179 = arith.mulf %177, %178 : vector<1x32xf32>
    %c0_146 = arith.constant 0 : index
    %c0_147 = arith.constant 0 : index
    %180 = vector.load %arg14[%c0_146, %c0_147] : memref<32x2xf32, #tpu.memory_space<vmem>>, vector<32x2xf32>
    %cst_148 = arith.constant dense<0.000000e+00> : vector<1x2xf32>
    %181 = tpu.matmul %179, %180, %cst_148 {dimension_numbers = #tpu.dot_dimension_numbers<[1], [0], [0], [1], [0, 0, 1, 1], [], []>} : vector<1x32xf32>, vector<32x2xf32>, vector<1x2xf32> -> vector<1x2xf32>
    %c0_149 = arith.constant 0 : index
    %c0_150 = arith.constant 0 : index
    %182 = vector.load %arg15[%c0_149, %c0_150] : memref<1x2xf32, #tpu.memory_space<vmem>>, vector<1x2xf32>
    %183 = arith.addf %181, %182 : vector<1x2xf32>
    %184 = arith.negf %183 : vector<1x2xf32>
    %185 = math.exp %184 : vector<1x2xf32>
    %cst_151 = arith.constant 1.000000e+00 : f32
    %186 = vector.broadcast %cst_151 : f32 to vector<1x2xf32>
    %187 = arith.addf %186, %185 : vector<1x2xf32>
    %188 = arith.divf %186, %187 : vector<1x2xf32>
    %189 = arith.mulf %183, %188 : vector<1x2xf32>
    %c0_152 = arith.constant 0 : index
    %c0_153 = arith.constant 0 : index
    %190 = vector.load %arg16[%c0_152, %c0_153] : memref<2x32xf32, #tpu.memory_space<vmem>>, vector<2x32xf32>
    %cst_154 = arith.constant dense<0.000000e+00> : vector<1x32xf32>
    %191 = tpu.matmul %189, %190, %cst_154 {dimension_numbers = #tpu.dot_dimension_numbers<[1], [0], [0], [1], [0, 0, 1, 1], [], []>} : vector<1x2xf32>, vector<2x32xf32>, vector<1x32xf32> -> vector<1x32xf32>
    %c0_155 = arith.constant 0 : index
    %c0_156 = arith.constant 0 : index
    %192 = vector.load %arg17[%c0_155, %c0_156] : memref<1x32xf32, #tpu.memory_space<vmem>>, vector<1x32xf32>
    %193 = arith.addf %191, %192 : vector<1x32xf32>
    %194 = arith.negf %193 : vector<1x32xf32>
    %195 = math.exp %194 : vector<1x32xf32>
    %cst_157 = arith.constant 1.000000e+00 : f32
    %196 = vector.broadcast %cst_157 : f32 to vector<1x32xf32>
    %197 = arith.addf %196, %195 : vector<1x32xf32>
    %198 = arith.divf %196, %197 : vector<1x32xf32>
    %199 = vector.broadcast %198 : vector<1x32xf32> to vector<16x32xf32>
    %200 = arith.mulf %175, %199 : vector<16x32xf32>
    %c0_158 = arith.constant 0 : index
    %c0_159 = arith.constant 0 : index
    %201 = vector.load %arg18[%c0_158, %c0_159] : memref<32x16xf32, #tpu.memory_space<vmem>>, vector<32x16xf32>
    %cst_160 = arith.constant dense<0.000000e+00> : vector<16x16xf32>
    %202 = tpu.matmul %200, %201, %cst_160 {dimension_numbers = #tpu.dot_dimension_numbers<[1], [0], [0], [1], [0, 0, 1, 1], [], []>} : vector<16x32xf32>, vector<32x16xf32>, vector<16x16xf32> -> vector<16x16xf32>
    %c0_161 = arith.constant 0 : index
    %c0_162 = arith.constant 0 : index
    %203 = vector.load %arg19[%c0_161, %c0_162] : memref<1x16xf32, #tpu.memory_space<vmem>>, vector<1x16xf32>
    %204 = vector.broadcast %203 : vector<1x16xf32> to vector<16x16xf32>
    %205 = arith.addf %202, %204 : vector<16x16xf32>
    %c0_163 = arith.constant 0 : index
    %c0_164 = arith.constant 0 : index
    %206 = vector.load %arg20[%c0_163, %c0_164] : memref<16x64xf32, #tpu.memory_space<vmem>>, vector<16x64xf32>
    %cst_165 = arith.constant dense<0.000000e+00> : vector<16x64xf32>
    %207 = tpu.matmul %205, %206, %cst_165 {dimension_numbers = #tpu.dot_dimension_numbers<[1], [0], [0], [1], [0, 0, 1, 1], [], []>} : vector<16x16xf32>, vector<16x64xf32>, vector<16x64xf32> -> vector<16x64xf32>
    %c0_166 = arith.constant 0 : index
    %c0_167 = arith.constant 0 : index
    %208 = vector.load %arg21[%c0_166, %c0_167] : memref<1x64xf32, #tpu.memory_space<vmem>>, vector<1x64xf32>
    %209 = vector.broadcast %208 : vector<1x64xf32> to vector<16x64xf32>
    %210 = arith.addf %207, %209 : vector<16x64xf32>
    %211 = arith.negf %210 : vector<16x64xf32>
    %212 = math.exp %211 : vector<16x64xf32>
    %cst_168 = arith.constant 1.000000e+00 : f32
    %213 = vector.broadcast %cst_168 : f32 to vector<16x64xf32>
    %214 = arith.addf %213, %212 : vector<16x64xf32>
    %215 = arith.divf %213, %214 : vector<16x64xf32>
    %216 = arith.mulf %210, %215 : vector<16x64xf32>
    %cst_169 = arith.constant dense<0.000000e+00> : vector<64xf32>
    %217 = vector.multi_reduction <add>, %216, %cst_169 [0] : vector<16x64xf32> to vector<64xf32>
    %218 = vector.shape_cast %217 : vector<64xf32> to vector<1x64xf32>
    %cst_170 = arith.constant 6.250000e-02 : f32
    %219 = vector.broadcast %cst_170 : f32 to vector<1x64xf32>
    %220 = arith.mulf %218, %219 : vector<1x64xf32>
    %c0_171 = arith.constant 0 : index
    %c0_172 = arith.constant 0 : index
    %221 = vector.load %arg22[%c0_171, %c0_172] : memref<64x1xf32, #tpu.memory_space<vmem>>, vector<64x1xf32>
    %cst_173 = arith.constant dense<0.000000e+00> : vector<1x1xf32>
    %222 = tpu.matmul %220, %221, %cst_173 {dimension_numbers = #tpu.dot_dimension_numbers<[1], [0], [0], [1], [0, 0, 1, 1], [], []>} : vector<1x64xf32>, vector<64x1xf32>, vector<1x1xf32> -> vector<1x1xf32>
    %c0_174 = arith.constant 0 : index
    %c0_175 = arith.constant 0 : index
    %223 = vector.load %arg23[%c0_174, %c0_175] : memref<1x1xf32, #tpu.memory_space<vmem>>, vector<1x1xf32>
    %224 = arith.addf %222, %223 : vector<1x1xf32>
    %225 = vector.shape_cast %224 : vector<1x1xf32> to vector<1x1x1xf32>
    %c0_176 = arith.constant 0 : index
    %c0_177 = arith.constant 0 : index
    %c0_178 = arith.constant 0 : index
    %226 = vector.load %arg24[%c0_176, %c0_177, %c0_178] : memref<1x1x1xf32, #tpu.memory_space<vmem>>, vector<1x1x1xf32>
    tpu.vector_store %arg24[%c0_176, %c0_177, %c0_178], %225 {strides = array<i32>} : memref<1x1x1xf32, #tpu.memory_space<vmem>>, vector<1x1x1xf32>,
    return
  }
  func.func @transform_0(%arg0: i32) -> (i32, i32, i32) {
    %c0_i32 = arith.constant 0 : i32
    %c0_i32_0 = arith.constant 0 : i32
    %c0_i32_1 = arith.constant 0 : i32
    return %arg0, %c0_i32, %c0_i32_0 : i32, i32, i32
  }
  func.func @transform_1(%arg0: i32) -> (i32, i32, i32) {
    %c0_i32 = arith.constant 0 : i32
    %c0_i32_0 = arith.constant 0 : i32
    %c0_i32_1 = arith.constant 0 : i32
    %c0_i32_2 = arith.constant 0 : i32
    return %c0_i32, %c0_i32_0, %c0_i32_1 : i32, i32, i32
  }
  func.func @transform_2(%arg0: i32) -> (i32, i32, i32) {
    %c0_i32 = arith.constant 0 : i32
    %c0_i32_0 = arith.constant 0 : i32
    %c0_i32_1 = arith.constant 0 : i32
    %c0_i32_2 = arith.constant 0 : i32
    return %c0_i32, %c0_i32_0, %c0_i32_1 : i32, i32, i32
  }
  func.func @transform_3(%arg0: i32) -> (i32, i32) {
    %c0_i32 = arith.constant 0 : i32
    %c0_i32_0 = arith.constant 0 : i32
    %c0_i32_1 = arith.constant 0 : i32
    return %c0_i32, %c0_i32_0 : i32, i32
  }
  func.func @transform_4(%arg0: i32) -> (i32, i32) {
    %c0_i32 = arith.constant 0 : i32
    %c0_i32_0 = arith.constant 0 : i32
    %c0_i32_1 = arith.constant 0 : i32
    return %c0_i32, %c0_i32_0 : i32, i32
  }
  func.func @transform_5(%arg0: i32) -> (i32, i32, i32) {
    %c0_i32 = arith.constant 0 : i32
    %c0_i32_0 = arith.constant 0 : i32
    %c0_i32_1 = arith.constant 0 : i32
    %c0_i32_2 = arith.constant 0 : i32
    return %c0_i32, %c0_i32_0, %c0_i32_1 : i32, i32, i32
  }
  func.func @transform_6(%arg0: i32) -> (i32, i32) {
    %c0_i32 = arith.constant 0 : i32
    %c0_i32_0 = arith.constant 0 : i32
    %c0_i32_1 = arith.constant 0 : i32
    return %c0_i32, %c0_i32_0 : i32, i32
  }
  func.func @transform_7(%arg0: i32) -> (i32, i32) {
    %c0_i32 = arith.constant 0 : i32
    %c0_i32_0 = arith.constant 0 : i32
    %c0_i32_1 = arith.constant 0 : i32
    return %c0_i32, %c0_i32_0 : i32, i32
  }
  func.func @transform_8(%arg0: i32) -> (i32, i32) {
    %c0_i32 = arith.constant 0 : i32
    %c0_i32_0 = arith.constant 0 : i32
    %c0_i32_1 = arith.constant 0 : i32
    return %c0_i32, %c0_i32_0 : i32, i32
  }
  func.func @transform_9(%arg0: i32) -> (i32, i32) {
    %c0_i32 = arith.constant 0 : i32
    %c0_i32_0 = arith.constant 0 : i32
    %c0_i32_1 = arith.constant 0 : i32
    return %c0_i32, %c0_i32_0 : i32, i32
  }
  func.func @transform_10(%arg0: i32) -> (i32, i32) {
    %c0_i32 = arith.constant 0 : i32
    %c0_i32_0 = arith.constant 0 : i32
    %c0_i32_1 = arith.constant 0 : i32
    return %c0_i32, %c0_i32_0 : i32, i32
  }
  func.func @transform_11(%arg0: i32) -> (i32, i32) {
    %c0_i32 = arith.constant 0 : i32
    %c0_i32_0 = arith.constant 0 : i32
    %c0_i32_1 = arith.constant 0 : i32
    return %c0_i32, %c0_i32_0 : i32, i32
  }
  func.func @transform_12(%arg0: i32) -> (i32, i32) {
    %c0_i32 = arith.constant 0 : i32
    %c0_i32_0 = arith.constant 0 : i32
    %c0_i32_1 = arith.constant 0 : i32
    return %c0_i32, %c0_i32_0 : i32, i32
  }
  func.func @transform_13(%arg0: i32) -> (i32, i32) {
    %c0_i32 = arith.constant 0 : i32
    %c0_i32_0 = arith.constant 0 : i32
    %c0_i32_1 = arith.constant 0 : i32
    return %c0_i32, %c0_i32_0 : i32, i32
  }
  func.func @transform_14(%arg0: i32) -> (i32, i32) {
    %c0_i32 = arith.constant 0 : i32
    %c0_i32_0 = arith.constant 0 : i32
    %c0_i32_1 = arith.constant 0 : i32
    return %c0_i32, %c0_i32_0 : i32, i32
  }
  func.func @transform_15(%arg0: i32) -> (i32, i32) {
    %c0_i32 = arith.constant 0 : i32
    %c0_i32_0 = arith.constant 0 : i32
    %c0_i32_1 = arith.constant 0 : i32
    return %c0_i32, %c0_i32_0 : i32, i32
  }
  func.func @transform_16(%arg0: i32) -> (i32, i32) {
    %c0_i32 = arith.constant 0 : i32
    %c0_i32_0 = arith.constant 0 : i32
    %c0_i32_1 = arith.constant 0 : i32
    return %c0_i32, %c0_i32_0 : i32, i32
  }
  func.func @transform_17(%arg0: i32) -> (i32, i32) {
    %c0_i32 = arith.constant 0 : i32
    %c0_i32_0 = arith.constant 0 : i32
    %c0_i32_1 = arith.constant 0 : i32
    return %c0_i32, %c0_i32_0 : i32, i32
  }
  func.func @transform_18(%arg0: i32) -> (i32, i32) {
    %c0_i32 = arith.constant 0 : i32
    %c0_i32_0 = arith.constant 0 : i32
    %c0_i32_1 = arith.constant 0 : i32
    return %c0_i32, %c0_i32_0 : i32, i32
  }
  func.func @transform_19(%arg0: i32) -> (i32, i32) {
    %c0_i32 = arith.constant 0 : i32
    %c0_i32_0 = arith.constant 0 : i32
    %c0_i32_1 = arith.constant 0 : i32
    return %c0_i32, %c0_i32_0 : i32, i32
  }
  func.func @transform_20(%arg0: i32) -> (i32, i32) {
    %c0_i32 = arith.constant 0 : i32
    %c0_i32_0 = arith.constant 0 : i32
    %c0_i32_1 = arith.constant 0 : i32
    return %c0_i32, %c0_i32_0 : i32, i32
  }
  func.func @transform_21(%arg0: i32) -> (i32, i32) {
    %c0_i32 = arith.constant 0 : i32
    %c0_i32_0 = arith.constant 0 : i32
    %c0_i32_1 = arith.constant 0 : i32
    return %c0_i32, %c0_i32_0 : i32, i32
  }
  func.func @transform_22(%arg0: i32) -> (i32, i32) {
    %c0_i32 = arith.constant 0 : i32
    %c0_i32_0 = arith.constant 0 : i32
    %c0_i32_1 = arith.constant 0 : i32
    return %c0_i32, %c0_i32_0 : i32, i32
  }
  func.func @transform_23(%arg0: i32) -> (i32, i32, i32) {
    %c0_i32 = arith.constant 0 : i32
    %c0_i32_0 = arith.constant 0 : i32
    %c0_i32_1 = arith.constant 0 : i32
    return %arg0, %c0_i32, %c0_i32_0 : i32, i32, i32
  }
}

</mosaic_0001>

<llo_original>
// kernel: efficientnet_forward.1
$region0: #{efficientnet_forward.1}
  #allocation0 [shape = 'u32[]', space=smem, size = 0x4, offset = 0x4, fixed_abs, tag = 'smem constant byte address 0x4 - core index']
  #allocation1 [shape = 'u32[144,128]{1,0:T(1,128)}', space=vmem, size = 0x12000, scoped, tag = 'internal scratch']
  #allocation2 [shape = 'f32[1,1]{1,0:T(1,128)S(1)}', space=vmem, size = 0x200, scoped, tag = 'scoped memory for efficientnet_forward.1']
  %s0 = inlined_call_operand.vmem [shape: f32[2,64,9], index: 0, kind: input, shape index: {}]
  %s1 = inlined_call_operand.vmem [shape: f32[9,64,64], index: 1, kind: input, shape index: {}]
  %s2 = inlined_call_operand.vmem [shape: f32[9,16,64], index: 2, kind: input, shape index: {}]
  %s3 = inlined_call_operand.vmem [shape: f32[9,8], index: 3, kind: input, shape index: {}]
  %s4 = inlined_call_operand.vmem [shape: f32[1,8], index: 4, kind: input, shape index: {}]
  %s5 = inlined_call_operand.vmem [shape: f32[9,8,16], index: 5, kind: input, shape index: {}]
  %s6 = inlined_call_operand.vmem [shape: f32[1,16], index: 6, kind: input, shape index: {}]
  %s7 = inlined_call_operand.vmem [shape: f32[16,8], index: 7, kind: input, shape index: {}]
  %s8 = inlined_call_operand.vmem [shape: f32[1,8], index: 8, kind: input, shape index: {}]
  %s9 = inlined_call_operand.vmem [shape: f32[8,32], index: 9, kind: input, shape index: {}]
  %s10 = inlined_call_operand.vmem [shape: f32[1,32], index: 10, kind: input, shape index: {}]
  %s11 = inlined_call_operand.vmem [shape: f32[9,32], index: 11, kind: input, shape index: {}]
  %s12 = inlined_call_operand.vmem [shape: f32[1,32], index: 12, kind: input, shape index: {}]
  %s13 = inlined_call_operand.vmem [shape: f32[32,2], index: 13, kind: input, shape index: {}]
  %s14 = inlined_call_operand.vmem [shape: f32[1,2], index: 14, kind: input, shape index: {}]
  %s15 = inlined_call_operand.vmem [shape: f32[2,32], index: 15, kind: input, shape index: {}]
  %s16 = inlined_call_operand.vmem [shape: f32[1,32], index: 16, kind: input, shape index: {}]
  %s17 = inlined_call_operand.vmem [shape: f32[32,16], index: 17, kind: input, shape index: {}]
  %s18 = inlined_call_operand.vmem [shape: f32[1,16], index: 18, kind: input, shape index: {}]
  %s19 = inlined_call_operand.vmem [shape: f32[16,64], index: 19, kind: input, shape index: {}]
  %s20 = inlined_call_operand.vmem [shape: f32[1,64], index: 20, kind: input, shape index: {}]
  %s21 = inlined_call_operand.vmem [shape: f32[64,1], index: 21, kind: input, shape index: {}]
  %s22 = inlined_call_operand.<no memory space> [shape: f32[1,1], index: 22, kind: input, shape index: {}]
  %s23 = inlined_call_operand.vmem [shape: f32[2,1,1], index: 23, kind: output, shape index: {}]
  %s24 = sld [smem:[#allocation0]]
  $region125: #{efficientnet_forward.1} parent=0
    _
  %s26 = ssub.s32 1, %s24
  %s27 = scalar_select 0, %s26, %s24
  %v28 = vstv %s22
  %29 = vst [vmem:[#allocation2] sm:$0x1] %v28
  loop: start=0, step=1, limit=4
  $region2: #{efficientnet_forward.1} parent=0 // loop_pre_header
    _
  $region3: #{efficientnet_forward.1} parent=0 // loop_header
    %s31 = sphi 0, %s35
    %p32 = scmp.ge.s32.totalorder %s31, 4
    %s41 = sphi 0, %s43
    %s44 = sphi 0, %s41
    %s45 = sphi 0, %s44
    %s61 = sphi 0, %s45
    %s65 = sphi 0, %s65
    %s67 = sphi 0, %s65
    %s68 = sphi 0, %s67
    %s82 = sphi 0, %s68
    %s86 = sphi 0, %s86
    %s88 = sphi 0, %s86
    %s89 = sphi 0, %s88
    %s103 = sphi 0, %s89
    %s107 = sphi 0, %s107
    %s109 = sphi 0, %s107
    %s110 = sphi 0, %s109
    %s124 = sphi 0, %s110
    %s128 = sphi 0, %s128
    %s130 = sphi 0, %s128
    %s131 = sphi 0, %s130
    %s145 = sphi 0, %s131
    %s149 = sphi 0, %s149
    %s151 = sphi 0, %s149
    %s152 = sphi 0, %s151
    %s166 = sphi 0, %s152
    %s170 = sphi 0, %s170
    %s172 = sphi 0, %s170
    %s173 = sphi 0, %s172
    %s187 = sphi 0, %s173
    %s191 = sphi 0, %s191
    %s193 = sphi 0, %s191
    %s194 = sphi 0, %s193
    %s208 = sphi 0, %s194
    %s212 = sphi 0, %s212
    %s214 = sphi 0, %s212
    %s215 = sphi 0, %s214
    %s229 = sphi 0, %s215
    %s233 = sphi 0, %s233
    %s235 = sphi 0, %s233
    %s236 = sphi 0, %s235
    %s250 = sphi 0, %s236
    %s254 = sphi 0, %s254
    %s256 = sphi 0, %s254
    %s257 = sphi 0, %s256
    %s271 = sphi 0, %s257
    %s275 = sphi 0, %s275
    %s277 = sphi 0, %s275
    %s278 = sphi 0, %s277
    %s292 = sphi 0, %s278
    %s296 = sphi 0, %s296
    %s298 = sphi 0, %s296
    %s299 = sphi 0, %s298
    %s313 = sphi 0, %s299
    %s317 = sphi 0, %s317
    %s319 = sphi 0, %s317
    %s320 = sphi 0, %s319
    %s334 = sphi 0, %s320
    %s338 = sphi 0, %s338
    %s340 = sphi 0, %s338
    %s341 = sphi 0, %s340
    %s355 = sphi 0, %s341
    %s359 = sphi 0, %s359
    %s361 = sphi 0, %s359
    %s362 = sphi 0, %s361
    %s376 = sphi 0, %s362
    %s380 = sphi 0, %s380
    %s382 = sphi 0, %s380
    %s383 = sphi 0, %s382
    %s397 = sphi 0, %s383
    %s401 = sphi 0, %s401
    %s403 = sphi 0, %s401
    %s404 = sphi 0, %s403
    %s418 = sphi 0, %s404
    %s422 = sphi 0, %s422
    %s424 = sphi 0, %s422
    %s425 = sphi 0, %s424
    %s439 = sphi 0, %s425
    %s443 = sphi 0, %s443
    %s445 = sphi 0, %s443
    %s446 = sphi 0, %s445
    %s460 = sphi 0, %s446
    %s464 = sphi 0, %s464
    %s466 = sphi 0, %s464
    %s467 = sphi 0, %s466
    %s481 = sphi 0, %s467
    %s485 = sphi 0, %s485
    %s487 = sphi 0, %s485
    %s488 = sphi 0, %s487
    %s502 = sphi 0, %s488
    %s506 = sphi 0, %s506
    %s508 = sphi 0, %s506
    %s509 = sphi 0, %s508
    %s523 = sphi 0, %s509
    %s529 = sphi 0, %s531
    %s532 = sphi 0, %s529
    %s533 = sphi 0, %s532
    %s549 = sphi 0, %s533
  $region4: #{efficientnet_forward.1} parent=0 // loop_header_branch
    %34 = sbr.rel (%p32) target = $region8
  $region5: #{efficientnet_forward.1} parent=0 // loop_body
    %s36 = ssub.s32 %s31, 1
    %s37 = ssub.s32 %s31, 2
    %s38 = sadd.s32 %s31, 1
    %s39 = ssub.s32 %s31, %s38
    %p40 = scmp.eq.s32.totalorder %s39, 0
    %s42 = sadd.s32 %s41, 1
    %s43 = scalar_select %p40, %s41, %s42
    %p46 = pneg %p40
    %p47 = scmp.eq.s32.totalorder %s31, 1
    %p48 = por %p46, %p47
    %p49 = scmp.ne.s32.totalorder %s41, %s44
    %p50 = scmp.eq.s32.totalorder %s31, 0
    %p51 = por %p49, %p50
    %p52 = scmp.ne.s32.totalorder %s41, %s44
    %p53 = scmp.eq.s32.totalorder %s36, 1
    %p54 = por %p52, %p53
    %p55 = scmp.ne.s32.totalorder %s44, %s45
    %p56 = scmp.eq.s32.totalorder %s36, 0
    %p57 = por %p55, %p56
    %p58 = scmp.ne.s32.totalorder %s44, %s45
    %p59 = scmp.eq.s32.totalorder %s37, 1
    %p60 = por %p58, %p59
    %p62 = scmp.ne.s32.totalorder %s45, %s61
    %p63 = scmp.eq.s32.totalorder %s37, 0
    %p64 = por %p62, %p63
    %s66 = sadd.s32 %s65, 1
    %p69 = scmp.eq.s32.totalorder %s31, 1
    %p70 = scmp.ne.s32.totalorder %s65, %s67
    %p71 = scmp.eq.s32.totalorder %s31, 0
    %p72 = por %p70, %p71
    %p73 = scmp.ne.s32.totalorder %s65, %s67
    %p74 = scmp.eq.s32.totalorder %s36, 1
    %p75 = por %p73, %p74
    %p76 = scmp.ne.s32.totalorder %s67, %s68
    %p77 = scmp.eq.s32.totalorder %s36, 0
    %p78 = por %p76, %p77
    %p79 = scmp.ne.s32.totalorder %s67, %s68
    %p80 = scmp.eq.s32.totalorder %s37, 1
    %p81 = por %p79, %p80
    %p83 = scmp.ne.s32.totalorder %s68, %s82
    %p84 = scmp.eq.s32.totalorder %s37, 0
    %p85 = por %p83, %p84
    %s87 = sadd.s32 %s86, 1
    %p90 = scmp.eq.s32.totalorder %s31, 1
    %p91 = scmp.ne.s32.totalorder %s86, %s88
    %p92 = scmp.eq.s32.totalorder %s31, 0
    %p93 = por %p91, %p92
    %p94 = scmp.ne.s32.totalorder %s86, %s88
    %p95 = scmp.eq.s32.totalorder %s36, 1
    %p96 = por %p94, %p95
    %p97 = scmp.ne.s32.totalorder %s88, %s89
    %p98 = scmp.eq.s32.totalorder %s36, 0
    %p99 = por %p97, %p98
    %p100 = scmp.ne.s32.totalorder %s88, %s89
    %p101 = scmp.eq.s32.totalorder %s37, 1
    %p102 = por %p100, %p101
    %p104 = scmp.ne.s32.totalorder %s89, %s103
    %p105 = scmp.eq.s32.totalorder %s37, 0
    %p106 = por %p104, %p105
    %s108 = sadd.s32 %s107, 1
    %p111 = scmp.eq.s32.totalorder %s31, 1
    %p112 = scmp.ne.s32.totalorder %s107, %s109
    %p113 = scmp.eq.s32.totalorder %s31, 0
    %p114 = por %p112, %p113
    %p115 = scmp.ne.s32.totalorder %s107, %s109
    %p116 = scmp.eq.s32.totalorder %s36, 1
    %p117 = por %p115, %p116
    %p118 = scmp.ne.s32.totalorder %s109, %s110
    %p119 = scmp.eq.s32.totalorder %s36, 0
    %p120 = por %p118, %p119
    %p121 = scmp.ne.s32.totalorder %s109, %s110
    %p122 = scmp.eq.s32.totalorder %s37, 1
    %p123 = por %p121, %p122
    %p125 = scmp.ne.s32.totalorder %s110, %s124
    %p126 = scmp.eq.s32.totalorder %s37, 0
    %p127 = por %p125, %p126
    %s129 = sadd.s32 %s128, 1
    %p132 = scmp.eq.s32.totalorder %s31, 1
    %p133 = scmp.ne.s32.totalorder %s128, %s130
    %p134 = scmp.eq.s32.totalorder %s31, 0
    %p135 = por %p133, %p134
    %p136 = scmp.ne.s32.totalorder %s128, %s130
    %p137 = scmp.eq.s32.totalorder %s36, 1
    %p138 = por %p136, %p137
    %p139 = scmp.ne.s32.totalorder %s130, %s131
    %p140 = scmp.eq.s32.totalorder %s36, 0
    %p141 = por %p139, %p140
    %p142 = scmp.ne.s32.totalorder %s130, %s131
    %p143 = scmp.eq.s32.totalorder %s37, 1
    %p144 = por %p142, %p143
    %p146 = scmp.ne.s32.totalorder %s131, %s145
    %p147 = scmp.eq.s32.totalorder %s37, 0
    %p148 = por %p146, %p147
    %s150 = sadd.s32 %s149, 1
    %p153 = scmp.eq.s32.totalorder %s31, 1
    %p154 = scmp.ne.s32.totalorder %s149, %s151
    %p155 = scmp.eq.s32.totalorder %s31, 0
    %p156 = por %p154, %p155
    %p157 = scmp.ne.s32.totalorder %s149, %s151
    %p158 = scmp.eq.s32.totalorder %s36, 1
    %p159 = por %p157, %p158
    %p160 = scmp.ne.s32.totalorder %s151, %s152
    %p161 = scmp.eq.s32.totalorder %s36, 0
    %p162 = por %p160, %p161
    %p163 = scmp.ne.s32.totalorder %s151, %s152
    %p164 = scmp.eq.s32.totalorder %s37, 1
    %p165 = por %p163, %p164
    %p167 = scmp.ne.s32.totalorder %s152, %s166
    %p168 = scmp.eq.s32.totalorder %s37, 0
    %p169 = por %p167, %p168
    %s171 = sadd.s32 %s170, 1
    %p174 = scmp.eq.s32.totalorder %s31, 1
    %p175 = scmp.ne.s32.totalorder %s170, %s172
    %p176 = scmp.eq.s32.totalorder %s31, 0
    %p177 = por %p175, %p176
    %p178 = scmp.ne.s32.totalorder %s170, %s172
    %p179 = scmp.eq.s32.totalorder %s36, 1
    %p180 = por %p178, %p179
    %p181 = scmp.ne.s32.totalorder %s172, %s173
    %p182 = scmp.eq.s32.totalorder %s36, 0
    %p183 = por %p181, %p182
    %p184 = scmp.ne.s32.totalorder %s172, %s173
    %p185 = scmp.eq.s32.totalorder %s37, 1
    %p186 = por %p184, %p185
    %p188 = scmp.ne.s32.totalorder %s173, %s187
    %p189 = scmp.eq.s32.totalorder %s37, 0
    %p190 = por %p188, %p189
    %s192 = sadd.s32 %s191, 1
    %p195 = scmp.eq.s32.totalorder %s31, 1
    %p196 = scmp.ne.s32.totalorder %s191, %s193
    %p197 = scmp.eq.s32.totalorder %s31, 0
    %p198 = por %p196, %p197
    %p199 = scmp.ne.s32.totalorder %s191, %s193
    %p200 = scmp.eq.s32.totalorder %s36, 1
    %p201 = por %p199, %p200
    %p202 = scmp.ne.s32.totalorder %s193, %s194
    %p203 = scmp.eq.s32.totalorder %s36, 0
    %p204 = por %p202, %p203
    %p205 = scmp.ne.s32.totalorder %s193, %s194
    %p206 = scmp.eq.s32.totalorder %s37, 1
    %p207 = por %p205, %p206
    %p209 = scmp.ne.s32.totalorder %s194, %s208
    %p210 = scmp.eq.s32.totalorder %s37, 0
    %p211 = por %p209, %p210
    %s213 = sadd.s32 %s212, 1
    %p216 = scmp.eq.s32.totalorder %s31, 1
    %p217 = scmp.ne.s32.totalorder %s212, %s214
    %p218 = scmp.eq.s32.totalorder %s31, 0
    %p219 = por %p217, %p218
    %p220 = scmp.ne.s32.totalorder %s212, %s214
    %p221 = scmp.eq.s32.totalorder %s36, 1
    %p222 = por %p220, %p221
    %p223 = scmp.ne.s32.totalorder %s214, %s215
    %p224 = scmp.eq.s32.totalorder %s36, 0
    %p225 = por %p223, %p224
    %p226 = scmp.ne.s32.totalorder %s214, %s215
    %p227 = scmp.eq.s32.totalorder %s37, 1
    %p228 = por %p226, %p227
    %p230 = scmp.ne.s32.totalorder %s215, %s229
    %p231 = scmp.eq.s32.totalorder %s37, 0
    %p232 = por %p230, %p231
    %s234 = sadd.s32 %s233, 1
    %p237 = scmp.eq.s32.totalorder %s31, 1
    %p238 = scmp.ne.s32.totalorder %s233, %s235
    %p239 = scmp.eq.s32.totalorder %s31, 0
    %p240 = por %p238, %p239
    %p241 = scmp.ne.s32.totalorder %s233, %s235
    %p242 = scmp.eq.s32.totalorder %s36, 1
    %p243 = por %p241, %p242
    %p244 = scmp.ne.s32.totalorder %s235, %s236
    %p245 = scmp.eq.s32.totalorder %s36, 0
    %p246 = por %p244, %p245
    %p247 = scmp.ne.s32.totalorder %s235, %s236
    %p248 = scmp.eq.s32.totalorder %s37, 1
    %p249 = por %p247, %p248
    %p251 = scmp.ne.s32.totalorder %s236, %s250
    %p252 = scmp.eq.s32.totalorder %s37, 0
    %p253 = por %p251, %p252
    %s255 = sadd.s32 %s254, 1
    %p258 = scmp.eq.s32.totalorder %s31, 1
    %p259 = scmp.ne.s32.totalorder %s254, %s256
    %p260 = scmp.eq.s32.totalorder %s31, 0
    %p261 = por %p259, %p260
    %p262 = scmp.ne.s32.totalorder %s254, %s256
    %p263 = scmp.eq.s32.totalorder %s36, 1
    %p264 = por %p262, %p263
    %p265 = scmp.ne.s32.totalorder %s256, %s257
    %p266 = scmp.eq.s32.totalorder %s36, 0
    %p267 = por %p265, %p266
    %p268 = scmp.ne.s32.totalorder %s256, %s257
    %p269 = scmp.eq.s32.totalorder %s37, 1
    %p270 = por %p268, %p269
    %p272 = scmp.ne.s32.totalorder %s257, %s271
    %p273 = scmp.eq.s32.totalorder %s37, 0
    %p274 = por %p272, %p273
    %s276 = sadd.s32 %s275, 1
    %p279 = scmp.eq.s32.totalorder %s31, 1
    %p280 = scmp.ne.s32.totalorder %s275, %s277
    %p281 = scmp.eq.s32.totalorder %s31, 0
    %p282 = por %p280, %p281
    %p283 = scmp.ne.s32.totalorder %s275, %s277
    %p284 = scmp.eq.s32.totalorder %s36, 1
    %p285 = por %p283, %p284
    %p286 = scmp.ne.s32.totalorder %s277, %s278
    %p287 = scmp.eq.s32.totalorder %s36, 0
    %p288 = por %p286, %p287
    %p289 = scmp.ne.s32.totalorder %s277, %s278
    %p290 = scmp.eq.s32.totalorder %s37, 1
    %p291 = por %p289, %p290
    %p293 = scmp.ne.s32.totalorder %s278, %s292
    %p294 = scmp.eq.s32.totalorder %s37, 0
    %p295 = por %p293, %p294
    %s297 = sadd.s32 %s296, 1
    %p300 = scmp.eq.s32.totalorder %s31, 1
    %p301 = scmp.ne.s32.totalorder %s296, %s298
    %p302 = scmp.eq.s32.totalorder %s31, 0
    %p303 = por %p301, %p302
    %p304 = scmp.ne.s32.totalorder %s296, %s298
    %p305 = scmp.eq.s32.totalorder %s36, 1
    %p306 = por %p304, %p305
    %p307 = scmp.ne.s32.totalorder %s298, %s299
    %p308 = scmp.eq.s32.totalorder %s36, 0
    %p309 = por %p307, %p308
    %p310 = scmp.ne.s32.totalorder %s298, %s299
    %p311 = scmp.eq.s32.totalorder %s37, 1
    %p312 = por %p310, %p311
    %p314 = scmp.ne.s32.totalorder %s299, %s313
    %p315 = scmp.eq.s32.totalorder %s37, 0
    %p316 = por %p314, %p315
    %s318 = sadd.s32 %s317, 1
    %p321 = scmp.eq.s32.totalorder %s31, 1
    %p322 = scmp.ne.s32.totalorder %s317, %s319
    %p323 = scmp.eq.s32.totalorder %s31, 0
    %p324 = por %p322, %p323
    %p325 = scmp.ne.s32.totalorder %s317, %s319
    %p326 = scmp.eq.s32.totalorder %s36, 1
    %p327 = por %p325, %p326
    %p328 = scmp.ne.s32.totalorder %s319, %s320
    %p329 = scmp.eq.s32.totalorder %s36, 0
    %p330 = por %p328, %p329
    %p331 = scmp.ne.s32.totalorder %s319, %s320
    %p332 = scmp.eq.s32.totalorder %s37, 1
    %p333 = por %p331, %p332
    %p335 = scmp.ne.s32.totalorder %s320, %s334
    %p336 = scmp.eq.s32.totalorder %s37, 0
    %p337 = por %p335, %p336
    %s339 = sadd.s32 %s338, 1
    %p342 = scmp.eq.s32.totalorder %s31, 1
    %p343 = scmp.ne.s32.totalorder %s338, %s340
    %p344 = scmp.eq.s32.totalorder %s31, 0
    %p345 = por %p343, %p344
    %p346 = scmp.ne.s32.totalorder %s338, %s340
    %p347 = scmp.eq.s32.totalorder %s36, 1
    %p348 = por %p346, %p347
    %p349 = scmp.ne.s32.totalorder %s340, %s341
    %p350 = scmp.eq.s32.totalorder %s36, 0
    %p351 = por %p349, %p350
    %p352 = scmp.ne.s32.totalorder %s340, %s341
    %p353 = scmp.eq.s32.totalorder %s37, 1
    %p354 = por %p352, %p353
    %p356 = scmp.ne.s32.totalorder %s341, %s355
    %p357 = scmp.eq.s32.totalorder %s37, 0
    %p358 = por %p356, %p357
    %s360 = sadd.s32 %s359, 1
    %p363 = scmp.eq.s32.totalorder %s31, 1
    %p364 = scmp.ne.s32.totalorder %s359, %s361
    %p365 = scmp.eq.s32.totalorder %s31, 0
    %p366 = por %p364, %p365
    %p367 = scmp.ne.s32.totalorder %s359, %s361
    %p368 = scmp.eq.s32.totalorder %s36, 1
    %p369 = por %p367, %p368
    %p370 = scmp.ne.s32.totalorder %s361, %s362
    %p371 = scmp.eq.s32.totalorder %s36, 0
    %p372 = por %p370, %p371
    %p373 = scmp.ne.s32.totalorder %s361, %s362
    %p374 = scmp.eq.s32.totalorder %s37, 1
    %p375 = por %p373, %p374
    %p377 = scmp.ne.s32.totalorder %s362, %s376
    %p378 = scmp.eq.s32.totalorder %s37, 0
    %p379 = por %p377, %p378
    %s381 = sadd.s32 %s380, 1
    %p384 = scmp.eq.s32.totalorder %s31, 1
    %p385 = scmp.ne.s32.totalorder %s380, %s382
    %p386 = scmp.eq.s32.totalorder %s31, 0
    %p387 = por %p385, %p386
    %p388 = scmp.ne.s32.totalorder %s380, %s382
    %p389 = scmp.eq.s32.totalorder %s36, 1
    %p390 = por %p388, %p389
    %p391 = scmp.ne.s32.totalorder %s382, %s383
    %p392 = scmp.eq.s32.totalorder %s36, 0
    %p393 = por %p391, %p392
    %p394 = scmp.ne.s32.totalorder %s382, %s383
    %p395 = scmp.eq.s32.totalorder %s37, 1
    %p396 = por %p394, %p395
    %p398 = scmp.ne.s32.totalorder %s383, %s397
    %p399 = scmp.eq.s32.totalorder %s37, 0
    %p400 = por %p398, %p399
    %s402 = sadd.s32 %s401, 1
    %p405 = scmp.eq.s32.totalorder %s31, 1
    %p406 = scmp.ne.s32.totalorder %s401, %s403
    %p407 = scmp.eq.s32.totalorder %s31, 0
    %p408 = por %p406, %p407
    %p409 = scmp.ne.s32.totalorder %s401, %s403
    %p410 = scmp.eq.s32.totalorder %s36, 1
    %p411 = por %p409, %p410
    %p412 = scmp.ne.s32.totalorder %s403, %s404
    %p413 = scmp.eq.s32.totalorder %s36, 0
    %p414 = por %p412, %p413
    %p415 = scmp.ne.s32.totalorder %s403, %s404
    %p416 = scmp.eq.s32.totalorder %s37, 1
    %p417 = por %p415, %p416
    %p419 = scmp.ne.s32.totalorder %s404, %s418
    %p420 = scmp.eq.s32.totalorder %s37, 0
    %p421 = por %p419, %p420
    %s423 = sadd.s32 %s422, 1
    %p426 = scmp.eq.s32.totalorder %s31, 1
    %p427 = scmp.ne.s32.totalorder %s422, %s424
    %p428 = scmp.eq.s32.totalorder %s31, 0
    %p429 = por %p427, %p428
    %p430 = scmp.ne.s32.totalorder %s422, %s424
    %p431 = scmp.eq.s32.totalorder %s36, 1
    %p432 = por %p430, %p431
    %p433 = scmp.ne.s32.totalorder %s424, %s425
    %p434 = scmp.eq.s32.totalorder %s36, 0
    %p435 = por %p433, %p434
    %p436 = scmp.ne.s32.totalorder %s424, %s425
    %p437 = scmp.eq.s32.totalorder %s37, 1
    %p438 = por %p436, %p437
    %p440 = scmp.ne.s32.totalorder %s425, %s439
    %p441 = scmp.eq.s32.totalorder %s37, 0
    %p442 = por %p440, %p441
    %s444 = sadd.s32 %s443, 1
    %p447 = scmp.eq.s32.totalorder %s31, 1
    %p448 = scmp.ne.s32.totalorder %s443, %s445
    %p449 = scmp.eq.s32.totalorder %s31, 0
    %p450 = por %p448, %p449
    %p451 = scmp.ne.s32.totalorder %s443, %s445
    %p452 = scmp.eq.s32.totalorder %s36, 1
    %p453 = por %p451, %p452
    %p454 = scmp.ne.s32.totalorder %s445, %s446
    %p455 = scmp.eq.s32.totalorder %s36, 0
    %p456 = por %p454, %p455
    %p457 = scmp.ne.s32.totalorder %s445, %s446
    %p458 = scmp.eq.s32.totalorder %s37, 1
    %p459 = por %p457, %p458
    %p461 = scmp.ne.s32.totalorder %s446, %s460
    %p462 = scmp.eq.s32.totalorder %s37, 0
    %p463 = por %p461, %p462
    %s465 = sadd.s32 %s464, 1
    %p468 = scmp.eq.s32.totalorder %s31, 1
    %p469 = scmp.ne.s32.totalorder %s464, %s466
    %p470 = scmp.eq.s32.totalorder %s31, 0
    %p471 = por %p469, %p470
    %p472 = scmp.ne.s32.totalorder %s464, %s466
    %p473 = scmp.eq.s32.totalorder %s36, 1
    %p474 = por %p472, %p473
    %p475 = scmp.ne.s32.totalorder %s466, %s467
    %p476 = scmp.eq.s32.totalorder %s36, 0
    %p477 = por %p475, %p476
    %p478 = scmp.ne.s32.totalorder %s466, %s467
    %p479 = scmp.eq.s32.totalorder %s37, 1
    %p480 = por %p478, %p479
    %p482 = scmp.ne.s32.totalorder %s467, %s481
    %p483 = scmp.eq.s32.totalorder %s37, 0
    %p484 = por %p482, %p483
    %s486 = sadd.s32 %s485, 1
    %p489 = scmp.eq.s32.totalorder %s31, 1
    %p490 = scmp.ne.s32.totalorder %s485, %s487
    %p491 = scmp.eq.s32.totalorder %s31, 0
    %p492 = por %p490, %p491
    %p493 = scmp.ne.s32.totalorder %s485, %s487
    %p494 = scmp.eq.s32.totalorder %s36, 1
    %p495 = por %p493, %p494
    %p496 = scmp.ne.s32.totalorder %s487, %s488
    %p497 = scmp.eq.s32.totalorder %s36, 0
    %p498 = por %p496, %p497
    %p499 = scmp.ne.s32.totalorder %s487, %s488
    %p500 = scmp.eq.s32.totalorder %s37, 1
    %p501 = por %p499, %p500
    %p503 = scmp.ne.s32.totalorder %s488, %s502
    %p504 = scmp.eq.s32.totalorder %s37, 0
    %p505 = por %p503, %p504
    %s507 = sadd.s32 %s506, 1
    %p510 = scmp.eq.s32.totalorder %s31, 1
    %p511 = scmp.ne.s32.totalorder %s506, %s508
    %p512 = scmp.eq.s32.totalorder %s31, 0
    %p513 = por %p511, %p512
    %p514 = scmp.ne.s32.totalorder %s506, %s508
    %p515 = scmp.eq.s32.totalorder %s36, 1
    %p516 = por %p514, %p515
    %p517 = scmp.ne.s32.totalorder %s508, %s509
    %p518 = scmp.eq.s32.totalorder %s36, 0
    %p519 = por %p517, %p518
    %p520 = scmp.ne.s32.totalorder %s508, %s509
    %p521 = scmp.eq.s32.totalorder %s37, 1
    %p522 = por %p520, %p521
    %p524 = scmp.ne.s32.totalorder %s509, %s523
    %p525 = scmp.eq.s32.totalorder %s37, 0
    %p526 = por %p524, %p525
    %s527 = ssub.s32 %s31, %s38
    %p528 = scmp.eq.s32.totalorder %s527, 0
    %s530 = sadd.s32 %s529, 1
    %s531 = scalar_select %p528, %s529, %s530
    %p534 = pneg %p528
    %p535 = scmp.eq.s32.totalorder %s31, 1
    %p536 = por %p534, %p535
    %p537 = scmp.ne.s32.totalorder %s529, %s532
    %p538 = scmp.eq.s32.totalorder %s31, 0
    %p539 = por %p537, %p538
    %p540 = scmp.ne.s32.totalorder %s529, %s532
    %p541 = scmp.eq.s32.totalorder %s36, 1
    %p542 = por %p540, %p541
    %p543 = scmp.ne.s32.totalorder %s532, %s533
    %p544 = scmp.eq.s32.totalorder %s36, 0
    %p545 = por %p543, %p544
    %p546 = scmp.ne.s32.totalorder %s532, %s533
    %p547 = scmp.eq.s32.totalorder %s37, 1
    %p548 = por %p546, %p547
    %p550 = scmp.ne.s32.totalorder %s533, %s549
    %p551 = scmp.eq.s32.totalorder %s37, 0
    %p552 = por %p550, %p551
    %p553 = scmp.le.s32.totalorder 1, %s31
    %p554 = scmp.lt.s32.totalorder %s31, 3
    %p555 = pnand %p553, %p554
    %p556 = pneg %p555
    // Predicated region
    $region9: #{efficientnet_forward.1} parent=5 // pred_check
      _
    $region10: #{efficientnet_forward.1} parent=5 // pred_check_branch
      %558 = sbr.rel (%p555) target = $region12
    $region11: #{efficientnet_forward.1} parent=5 // pred_region
      %s559 = ssub.s32 %s31, 1
      // Predicated region
      $region13: #{efficientnet_forward.1} parent=11 // pred_check
        %p560 = pneg %p78
      $region14: #{efficientnet_forward.1} parent=11 // pred_check_branch
        %562 = sbr.rel (%p560) target = $region16
      $region15: #{efficientnet_forward.1} parent=11 // pred_region
        _
      $region16: #{efficientnet_forward.1} parent=11 // pred_fallthru
        _
      // Predicated region
      $region17: #{efficientnet_forward.1} parent=11 // pred_check
        %p563 = pneg %p99
      $region18: #{efficientnet_forward.1} parent=11 // pred_check_branch
        %565 = sbr.rel (%p563) target = $region20
      $region19: #{efficientnet_forward.1} parent=11 // pred_region
        _
      $region20: #{efficientnet_forward.1} parent=11 // pred_fallthru
        _
      // Predicated region
      $region21: #{efficientnet_forward.1} parent=11 // pred_check
        %p566 = pneg %p120
      $region22: #{efficientnet_forward.1} parent=11 // pred_check_branch
        %568 = sbr.rel (%p566) target = $region24
      $region23: #{efficientnet_forward.1} parent=11 // pred_region
        _
      $region24: #{efficientnet_forward.1} parent=11 // pred_fallthru
        _
      // Predicated region
      $region25: #{efficientnet_forward.1} parent=11 // pred_check
        %p569 = pneg %p141
      $region26: #{efficientnet_forward.1} parent=11 // pred_check_branch
        %571 = sbr.rel (%p569) target = $region28
      $region27: #{efficientnet_forward.1} parent=11 // pred_region
        _
      $region28: #{efficientnet_forward.1} parent=11 // pred_fallthru
        _
      // Predicated region
      $region29: #{efficientnet_forward.1} parent=11 // pred_check
        %p572 = pneg %p162
      $region30: #{efficientnet_forward.1} parent=11 // pred_check_branch
        %574 = sbr.rel (%p572) target = $region32
      $region31: #{efficientnet_forward.1} parent=11 // pred_region
        _
      $region32: #{efficientnet_forward.1} parent=11 // pred_fallthru
        _
      // Predicated region
      $region33: #{efficientnet_forward.1} parent=11 // pred_check
        %p575 = pneg %p183
      $region34: #{efficientnet_forward.1} parent=11 // pred_check_branch
        %577 = sbr.rel (%p575) target = $region36
      $region35: #{efficientnet_forward.1} parent=11 // pred_region
        _
      $region36: #{efficientnet_forward.1} parent=11 // pred_fallthru
        _
      // Predicated region
      $region37: #{efficientnet_forward.1} parent=11 // pred_check
        %p578 = pneg %p204
      $region38: #{efficientnet_forward.1} parent=11 // pred_check_branch
        %580 = sbr.rel (%p578) target = $region40
      $region39: #{efficientnet_forward.1} parent=11 // pred_region
        _
      $region40: #{efficientnet_forward.1} parent=11 // pred_fallthru
        _
      // Predicated region
      $region41: #{efficientnet_forward.1} parent=11 // pred_check
        %p581 = pneg %p225
      $region42: #{efficientnet_forward.1} parent=11 // pred_check_branch
        %583 = sbr.rel (%p581) target = $region44
      $region43: #{efficientnet_forward.1} parent=11 // pred_region
        _
      $region44: #{efficientnet_forward.1} parent=11 // pred_fallthru
        _
      // Predicated region
      $region45: #{efficientnet_forward.1} parent=11 // pred_check
        %p584 = pneg %p246
      $region46: #{efficientnet_forward.1} parent=11 // pred_check_branch
        %586 = sbr.rel (%p584) target = $region48
      $region47: #{efficientnet_forward.1} parent=11 // pred_region
        _
      $region48: #{efficientnet_forward.1} parent=11 // pred_fallthru
        _
      // Predicated region
      $region49: #{efficientnet_forward.1} parent=11 // pred_check
        %p587 = pneg %p267
      $region50: #{efficientnet_forward.1} parent=11 // pred_check_branch
        %589 = sbr.rel (%p587) target = $region52
      $region51: #{efficientnet_forward.1} parent=11 // pred_region
        _
      $region52: #{efficientnet_forward.1} parent=11 // pred_fallthru
        _
      // Predicated region
      $region53: #{efficientnet_forward.1} parent=11 // pred_check
        %p590 = pneg %p288
      $region54: #{efficientnet_forward.1} parent=11 // pred_check_branch
        %592 = sbr.rel (%p590) target = $region56
      $region55: #{efficientnet_forward.1} parent=11 // pred_region
        _
      $region56: #{efficientnet_forward.1} parent=11 // pred_fallthru
        _
      // Predicated region
      $region57: #{efficientnet_forward.1} parent=11 // pred_check
        %p593 = pneg %p309
      $region58: #{efficientnet_forward.1} parent=11 // pred_check_branch
        %595 = sbr.rel (%p593) target = $region60
      $region59: #{efficientnet_forward.1} parent=11 // pred_region
        _
      $region60: #{efficientnet_forward.1} parent=11 // pred_fallthru
        _
      // Predicated region
      $region61: #{efficientnet_forward.1} parent=11 // pred_check
        %p596 = pneg %p330
      $region62: #{efficientnet_forward.1} parent=11 // pred_check_branch
        %598 = sbr.rel (%p596) target = $region64
      $region63: #{efficientnet_forward.1} parent=11 // pred_region
        _
      $region64: #{efficientnet_forward.1} parent=11 // pred_fallthru
        _
      // Predicated region
      $region65: #{efficientnet_forward.1} parent=11 // pred_check
        %p599 = pneg %p351
      $region66: #{efficientnet_forward.1} parent=11 // pred_check_branch
        %601 = sbr.rel (%p599) target = $region68
      $region67: #{efficientnet_forward.1} parent=11 // pred_region
        _
      $region68: #{efficientnet_forward.1} parent=11 // pred_fallthru
        _
      // Predicated region
      $region69: #{efficientnet_forward.1} parent=11 // pred_check
        %p602 = pneg %p372
      $region70: #{efficientnet_forward.1} parent=11 // pred_check_branch
        %604 = sbr.rel (%p602) target = $region72
      $region71: #{efficientnet_forward.1} parent=11 // pred_region
        _
      $region72: #{efficientnet_forward.1} parent=11 // pred_fallthru
        _
      // Predicated region
      $region73: #{efficientnet_forward.1} parent=11 // pred_check
        %p605 = pneg %p393
      $region74: #{efficientnet_forward.1} parent=11 // pred_check_branch
        %607 = sbr.rel (%p605) target = $region76
      $region75: #{efficientnet_forward.1} parent=11 // pred_region
        _
      $region76: #{efficientnet_forward.1} parent=11 // pred_fallthru
        _
      // Predicated region
      $region77: #{efficientnet_forward.1} parent=11 // pred_check
        %p608 = pneg %p414
      $region78: #{efficientnet_forward.1} parent=11 // pred_check_branch
        %610 = sbr.rel (%p608) target = $region80
      $region79: #{efficientnet_forward.1} parent=11 // pred_region
        _
      $region80: #{efficientnet_forward.1} parent=11 // pred_fallthru
        _
      // Predicated region
      $region81: #{efficientnet_forward.1} parent=11 // pred_check
        %p611 = pneg %p435
      $region82: #{efficientnet_forward.1} parent=11 // pred_check_branch
        %613 = sbr.rel (%p611) target = $region84
      $region83: #{efficientnet_forward.1} parent=11 // pred_region
        _
      $region84: #{efficientnet_forward.1} parent=11 // pred_fallthru
        _
      // Predicated region
      $region85: #{efficientnet_forward.1} parent=11 // pred_check
        %p614 = pneg %p456
      $region86: #{efficientnet_forward.1} parent=11 // pred_check_branch
        %616 = sbr.rel (%p614) target = $region88
      $region87: #{efficientnet_forward.1} parent=11 // pred_region
        _
      $region88: #{efficientnet_forward.1} parent=11 // pred_fallthru
        _
      // Predicated region
      $region89: #{efficientnet_forward.1} parent=11 // pred_check
        %p617 = pneg %p477
      $region90: #{efficientnet_forward.1} parent=11 // pred_check_branch
        %619 = sbr.rel (%p617) target = $region92
      $region91: #{efficientnet_forward.1} parent=11 // pred_region
        _
      $region92: #{efficientnet_forward.1} parent=11 // pred_fallthru
        _
      // Predicated region
      $region93: #{efficientnet_forward.1} parent=11 // pred_check
        %p620 = pneg %p498
      $region94: #{efficientnet_forward.1} parent=11 // pred_check_branch
        %622 = sbr.rel (%p620) target = $region96
      $region95: #{efficientnet_forward.1} parent=11 // pred_region
        _
      $region96: #{efficientnet_forward.1} parent=11 // pred_fallthru
        _
      // Predicated region
      $region97: #{efficientnet_forward.1} parent=11 // pred_check
        %p623 = pneg %p519
      $region98: #{efficientnet_forward.1} parent=11 // pred_check_branch
        %625 = sbr.rel (%p623) target = $region100
      $region99: #{efficientnet_forward.1} parent=11 // pred_region
        _
      $region100: #{efficientnet_forward.1} parent=11 // pred_fallthru
        _
    $region12: #{efficientnet_forward.1} parent=5 // pred_fallthru
      _
    %p626 = scmp.lt.s32.totalorder %s31, 2
    // Predicated region
    $region101: #{efficientnet_forward.1} parent=5 // pred_check
      %p627 = pneg %p626
    $region102: #{efficientnet_forward.1} parent=5 // pred_check_branch
      %629 = sbr.rel (%p627) target = $region104
    $region103: #{efficientnet_forward.1} parent=5 // pred_region
      // Predicated region
      $region105: #{efficientnet_forward.1} parent=103 // pred_check
        %p630 = pneg %p51
      $region106: #{efficientnet_forward.1} parent=103 // pred_check_branch
        %632 = sbr.rel (%p630) target = $region108
      $region107: #{efficientnet_forward.1} parent=103 // pred_region
        %p633 = scmp.lt.s32.totalorder %s31, 1
        %s634 = scalar_select %p633, %s31, 1
        %s635 = smul.addr %s634, 8
        %s636 = smul.addr %s635, 8
        %s637 = scalar_lea.vmem %s0, %s636
      $region108: #{efficientnet_forward.1} parent=103 // pred_fallthru
        _
    $region104: #{efficientnet_forward.1} parent=5 // pred_fallthru
      _
    %p638 = scmp.le.s32.totalorder 1, %s31
    %p639 = scmp.lt.s32.totalorder %s31, 3
    %p640 = pnand %p638, %p639
    %p641 = pneg %p640
    // Predicated region
    $region109: #{efficientnet_forward.1} parent=5 // pred_check
      _
    $region110: #{efficientnet_forward.1} parent=5 // pred_check_branch
      %643 = sbr.rel (%p640) target = $region112
    $region111: #{efficientnet_forward.1} parent=5 // pred_region
      %s644 = ssub.s32 %s31, 1
      %p645 = scmp.lt.s32.totalorder %s36, 1
      %s646 = scalar_select %p645, %s36, 1
      %s647 = smul.addr %s646, 8
      %s648 = smul.addr %s647, 8
      %s649 = scalar_lea.vmem %s0, %s648
      %p650 = pneg %p57
      %p651 = pneg %p54
      %p652 = pneg %p78
      %p653 = pneg %p75
      %p654 = pneg %p99
      %p655 = pneg %p96
      %p656 = pneg %p120
      %p657 = pneg %p117
      %p658 = pneg %p141
      %p659 = pneg %p138
      %p660 = pneg %p162
      %p661 = pneg %p159
      %p662 = pneg %p183
      %p663 = pneg %p180
      %p664 = pneg %p204
      %p665 = pneg %p201
      %p666 = pneg %p225
      %p667 = pneg %p222
      %p668 = pneg %p246
      %p669 = pneg %p243
      %p670 = pneg %p267
      %p671 = pneg %p264
      %p672 = pneg %p288
      %p673 = pneg %p285
      %p674 = pneg %p309
      %p675 = pneg %p306
      %p676 = pneg %p330
      %p677 = pneg %p327
      %p678 = pneg %p351
      %p679 = pneg %p348
      %p680 = pneg %p372
      %p681 = pneg %p369
      %p682 = pneg %p393
      %p683 = pneg %p390
      %p684 = pneg %p414
      %p685 = pneg %p411
      %p686 = pneg %p435
      %p687 = pneg %p432
      %p688 = pneg %p456
      %p689 = pneg %p453
      %p690 = pneg %p477
      %p691 = pneg %p474
      %p692 = pneg %p498
      %p693 = pneg %p495
      %p694 = pneg %p519
      %p695 = pneg %p516
      %p696 = pneg %p545
      %p697 = pneg %p542
      %p698 = scmp.lt.s32.totalorder %s36, 1
      %s699 = scalar_select %p698, %s36, 1
      %s700 = scalar_lea.vmem %s23, %s699
      %p701 = scmp.lt.s32.totalorder %s36, 1
      %s702 = scalar_select %p701, %s36, 1
      %s703 = smul.addr %s702, 8
      %s704 = smul.addr %s703, 8
      %s705 = scalar_lea.vmem %s0, %s704
      %p706 = scmp.lt.s32.totalorder %s36, 1
      %s707 = scalar_select %p706, %s36, 1
      %s708 = scalar_lea.vmem %s23, %s707
      %v709 = vld [vmem:[%s705] sm:$0xff]
      %v710 = vld [vmem:[%s705 + $0x8] sm:$0xff]
      %v711 = vld [vmem:[%s705 + $0x10] sm:$0xff]
      %v712 = vld [vmem:[%s705 + $0x18] sm:$0xff]
      %v713 = vld [vmem:[%s705 + $0x20] sm:$0xff]
      %v714 = vld [vmem:[%s705 + $0x28] sm:$0xff]
      %v715 = vld [vmem:[%s705 + $0x30] sm:$0xff]
      %v716 = vld [vmem:[%s705 + $0x38] sm:$0xff]
      %v717 = vld [vmem:[%s3] sm:$0xff]
      %v718 = vld [vmem:[%s3 + $0x8] sm:$0x1]
      %v719 = vld [vmem:[%s4] sm:$0x1]
      %v721 = vlaneseq
      %v722 = vshrl.u32 %v721, 7
      %v723 = vsub.s32 0, %v722
      %v724 = vrot.slane %v719, %v723
      %vm726 = vcmask 72704
      %v728 = vsel %vm726, %v709, 0
      %v731 = vsel %vm726, %v710, 0
      %v734 = vsel %vm726, %v711, 0
      %v737 = vsel %vm726, %v712, 0
      %v740 = vsel %vm726, %v713, 0
      %v743 = vsel %vm726, %v714, 0
      %v746 = vsel %vm726, %v715, 0
      %v749 = vsel %vm726, %v716, 0
      %vm751 = vcmask 1040384
      %v753 = vsel %vm751, %v718, 0
      %755 = vmatprep.subr.mxu0 0.0
      %756 = vmatpush1.msra.mxu0 %v717
      %757 = vmatprep.subr.mxu0 0.0
      %758 = vmatpush1.msra.mxu0 %v753
      %759 = vmatprep.subr.mxu0 0.0
      %760 = vmatpush1.msra.mxu0 0.0
      %761 = vmatprep.subr.mxu0 0.0
      %762 = vmatpush1.msra.mxu0 0.0
      %763 = vmatprep.subr.mxu0 0.0
      %764 = vmatpush1.msra.mxu0 0.0
      %765 = vmatprep.subr.mxu0 0.0
      %766 = vmatpush1.msra.mxu0 0.0
      %767 = vmatprep.subr.mxu0 0.0
      %768 = vmatpush1.msra.mxu0 0.0
      %769 = vmatprep.subr.mxu0 0.0
      %770 = vmatpush1.msra.mxu0 0.0
      %771 = vmatprep.subr.mxu0 0.0
      %772 = vmatpush1.msra.mxu0 0.0
      %773 = vmatprep.subr.mxu0 0.0
      %774 = vmatpush1.msra.mxu0 0.0
      %775 = vmatprep.subr.mxu0 0.0
      %776 = vmatpush1.msra.mxu0 0.0
      %777 = vmatprep.subr.mxu0 0.0
      %778 = vmatpush1.msra.mxu0 0.0
      %779 = vmatprep.subr.mxu0 0.0
      %780 = vmatpush1.msra.mxu0 0.0
      %781 = vmatprep.subr.mxu0 0.0
      %782 = vmatpush1.msra.mxu0 0.0
      %783 = vmatprep.subr.mxu0 0.0
      %784 = vmatpush1.msra.mxu0 0.0
      %785 = vmatprep.subr.mxu0 0.0
      %786 = vmatpush1.msra.mxu0 0.0
      %787 = vmatprep.subr.mxu0 0.0
      %788 = vmatpush1.msra.mxu0 0.0
      %789 = vmatprep.subr.mxu0 0.0
      %790 = vmatpush1.msra.mxu0 0.0
      %791 = vmatprep.subr.mxu0 0.0
      %792 = vmatpush1.msra.mxu0 0.0
      %793 = vmatprep.subr.mxu0 0.0
      %794 = vmatpush1.msra.mxu0 0.0
      %795 = vmatprep.subr.mxu0 0.0
      %796 = vmatpush1.msra.mxu0 0.0
      %797 = vmatprep.subr.mxu0 0.0
      %798 = vmatpush1.msra.mxu0 0.0
      %799 = vmatprep.subr.mxu0 0.0
      %800 = vmatpush1.msra.mxu0 0.0
      %801 = vmatprep.subr.mxu0 0.0
      %802 = vmatpush1.msra.mxu0 0.0
      %803 = vmatprep.subr.mxu0 0.0
      %804 = vmatpush1.msra.mxu0 0.0
      %805 = vmatprep.subr.mxu0 0.0
      %806 = vmatpush1.msra.mxu0 0.0
      %807 = vmatprep.subr.mxu0 0.0
      %808 = vmatpush1.msra.mxu0 0.0
      %809 = vmatprep.subr.mxu0 0.0
      %810 = vmatpush1.msra.mxu0 0.0
      %811 = vmatprep.subr.mxu0 0.0
      %812 = vmatpush1.msra.mxu0 0.0
      %813 = vmatprep.subr.mxu0 0.0
      %814 = vmatpush1.msra.mxu0 0.0
      %815 = vmatprep.subr.mxu0 0.0
      %816 = vmatpush1.msra.mxu0 0.0
      %817 = vmatprep.subr.mxu0 0.0
      %818 = vmatpush1.msra.mxu0 0.0
      %819 = vmatprep.mubr.f32.mxu0 0.0
      %820 = vmatmul.mubr.f32.gmra.mrb[0].mxu0 %v728
      %v821 = vpop.f32.mrb[0].mxu0
      %v822 = vadd.f32 %v724, %v821
      %v823 = vpop.f32.mrb[0].mxu0
      %824 = vmatprep.mubr.f32.mxu0 0.0
      %825 = vmatmul.mubr.f32.gmra.mrb[0].mxu0 %v731
      %v826 = vpop.f32.mrb[0].mxu0
      %v827 = vadd.f32 %v724, %v826
      %v828 = vpop.f32.mrb[0].mxu0
      %829 = vmatprep.mubr.f32.mxu0 0.0
      %830 = vmatmul.mubr.f32.gmra.mrb[0].mxu0 %v734
      %v831 = vpop.f32.mrb[0].mxu0
      %v832 = vadd.f32 %v724, %v831
      %v833 = vpop.f32.mrb[0].mxu0
      %834 = vmatprep.mubr.f32.mxu0 0.0
      %835 = vmatmul.mubr.f32.gmra.mrb[0].mxu0 %v737
      %v836 = vpop.f32.mrb[0].mxu0
      %v837 = vadd.f32 %v724, %v836
      %v838 = vpop.f32.mrb[0].mxu0
      %839 = vmatprep.mubr.f32.mxu0 0.0
      %840 = vmatmul.mubr.f32.gmra.mrb[0].mxu0 %v740
      %v841 = vpop.f32.mrb[0].mxu0
      %v842 = vadd.f32 %v724, %v841
      %v843 = vpop.f32.mrb[0].mxu0
      %844 = vmatprep.mubr.f32.mxu0 0.0
      %845 = vmatmul.mubr.f32.gmra.mrb[0].mxu0 %v743
      %v846 = vpop.f32.mrb[0].mxu0
      %v847 = vadd.f32 %v724, %v846
      %v848 = vpop.f32.mrb[0].mxu0
      %849 = vmatprep.mubr.f32.mxu0 0.0
      %850 = vmatmul.mubr.f32.gmra.mrb[0].mxu0 %v746
      %v851 = vpop.f32.mrb[0].mxu0
      %v852 = vadd.f32 %v724, %v851
      %v853 = vpop.f32.mrb[0].mxu0
      %854 = vmatprep.mubr.f32.mxu0 0.0
      %855 = vmatmul.mubr.f32.gmra.mrb[0].mxu0 %v749
      %v856 = vpop.f32.mrb[0].mxu0
      %v857 = vadd.f32 %v724, %v856
      %v858 = vpop.f32.mrb[0].mxu0
      %859 = vdwg.mxu0
      %v860 = vxor.u32 %v822, 2147483648
      %v861 = vxor.u32 %v827, 2147483648
      %v862 = vxor.u32 %v832, 2147483648
      %v863 = vxor.u32 %v837, 2147483648
      %v864 = vxor.u32 %v842, 2147483648
      %v865 = vxor.u32 %v847, 2147483648
      %v866 = vxor.u32 %v852, 2147483648
      %v867 = vxor.u32 %v857, 2147483648
      %v868 = vmul.f32 %v860, 1.442695
      %v869 = vpow.pop %v868
      %v870 = vmul.f32 %v861, 1.442695
      %v871 = vpow.pop %v870
      %v872 = vmul.f32 %v862, 1.442695
      %v873 = vpow.pop %v872
      %v874 = vmul.f32 %v863, 1.442695
      %v875 = vpow.pop %v874
      %v876 = vmul.f32 %v864, 1.442695
      %v877 = vpow.pop %v876
      %v878 = vmul.f32 %v865, 1.442695
      %v879 = vpow.pop %v878
      %v880 = vmul.f32 %v866, 1.442695
      %v881 = vpow.pop %v880
      %v882 = vmul.f32 %v867, 1.442695
      %v883 = vpow.pop %v882
      %v884 = vadd.f32 %v869, 1.0
      %v885 = vadd.f32 %v871, 1.0
      %v886 = vadd.f32 %v873, 1.0
      %v887 = vadd.f32 %v875, 1.0
      %v888 = vadd.f32 %v877, 1.0
      %v889 = vadd.f32 %v879, 1.0
      %v890 = vadd.f32 %v881, 1.0
      %v891 = vadd.f32 %v883, 1.0
      %v892 = vrcp.pop %v884
      %v893 = vmul.f32 1.0, %v892
      %v894 = vrcp.pop %v885
      %v895 = vmul.f32 1.0, %v894
      %v896 = vrcp.pop %v886
      %v897 = vmul.f32 1.0, %v896
      %v898 = vrcp.pop %v887
      %v899 = vmul.f32 1.0, %v898
      %v900 = vrcp.pop %v888
      %v901 = vmul.f32 1.0, %v900
      %v902 = vrcp.pop %v889
      %v903 = vmul.f32 1.0, %v902
      %v904 = vrcp.pop %v890
      %v905 = vmul.f32 1.0, %v904
      %v906 = vrcp.pop %v891
      %v907 = vmul.f32 1.0, %v906
      %v908 = vmul.f32 %v822, %v893
      %v909 = vmul.f32 %v827, %v895
      %v910 = vmul.f32 %v832, %v897
      %v911 = vmul.f32 %v837, %v899
      %v912 = vmul.f32 %v842, %v901
      %v913 = vmul.f32 %v847, %v903
      %v914 = vmul.f32 %v852, %v905
      %v915 = vmul.f32 %v857, %v907
      %v916 = vld [vmem:[%s1] sm:$0xff]
      %v917 = vld [vmem:[%s1 + $0x8] sm:$0xff]
      %v918 = vld [vmem:[%s1 + $0x10] sm:$0xff]
      %v919 = vld [vmem:[%s1 + $0x18] sm:$0xff]
      %v920 = vld [vmem:[%s1 + $0x20] sm:$0xff]
      %v921 = vld [vmem:[%s1 + $0x28] sm:$0xff]
      %v922 = vld [vmem:[%s1 + $0x30] sm:$0xff]
      %v923 = vld [vmem:[%s1 + $0x38] sm:$0xff]
      %v924 = vld [vmem:[%s5] sm:$0xff]
      %vm925 = vcmask 64512
      %v927 = vsel %vm925, %v908, 0
      %v930 = vsel %vm925, %v909, 0
      %v933 = vsel %vm925, %v910, 0
      %v936 = vsel %vm925, %v911, 0
      %v939 = vsel %vm925, %v912, 0
      %v942 = vsel %vm925, %v913, 0
      %v945 = vsel %vm925, %v914, 0
      %v948 = vsel %vm925, %v915, 0
      %950 = vmatprep.subr.mxu0 0.0
      %951 = vmatpush1.msra.mxu0 %v924
      %952 = vmatprep.subr.mxu0 0.0
      %953 = vmatpush1.msra.mxu0 0.0
      %954 = vmatprep.subr.mxu0 0.0
      %955 = vmatpush1.msra.mxu0 0.0
      %956 = vmatprep.subr.mxu0 0.0
      %957 = vmatpush1.msra.mxu0 0.0
      %958 = vmatprep.subr.mxu0 0.0
      %959 = vmatpush1.msra.mxu0 0.0
      %960 = vmatprep.subr.mxu0 0.0
      %961 = vmatpush1.msra.mxu0 0.0
      %962 = vmatprep.subr.mxu0 0.0
      %963 = vmatpush1.msra.mxu0 0.0
      %964 = vmatprep.subr.mxu0 0.0
      %965 = vmatpush1.msra.mxu0 0.0
      %966 = vmatprep.subr.mxu0 0.0
      %967 = vmatpush1.msra.mxu0 0.0
      %968 = vmatprep.subr.mxu0 0.0
      %969 = vmatpush1.msra.mxu0 0.0
      %970 = vmatprep.subr.mxu0 0.0
      %971 = vmatpush1.msra.mxu0 0.0
      %972 = vmatprep.subr.mxu0 0.0
      %973 = vmatpush1.msra.mxu0 0.0
      %974 = vmatprep.subr.mxu0 0.0
      %975 = vmatpush1.msra.mxu0 0.0
      %976 = vmatprep.subr.mxu0 0.0
      %977 = vmatpush1.msra.mxu0 0.0
      %978 = vmatprep.subr.mxu0 0.0
      %979 = vmatpush1.msra.mxu0 0.0
      %980 = vmatprep.subr.mxu0 0.0
      %981 = vmatpush1.msra.mxu0 0.0
      %982 = vmatprep.subr.mxu0 0.0
      %983 = vmatpush1.msra.mxu0 0.0
      %984 = vmatprep.subr.mxu0 0.0
      %985 = vmatpush1.msra.mxu0 0.0
      %986 = vmatprep.subr.mxu0 0.0
      %987 = vmatpush1.msra.mxu0 0.0
      %988 = vmatprep.subr.mxu0 0.0
      %989 = vmatpush1.msra.mxu0 0.0
      %990 = vmatprep.subr.mxu0 0.0
      %991 = vmatpush1.msra.mxu0 0.0
      %992 = vmatprep.subr.mxu0 0.0
      %993 = vmatpush1.msra.mxu0 0.0
      %994 = vmatprep.subr.mxu0 0.0
      %995 = vmatpush1.msra.mxu0 0.0
      %996 = vmatprep.subr.mxu0 0.0
      %997 = vmatpush1.msra.mxu0 0.0
      %998 = vmatprep.subr.mxu0 0.0
      %999 = vmatpush1.msra.mxu0 0.0
      %1000 = vmatprep.subr.mxu0 0.0
      %1001 = vmatpush1.msra.mxu0 0.0
      %1002 = vmatprep.subr.mxu0 0.0
      %1003 = vmatpush1.msra.mxu0 0.0
      %1004 = vmatprep.subr.mxu0 0.0
      %1005 = vmatpush1.msra.mxu0 0.0
      %1006 = vmatprep.subr.mxu0 0.0
      %1007 = vmatpush1.msra.mxu0 0.0
      %1008 = vmatprep.subr.mxu0 0.0
      %1009 = vmatpush1.msra.mxu0 0.0
      %1010 = vmatprep.subr.mxu0 0.0
      %1011 = vmatpush1.msra.mxu0 0.0
      %1012 = vmatprep.subr.mxu0 0.0
      %1013 = vmatpush1.msra.mxu0 0.0
      %1014 = vmatprep.mubr.f32.mxu0 0.0
      %1015 = vmatmul.mubr.f32.gmra.mrb[0].mxu0 %v927
      %v1016 = vpop.f32.mrb[0].mxu0
      %v1017 = vadd.f32 0.0, %v1016
      %v1018 = vpop.f32.mrb[0].mxu0
      %1019 = vmatprep.mubr.f32.mxu0 0.0
      %1020 = vmatmul.mubr.f32.gmra.mrb[0].mxu0 %v930
      %v1021 = vpop.f32.mrb[0].mxu0
      %v1022 = vadd.f32 0.0, %v1021
      %v1023 = vpop.f32.mrb[0].mxu0
      %1024 = vmatprep.mubr.f32.mxu0 0.0
      %1025 = vmatmul.mubr.f32.gmra.mrb[0].mxu0 %v933
      %v1026 = vpop.f32.mrb[0].mxu0
      %v1027 = vadd.f32 0.0, %v1026
      %v1028 = vpop.f32.mrb[0].mxu0
      %1029 = vmatprep.mubr.f32.mxu0 0.0
      %1030 = vmatmul.mubr.f32.gmra.mrb[0].mxu0 %v936
      %v1031 = vpop.f32.mrb[0].mxu0
      %v1032 = vadd.f32 0.0, %v1031
      %v1033 = vpop.f32.mrb[0].mxu0
      %1034 = vmatprep.mubr.f32.mxu0 0.0
      %1035 = vmatmul.mubr.f32.gmra.mrb[0].mxu0 %v939
      %v1036 = vpop.f32.mrb[0].mxu0
      %v1037 = vadd.f32 0.0, %v1036
      %v1038 = vpop.f32.mrb[0].mxu0
      %1039 = vmatprep.mubr.f32.mxu0 0.0
      %1040 = vmatmul.mubr.f32.gmra.mrb[0].mxu0 %v942
      %v1041 = vpop.f32.mrb[0].mxu0
      %v1042 = vadd.f32 0.0, %v1041
      %v1043 = vpop.f32.mrb[0].mxu0
      %1044 = vmatprep.mubr.f32.mxu0 0.0
      %1045 = vmatmul.mubr.f32.gmra.mrb[0].mxu0 %v945
      %v1046 = vpop.f32.mrb[0].mxu0
      %v1047 = vadd.f32 0.0, %v1046
      %v1048 = vpop.f32.mrb[0].mxu0
      %1049 = vmatprep.mubr.f32.mxu0 0.0
      %1050 = vmatmul.mubr.f32.gmra.mrb[0].mxu0 %v948
      %v1051 = vpop.f32.mrb[0].mxu0
      %v1052 = vadd.f32 0.0, %v1051
      %v1053 = vpop.f32.mrb[0].mxu0
      %1054 = vdwg.mxu0
      %s1055 = scalar_lea.vmem %s1, 64
      %v1056 = vld [vmem:[%s1055] sm:$0xff]
      %v1057 = vld [vmem:[%s1055 + $0x8] sm:$0xff]
      %v1058 = vld [vmem:[%s1055 + $0x10] sm:$0xff]
      %v1059 = vld [vmem:[%s1055 + $0x18] sm:$0xff]
      %v1060 = vld [vmem:[%s1055 + $0x20] sm:$0xff]
      %v1061 = vld [vmem:[%s1055 + $0x28] sm:$0xff]
      %v1062 = vld [vmem:[%s1055 + $0x30] sm:$0xff]
      %v1063 = vld [vmem:[%s1055 + $0x38] sm:$0xff]
      %s1064 = scalar_lea.vmem %s5, 8
      %v1065 = vld [vmem:[%s1064] sm:$0xff]
      %1066 = vmatprep.subr.mxu0 0.0
      %1067 = vmatpush1.msra.mxu0 %v1065
      %1068 = vmatprep.subr.mxu0 0.0
      %1069 = vmatpush1.msra.mxu0 0.0
      %1070 = vmatprep.subr.mxu0 0.0
      %1071 = vmatpush1.msra.mxu0 0.0
      %1072 = vmatprep.subr.mxu0 0.0
      %1073 = vmatpush1.msra.mxu0 0.0
      %1074 = vmatprep.subr.mxu0 0.0
      %1075 = vmatpush1.msra.mxu0 0.0
      %1076 = vmatprep.subr.mxu0 0.0
      %1077 = vmatpush1.msra.mxu0 0.0
      %1078 = vmatprep.subr.mxu0 0.0
      %1079 = vmatpush1.msra.mxu0 0.0
      %1080 = vmatprep.subr.mxu0 0.0
      %1081 = vmatpush1.msra.mxu0 0.0
      %1082 = vmatprep.subr.mxu0 0.0
      %1083 = vmatpush1.msra.mxu0 0.0
      %1084 = vmatprep.subr.mxu0 0.0
      %1085 = vmatpush1.msra.mxu0 0.0
      %1086 = vmatprep.subr.mxu0 0.0
      %1087 = vmatpush1.msra.mxu0 0.0
      %1088 = vmatprep.subr.mxu0 0.0
      %1089 = vmatpush1.msra.mxu0 0.0
      %1090 = vmatprep.subr.mxu0 0.0
      %1091 = vmatpush1.msra.mxu0 0.0
      %1092 = vmatprep.subr.mxu0 0.0
      %1093 = vmatpush1.msra.mxu0 0.0
      %1094 = vmatprep.subr.mxu0 0.0
      %1095 = vmatpush1.msra.mxu0 0.0
      %1096 = vmatprep.subr.mxu0 0.0
      %1097 = vmatpush1.msra.mxu0 0.0
      %1098 = vmatprep.subr.mxu0 0.0
      %1099 = vmatpush1.msra.mxu0 0.0
      %1100 = vmatprep.subr.mxu0 0.0
      %1101 = vmatpush1.msra.mxu0 0.0
      %1102 = vmatprep.subr.mxu0 0.0
      %1103 = vmatpush1.msra.mxu0 0.0
      %1104 = vmatprep.subr.mxu0 0.0
      %1105 = vmatpush1.msra.mxu0 0.0
      %1106 = vmatprep.subr.mxu0 0.0
      %1107 = vmatpush1.msra.mxu0 0.0
      %1108 = vmatprep.subr.mxu0 0.0
      %1109 = vmatpush1.msra.mxu0 0.0
      %1110 = vmatprep.subr.mxu0 0.0
      %1111 = vmatpush1.msra.mxu0 0.0
      %1112 = vmatprep.subr.mxu0 0.0
      %1113 = vmatpush1.msra.mxu0 0.0
      %1114 = vmatprep.subr.mxu0 0.0
      %1115 = vmatpush1.msra.mxu0 0.0
      %1116 = vmatprep.subr.mxu0 0.0
      %1117 = vmatpush1.msra.mxu0 0.0
      %1118 = vmatprep.subr.mxu0 0.0
      %1119 = vmatpush1.msra.mxu0 0.0
      %1120 = vmatprep.subr.mxu0 0.0
      %1121 = vmatpush1.msra.mxu0 0.0
      %1122 = vmatprep.subr.mxu0 0.0
      %1123 = vmatpush1.msra.mxu0 0.0
      %1124 = vmatprep.subr.mxu0 0.0
      %1125 = vmatpush1.msra.mxu0 0.0
      %1126 = vmatprep.subr.mxu0 0.0
      %1127 = vmatpush1.msra.mxu0 0.0
      %1128 = vmatprep.subr.mxu0 0.0
      %1129 = vmatpush1.msra.mxu0 0.0
      %1130 = vmatprep.mubr.f32.mxu0 0.0
      %1131 = vmatmul.mubr.f32.gmra.mrb[0].mxu0 %v927
      %v1132 = vpop.f32.mrb[0].mxu0
      %v1133 = vadd.f32 0.0, %v1132
      %v1134 = vpop.f32.mrb[0].mxu0
      %1135 = vmatprep.mubr.f32.mxu0 0.0
      %1136 = vmatmul.mubr.f32.gmra.mrb[0].mxu0 %v930
      %v1137 = vpop.f32.mrb[0].mxu0
      %v1138 = vadd.f32 0.0, %v1137
      %v1139 = vpop.f32.mrb[0].mxu0
      %1140 = vmatprep.mubr.f32.mxu0 0.0
      %1141 = vmatmul.mubr.f32.gmra.mrb[0].mxu0 %v933
      %v1142 = vpop.f32.mrb[0].mxu0
      %v1143 = vadd.f32 0.0, %v1142
      %v1144 = vpop.f32.mrb[0].mxu0
      %1145 = vmatprep.mubr.f32.mxu0 0.0
      %1146 = vmatmul.mubr.f32.gmra.mrb[0].mxu0 %v936
      %v1147 = vpop.f32.mrb[0].mxu0
      %v1148 = vadd.f32 0.0, %v1147
      %v1149 = vpop.f32.mrb[0].mxu0
      %1150 = vmatprep.mubr.f32.mxu0 0.0
      %1151 = vmatmul.mubr.f32.gmra.mrb[0].mxu0 %v939
      %v1152 = vpop.f32.mrb[0].mxu0
      %v1153 = vadd.f32 0.0, %v1152
      %v1154 = vpop.f32.mrb[0].mxu0
      %1155 = vmatprep.mubr.f32.mxu0 0.0
      %1156 = vmatmul.mubr.f32.gmra.mrb[0].mxu0 %v942
      %v1157 = vpop.f32.mrb[0].mxu0
      %v1158 = vadd.f32 0.0, %v1157
      %v1159 = vpop.f32.mrb[0].mxu0
      %1160 = vmatprep.mubr.f32.mxu0 0.0
      %1161 = vmatmul.mubr.f32.gmra.mrb[0].mxu0 %v945
      %v1162 = vpop.f32.mrb[0].mxu0
      %v1163 = vadd.f32 0.0, %v1162
      %v1164 = vpop.f32.mrb[0].mxu0
      %1165 = vmatprep.mubr.f32.mxu0 0.0
      %1166 = vmatmul.mubr.f32.gmra.mrb[0].mxu0 %v948
      %v1167 = vpop.f32.mrb[0].mxu0
      %v1168 = vadd.f32 0.0, %v1167
      %v1169 = vpop.f32.mrb[0].mxu0
      %1170 = vdwg.mxu0
      %vm1171 = vcmask 523264
      %v1173 = vsel %vm1171, %v1056, 0
      %v1176 = vsel %vm1171, %v1057, 0
      %v1179 = vsel %vm1171, %v1058, 0
      %v1182 = vsel %vm1171, %v1059, 0
      %v1185 = vsel %vm1171, %v1060, 0
      %v1188 = vsel %vm1171, %v1061, 0
      %v1191 = vsel %vm1171, %v1062, 0
      %v1194 = vsel %vm1171, %v1063, 0
      %1196 = vmatprep.subr.mxu0 0.0
      %1197 = vmatpush1.msra.mxu0 %v1133
      %1198 = vmatprep.subr.mxu0 0.0
      %1199 = vmatpush1.msra.mxu0 %v1138
      %1200 = vmatprep.subr.mxu0 0.0
      %1201 = vmatpush1.msra.mxu0 %v1143
      %1202 = vmatprep.subr.mxu0 0.0
      %1203 = vmatpush1.msra.mxu0 %v1148
      %1204 = vmatprep.subr.mxu0 0.0
      %1205 = vmatpush1.msra.mxu0 %v1153
      %1206 = vmatprep.subr.mxu0 0.0
      %1207 = vmatpush1.msra.mxu0 %v1158
      %1208 = vmatprep.subr.mxu0 0.0
      %1209 = vmatpush1.msra.mxu0 %v1163
      %1210 = vmatprep.subr.mxu0 0.0
      %1211 = vmatpush1.msra.mxu0 %v1168
      %1212 = vmatprep.subr.mxu0 0.0
      %1213 = vmatpush1.msra.mxu0 0.0
      %1214 = vmatprep.subr.mxu0 0.0
      %1215 = vmatpush1.msra.mxu0 0.0
      %1216 = vmatprep.subr.mxu0 0.0
      %1217 = vmatpush1.msra.mxu0 0.0
      %1218 = vmatprep.subr.mxu0 0.0
      %1219 = vmatpush1.msra.mxu0 0.0
      %1220 = vmatprep.subr.mxu0 0.0
      %1221 = vmatpush1.msra.mxu0 0.0
      %1222 = vmatprep.subr.mxu0 0.0
      %1223 = vmatpush1.msra.mxu0 0.0
      %1224 = vmatprep.subr.mxu0 0.0
      %1225 = vmatpush1.msra.mxu0 0.0
      %1226 = vmatprep.subr.mxu0 0.0
      %1227 = vmatpush1.msra.mxu0 0.0
      %1228 = vmatprep.subr.mxu0 0.0
      %1229 = vmatpush1.msra.mxu0 0.0
      %1230 = vmatprep.subr.mxu0 0.0
      %1231 = vmatpush1.msra.mxu0 0.0
      %1232 = vmatprep.subr.mxu0 0.0
      %1233 = vmatpush1.msra.mxu0 0.0
      %1234 = vmatprep.subr.mxu0 0.0
      %1235 = vmatpush1.msra.mxu0 0.0
      %1236 = vmatprep.subr.mxu0 0.0
      %1237 = vmatpush1.msra.mxu0 0.0
      %1238 = vmatprep.subr.mxu0 0.0
      %1239 = vmatpush1.msra.mxu0 0.0
      %1240 = vmatprep.subr.mxu0 0.0
      %1241 = vmatpush1.msra.mxu0 0.0
      %1242 = vmatprep.subr.mxu0 0.0
      %1243 = vmatpush1.msra.mxu0 0.0
      %1244 = vmatprep.subr.mxu0 0.0
      %1245 = vmatpush1.msra.mxu0 0.0
      %1246 = vmatprep.subr.mxu0 0.0
      %1247 = vmatpush1.msra.mxu0 0.0
      %1248 = vmatprep.subr.mxu0 0.0
      %1249 = vmatpush1.msra.mxu0 0.0
      %1250 = vmatprep.subr.mxu0 0.0
      %1251 = vmatpush1.msra.mxu0 0.0
      %1252 = vmatprep.subr.mxu0 0.0
      %1253 = vmatpush1.msra.mxu0 0.0
      %1254 = vmatprep.subr.mxu0 0.0
      %1255 = vmatpush1.msra.mxu0 0.0
      %1256 = vmatprep.subr.mxu0 0.0
      %1257 = vmatpush1.msra.mxu0 0.0
      %1258 = vmatprep.subr.mxu0 0.0
      %1259 = vmatpush1.msra.mxu0 0.0
      %1260 = vmatprep.mubr.f32.mxu0 0.0
      %1261 = vmatmul.mubr.f32.gmra.mrb[0].mxu0 %v1173
      %v1262 = vpop.f32.mrb[0].mxu0
      %v1263 = vadd.f32 0.0, %v1262
      %v1264 = vpop.f32.mrb[0].mxu0
      %1265 = vmatprep.mubr.f32.mxu0 0.0
      %1266 = vmatmul.mubr.f32.gmra.mrb[0].mxu0 %v1176
      %v1267 = vpop.f32.mrb[0].mxu0
      %v1268 = vadd.f32 0.0, %v1267
      %v1269 = vpop.f32.mrb[0].mxu0
      %1270 = vmatprep.mubr.f32.mxu0 0.0
      %1271 = vmatmul.mubr.f32.gmra.mrb[0].mxu0 %v1179
      %v1272 = vpop.f32.mrb[0].mxu0
      %v1273 = vadd.f32 0.0, %v1272
      %v1274 = vpop.f32.mrb[0].mxu0
      %1275 = vmatprep.mubr.f32.mxu0 0.0
      %1276 = vmatmul.mubr.f32.gmra.mrb[0].mxu0 %v1182
      %v1277 = vpop.f32.mrb[0].mxu0
      %v1278 = vadd.f32 0.0, %v1277
      %v1279 = vpop.f32.mrb[0].mxu0
      %1280 = vmatprep.mubr.f32.mxu0 0.0
      %1281 = vmatmul.mubr.f32.gmra.mrb[0].mxu0 %v1185
      %v1282 = vpop.f32.mrb[0].mxu0
      %v1283 = vadd.f32 0.0, %v1282
      %v1284 = vpop.f32.mrb[0].mxu0
      %1285 = vmatprep.mubr.f32.mxu0 0.0
      %1286 = vmatmul.mubr.f32.gmra.mrb[0].mxu0 %v1188
      %v1287 = vpop.f32.mrb[0].mxu0
      %v1288 = vadd.f32 0.0, %v1287
      %v1289 = vpop.f32.mrb[0].mxu0
      %1290 = vmatprep.mubr.f32.mxu0 0.0
      %1291 = vmatmul.mubr.f32.gmra.mrb[0].mxu0 %v1191
      %v1292 = vpop.f32.mrb[0].mxu0
      %v1293 = vadd.f32 0.0, %v1292
      %v1294 = vpop.f32.mrb[0].mxu0
      %1295 = vmatprep.mubr.f32.mxu0 0.0
      %1296 = vmatmul.mubr.f32.gmra.mrb[0].mxu0 %v1194
      %v1297 = vpop.f32.mrb[0].mxu0
      %v1298 = vadd.f32 0.0, %v1297
      %v1299 = vpop.f32.mrb[0].mxu0
      %1300 = vdwg.mxu0
      %v1302 = vsel %vm1171, %v916, 0
      %v1305 = vsel %vm1171, %v917, 0
      %v1308 = vsel %vm1171, %v918, 0
      %v1311 = vsel %vm1171, %v919, 0
      %v1314 = vsel %vm1171, %v920, 0
      %v1317 = vsel %vm1171, %v921, 0
      %v1320 = vsel %vm1171, %v922, 0
      %v1323 = vsel %vm1171, %v923, 0
      %1325 = vmatprep.subr.mxu0 0.0
      %1326 = vmatpush1.msra.mxu0 %v1017
      %1327 = vmatprep.subr.mxu0 0.0
      %1328 = vmatpush1.msra.mxu0 %v1022
      %1329 = vmatprep.subr.mxu0 0.0
      %1330 = vmatpush1.msra.mxu0 %v1027
      %1331 = vmatprep.subr.mxu0 0.0
      %1332 = vmatpush1.msra.mxu0 %v1032
      %1333 = vmatprep.subr.mxu0 0.0
      %1334 = vmatpush1.msra.mxu0 %v1037
      %1335 = vmatprep.subr.mxu0 0.0
      %1336 = vmatpush1.msra.mxu0 %v1042
      %1337 = vmatprep.subr.mxu0 0.0
      %1338 = vmatpush1.msra.mxu0 %v1047
      %1339 = vmatprep.subr.mxu0 0.0
      %1340 = vmatpush1.msra.mxu0 %v1052
      %1341 = vmatprep.subr.mxu0 0.0
      %1342 = vmatpush1.msra.mxu0 0.0
      %1343 = vmatprep.subr.mxu0 0.0
      %1344 = vmatpush1.msra.mxu0 0.0
      %1345 = vmatprep.subr.mxu0 0.0
      %1346 = vmatpush1.msra.mxu0 0.0
      %1347 = vmatprep.subr.mxu0 0.0
      %1348 = vmatpush1.msra.mxu0 0.0
      %1349 = vmatprep.subr.mxu0 0.0
      %1350 = vmatpush1.msra.mxu0 0.0
      %1351 = vmatprep.subr.mxu0 0.0
      %1352 = vmatpush1.msra.mxu0 0.0
      %1353 = vmatprep.subr.mxu0 0.0
      %1354 = vmatpush1.msra.mxu0 0.0
      %1355 = vmatprep.subr.mxu0 0.0
      %1356 = vmatpush1.msra.mxu0 0.0
      %1357 = vmatprep.subr.mxu0 0.0
      %1358 = vmatpush1.msra.mxu0 0.0
      %1359 = vmatprep.subr.mxu0 0.0
      %1360 = vmatpush1.msra.mxu0 0.0
      %1361 = vmatprep.subr.mxu0 0.0
      %1362 = vmatpush1.msra.mxu0 0.0
      %1363 = vmatprep.subr.mxu0 0.0
      %1364 = vmatpush1.msra.mxu0 0.0
      %1365 = vmatprep.subr.mxu0 0.0
      %1366 = vmatpush1.msra.mxu0 0.0
      %1367 = vmatprep.subr.mxu0 0.0
      %1368 = vmatpush1.msra.mxu0 0.0
      %1369 = vmatprep.subr.mxu0 0.0
      %1370 = vmatpush1.msra.mxu0 0.0
      %1371 = vmatprep.subr.mxu0 0.0
      %1372 = vmatpush1.msra.mxu0 0.0
      %1373 = vmatprep.subr.mxu0 0.0
      %1374 = vmatpush1.msra.mxu0 0.0
      %1375 = vmatprep.subr.mxu0 0.0
      %1376 = vmatpush1.msra.mxu0 0.0
      %1377 = vmatprep.subr.mxu0 0.0
      %1378 = vmatpush1.msra.mxu0 0.0
      %1379 = vmatprep.subr.mxu0 0.0
      %1380 = vmatpush1.msra.mxu0 0.0
      %1381 = vmatprep.subr.mxu0 0.0
      %1382 = vmatpush1.msra.mxu0 0.0
      %1383 = vmatprep.subr.mxu0 0.0
      %1384 = vmatpush1.msra.mxu0 0.0
      %1385 = vmatprep.subr.mxu0 0.0
      %1386 = vmatpush1.msra.mxu0 0.0
      %1387 = vmatprep.subr.mxu0 0.0
      %1388 = vmatpush1.msra.mxu0 0.0
      %1389 = vmatprep.mubr.f32.mxu0 0.0
      %1390 = vmatmul.mubr.f32.gmra.mrb[0].mxu0 %v1302
      %v1391 = vpop.f32.mrb[0].mxu0
      %v1392 = vadd.f32 %v1263, %v1391
      %v1393 = vpop.f32.mrb[0].mxu0
      %1394 = vmatprep.mubr.f32.mxu0 0.0
      %1395 = vmatmul.mubr.f32.gmra.mrb[0].mxu0 %v1305
      %v1396 = vpop.f32.mrb[0].mxu0
      %v1397 = vadd.f32 %v1268, %v1396
      %v1398 = vpop.f32.mrb[0].mxu0
      %1399 = vmatprep.mubr.f32.mxu0 0.0
      %1400 = vmatmul.mubr.f32.gmra.mrb[0].mxu0 %v1308
      %v1401 = vpop.f32.mrb[0].mxu0
      %v1402 = vadd.f32 %v1273, %v1401
      %v1403 = vpop.f32.mrb[0].mxu0
      %1404 = vmatprep.mubr.f32.mxu0 0.0
      %1405 = vmatmul.mubr.f32.gmra.mrb[0].mxu0 %v1311
      %v1406 = vpop.f32.mrb[0].mxu0
      %v1407 = vadd.f32 %v1278, %v1406
      %v1408 = vpop.f32.mrb[0].mxu0
      %1409 = vmatprep.mubr.f32.mxu0 0.0
      %1410 = vmatmul.mubr.f32.gmra.mrb[0].mxu0 %v1314
      %v1411 = vpop.f32.mrb[0].mxu0
      %v1412 = vadd.f32 %v1283, %v1411
      %v1413 = vpop.f32.mrb[0].mxu0
      %1414 = vmatprep.mubr.f32.mxu0 0.0
      %1415 = vmatmul.mubr.f32.gmra.mrb[0].mxu0 %v1317
      %v1416 = vpop.f32.mrb[0].mxu0
      %v1417 = vadd.f32 %v1288, %v1416
      %v1418 = vpop.f32.mrb[0].mxu0
      %1419 = vmatprep.mubr.f32.mxu0 0.0
      %1420 = vmatmul.mubr.f32.gmra.mrb[0].mxu0 %v1320
      %v1421 = vpop.f32.mrb[0].mxu0
      %v1422 = vadd.f32 %v1293, %v1421
      %v1423 = vpop.f32.mrb[0].mxu0
      %1424 = vmatprep.mubr.f32.mxu0 0.0
      %1425 = vmatmul.mubr.f32.gmra.mrb[0].mxu0 %v1323
      %v1426 = vpop.f32.mrb[0].mxu0
      %v1427 = vadd.f32 %v1298, %v1426
      %v1428 = vpop.f32.mrb[0].mxu0
      %1429 = vdwg.mxu0
      %s1430 = scalar_lea.vmem %s1, 128
      %v1431 = vld [vmem:[%s1430] sm:$0xff]
      %v1432 = vld [vmem:[%s1430 + $0x8] sm:$0xff]
      %v1433 = vld [vmem:[%s1430 + $0x10] sm:$0xff]
      %v1434 = vld [vmem:[%s1430 + $0x18] sm:$0xff]
      %v1435 = vld [vmem:[%s1430 + $0x20] sm:$0xff]
      %v1436 = vld [vmem:[%s1430 + $0x28] sm:$0xff]
      %v1437 = vld [vmem:[%s1430 + $0x30] sm:$0xff]
      %v1438 = vld [vmem:[%s1430 + $0x38] sm:$0xff]
      %s1439 = scalar_lea.vmem %s5, 16
      %v1440 = vld [vmem:[%s1439] sm:$0xff]
      %1441 = vmatprep.subr.mxu0 0.0
      %1442 = vmatpush1.msra.mxu0 %v1440
      %1443 = vmatprep.subr.mxu0 0.0
      %1444 = vmatpush1.msra.mxu0 0.0
      %1445 = vmatprep.subr.mxu0 0.0
      %1446 = vmatpush1.msra.mxu0 0.0
      %1447 = vmatprep.subr.mxu0 0.0
      %1448 = vmatpush1.msra.mxu0 0.0
      %1449 = vmatprep.subr.mxu0 0.0
      %1450 = vmatpush1.msra.mxu0 0.0
      %1451 = vmatprep.subr.mxu0 0.0
      %1452 = vmatpush1.msra.mxu0 0.0
      %1453 = vmatprep.subr.mxu0 0.0
      %1454 = vmatpush1.msra.mxu0 0.0
      %1455 = vmatprep.subr.mxu0 0.0
      %1456 = vmatpush1.msra.mxu0 0.0
      %1457 = vmatprep.subr.mxu0 0.0
      %1458 = vmatpush1.msra.mxu0 0.0
      %1459 = vmatprep.subr.mxu0 0.0
      %1460 = vmatpush1.msra.mxu0 0.0
      %1461 = vmatprep.subr.mxu0 0.0
      %1462 = vmatpush1.msra.mxu0 0.0
      %1463 = vmatprep.subr.mxu0 0.0
      %1464 = vmatpush1.msra.mxu0 0.0
      %1465 = vmatprep.subr.mxu0 0.0
      %1466 = vmatpush1.msra.mxu0 0.0
      %1467 = vmatprep.subr.mxu0 0.0
      %1468 = vmatpush1.msra.mxu0 0.0
      %1469 = vmatprep.subr.mxu0 0.0
      %1470 = vmatpush1.msra.mxu0 0.0
      %1471 = vmatprep.subr.mxu0 0.0
      %1472 = vmatpush1.msra.mxu0 0.0
      %1473 = vmatprep.subr.mxu0 0.0
      %1474 = vmatpush1.msra.mxu0 0.0
      %1475 = vmatprep.subr.mxu0 0.0
      %1476 = vmatpush1.msra.mxu0 0.0
      %1477 = vmatprep.subr.mxu0 0.0
      %1478 = vmatpush1.msra.mxu0 0.0
      %1479 = vmatprep.subr.mxu0 0.0
      %1480 = vmatpush1.msra.mxu0 0.0
      %1481 = vmatprep.subr.mxu0 0.0
      %1482 = vmatpush1.msra.mxu0 0.0
      %1483 = vmatprep.subr.mxu0 0.0
      %1484 = vmatpush1.msra.mxu0 0.0
      %1485 = vmatprep.subr.mxu0 0.0
      %1486 = vmatpush1.msra.mxu0 0.0
      %1487 = vmatprep.subr.mxu0 0.0
      %1488 = vmatpush1.msra.mxu0 0.0
      %1489 = vmatprep.subr.mxu0 0.0
      %1490 = vmatpush1.msra.mxu0 0.0
      %1491 = vmatprep.subr.mxu0 0.0
      %1492 = vmatpush1.msra.mxu0 0.0
      %1493 = vmatprep.subr.mxu0 0.0
      %1494 = vmatpush1.msra.mxu0 0.0
      %1495 = vmatprep.subr.mxu0 0.0
      %1496 = vmatpush1.msra.mxu0 0.0
      %1497 = vmatprep.subr.mxu0 0.0
      %1498 = vmatpush1.msra.mxu0 0.0
      %1499 = vmatprep.subr.mxu0 0.0
      %1500 = vmatpush1.msra.mxu0 0.0
      %1501 = vmatprep.subr.mxu0 0.0
      %1502 = vmatpush1.msra.mxu0 0.0
      %1503 = vmatprep.subr.mxu0 0.0
      %1504 = vmatpush1.msra.mxu0 0.0
      %1505 = vmatprep.mubr.f32.mxu0 0.0
      %1506 = vmatmul.mubr.f32.gmra.mrb[0].mxu0 %v927
      %v1507 = vpop.f32.mrb[0].mxu0
      %v1508 = vadd.f32 0.0, %v1507
      %v1509 = vpop.f32.mrb[0].mxu0
      %1510 = vmatprep.mubr.f32.mxu0 0.0
      %1511 = vmatmul.mubr.f32.gmra.mrb[0].mxu0 %v930
      %v1512 = vpop.f32.mrb[0].mxu0
      %v1513 = vadd.f32 0.0, %v1512
      %v1514 = vpop.f32.mrb[0].mxu0
      %1515 = vmatprep.mubr.f32.mxu0 0.0
      %1516 = vmatmul.mubr.f32.gmra.mrb[0].mxu0 %v933
      %v1517 = vpop.f32.mrb[0].mxu0
      %v1518 = vadd.f32 0.0, %v1517
      %v1519 = vpop.f32.mrb[0].mxu0
      %1520 = vmatprep.mubr.f32.mxu0 0.0
      %1521 = vmatmul.mubr.f32.gmra.mrb[0].mxu0 %v936
      %v1522 = vpop.f32.mrb[0].mxu0
      %v1523 = vadd.f32 0.0, %v1522
      %v1524 = vpop.f32.mrb[0].mxu0
      %1525 = vmatprep.mubr.f32.mxu0 0.0
      %1526 = vmatmul.mubr.f32.gmra.mrb[0].mxu0 %v939
      %v1527 = vpop.f32.mrb[0].mxu0
      %v1528 = vadd.f32 0.0, %v1527
      %v1529 = vpop.f32.mrb[0].mxu0
      %1530 = vmatprep.mubr.f32.mxu0 0.0
      %1531 = vmatmul.mubr.f32.gmra.mrb[0].mxu0 %v942
      %v1532 = vpop.f32.mrb[0].mxu0
      %v1533 = vadd.f32 0.0, %v1532
      %v1534 = vpop.f32.mrb[0].mxu0
      %1535 = vmatprep.mubr.f32.mxu0 0.0
      %1536 = vmatmul.mubr.f32.gmra.mrb[0].mxu0 %v945
      %v1537 = vpop.f32.mrb[0].mxu0
      %v1538 = vadd.f32 0.0, %v1537
      %v1539 = vpop.f32.mrb[0].mxu0
      %1540 = vmatprep.mubr.f32.mxu0 0.0
      %1541 = vmatmul.mubr.f32.gmra.mrb[0].mxu0 %v948
      %v1542 = vpop.f32.mrb[0].mxu0
      %v1543 = vadd.f32 0.0, %v1542
      %v1544 = vpop.f32.mrb[0].mxu0
      %1545 = vdwg.mxu0
      %v1547 = vsel %vm1171, %v1431, 0
      %v1550 = vsel %vm1171, %v1432, 0
      %v1553 = vsel %vm1171, %v1433, 0
      %v1556 = vsel %vm1171, %v1434, 0
      %v1559 = vsel %vm1171, %v1435, 0
      %v1562 = vsel %vm1171, %v1436, 0
      %v1565 = vsel %vm1171, %v1437, 0
      %v1568 = vsel %vm1171, %v1438, 0
      %1570 = vmatprep.subr.mxu0 0.0
      %1571 = vmatpush1.msra.mxu0 %v1508
      %1572 = vmatprep.subr.mxu0 0.0
      %1573 = vmatpush1.msra.mxu0 %v1513
      %1574 = vmatprep.subr.mxu0 0.0
      %1575 = vmatpush1.msra.mxu0 %v1518
      %1576 = vmatprep.subr.mxu0 0.0
      %1577 = vmatpush1.msra.mxu0 %v1523
      %1578 = vmatprep.subr.mxu0 0.0
      %1579 = vmatpush1.msra.mxu0 %v1528
      %1580 = vmatprep.subr.mxu0 0.0
      %1581 = vmatpush1.msra.mxu0 %v1533
      %1582 = vmatprep.subr.mxu0 0.0
      %1583 = vmatpush1.msra.mxu0 %v1538
      %1584 = vmatprep.subr.mxu0 0.0
      %1585 = vmatpush1.msra.mxu0 %v1543
      %1586 = vmatprep.subr.mxu0 0.0
      %1587 = vmatpush1.msra.mxu0 0.0
      %1588 = vmatprep.subr.mxu0 0.0
      %1589 = vmatpush1.msra.mxu0 0.0
      %1590 = vmatprep.subr.mxu0 0.0
      %1591 = vmatpush1.msra.mxu0 0.0
      %1592 = vmatprep.subr.mxu0 0.0
      %1593 = vmatpush1.msra.mxu0 0.0
      %1594 = vmatprep.subr.mxu0 0.0
      %1595 = vmatpush1.msra.mxu0 0.0
      %1596 = vmatprep.subr.mxu0 0.0
      %1597 = vmatpush1.msra.mxu0 0.0
      %1598 = vmatprep.subr.mxu0 0.0
      %1599 = vmatpush1.msra.mxu0 0.0
      %1600 = vmatprep.subr.mxu0 0.0
      %1601 = vmatpush1.msra.mxu0 0.0
      %1602 = vmatprep.subr.mxu0 0.0
      %1603 = vmatpush1.msra.mxu0 0.0
      %1604 = vmatprep.subr.mxu0 0.0
      %1605 = vmatpush1.msra.mxu0 0.0
      %1606 = vmatprep.subr.mxu0 0.0
      %1607 = vmatpush1.msra.mxu0 0.0
      %1608 = vmatprep.subr.mxu0 0.0
      %1609 = vmatpush1.msra.mxu0 0.0
      %1610 = vmatprep.subr.mxu0 0.0
      %1611 = vmatpush1.msra.mxu0 0.0
      %1612 = vmatprep.subr.mxu0 0.0
      %1613 = vmatpush1.msra.mxu0 0.0
      %1614 = vmatprep.subr.mxu0 0.0
      %1615 = vmatpush1.msra.mxu0 0.0
      %1616 = vmatprep.subr.mxu0 0.0
      %1617 = vmatpush1.msra.mxu0 0.0
      %1618 = vmatprep.subr.mxu0 0.0
      %1619 = vmatpush1.msra.mxu0 0.0
      %1620 = vmatprep.subr.mxu0 0.0
      %1621 = vmatpush1.msra.mxu0 0.0
      %1622 = vmatprep.subr.mxu0 0.0
      %1623 = vmatpush1.msra.mxu0 0.0
      %1624 = vmatprep.subr.mxu0 0.0
      %1625 = vmatpush1.msra.mxu0 0.0
      %1626 = vmatprep.subr.mxu0 0.0
      %1627 = vmatpush1.msra.mxu0 0.0
      %1628 = vmatprep.subr.mxu0 0.0
      %1629 = vmatpush1.msra.mxu0 0.0
      %1630 = vmatprep.subr.mxu0 0.0
      %1631 = vmatpush1.msra.mxu0 0.0
      %1632 = vmatprep.subr.mxu0 0.0
      %1633 = vmatpush1.msra.mxu0 0.0
      %1634 = vmatprep.mubr.f32.mxu0 0.0
      %1635 = vmatmul.mubr.f32.gmra.mrb[0].mxu0 %v1547
      %v1636 = vpop.f32.mrb[0].mxu0
      %v1637 = vadd.f32 0.0, %v1636
      %v1638 = vpop.f32.mrb[0].mxu0
      %1639 = vmatprep.mubr.f32.mxu0 0.0
      %1640 = vmatmul.mubr.f32.gmra.mrb[0].mxu0 %v1550
      %v1641 = vpop.f32.mrb[0].mxu0
      %v1642 = vadd.f32 0.0, %v1641
      %v1643 = vpop.f32.mrb[0].mxu0
      %1644 = vmatprep.mubr.f32.mxu0 0.0
      %1645 = vmatmul.mubr.f32.gmra.mrb[0].mxu0 %v1553
      %v1646 = vpop.f32.mrb[0].mxu0
      %v1647 = vadd.f32 0.0, %v1646
      %v1648 = vpop.f32.mrb[0].mxu0
      %1649 = vmatprep.mubr.f32.mxu0 0.0
      %1650 = vmatmul.mubr.f32.gmra.mrb[0].mxu0 %v1556
      %v1651 = vpop.f32.mrb[0].mxu0
      %v1652 = vadd.f32 0.0, %v1651
      %v1653 = vpop.f32.mrb[0].mxu0
      %1654 = vmatprep.mubr.f32.mxu0 0.0
      %1655 = vmatmul.mubr.f32.gmra.mrb[0].mxu0 %v1559
      %v1656 = vpop.f32.mrb[0].mxu0
      %v1657 = vadd.f32 0.0, %v1656
      %v1658 = vpop.f32.mrb[0].mxu0
      %1659 = vmatprep.mubr.f32.mxu0 0.0
      %1660 = vmatmul.mubr.f32.gmra.mrb[0].mxu0 %v1562
      %v1661 = vpop.f32.mrb[0].mxu0
      %v1662 = vadd.f32 0.0, %v1661
      %v1663 = vpop.f32.mrb[0].mxu0
      %1664 = vmatprep.mubr.f32.mxu0 0.0
      %1665 = vmatmul.mubr.f32.gmra.mrb[0].mxu0 %v1565
      %v1666 = vpop.f32.mrb[0].mxu0
      %v1667 = vadd.f32 0.0, %v1666
      %v1668 = vpop.f32.mrb[0].mxu0
      %1669 = vmatprep.mubr.f32.mxu0 0.0
      %1670 = vmatmul.mubr.f32.gmra.mrb[0].mxu0 %v1568
      %v1671 = vpop.f32.mrb[0].mxu0
      %v1672 = vadd.f32 0.0, %v1671
      %v1673 = vpop.f32.mrb[0].mxu0
      %1674 = vdwg.mxu0
      %v1675 = vadd.f32 %v1392, %v1637
      %v1676 = vadd.f32 %v1397, %v1642
      %v1677 = vadd.f32 %v1402, %v1647
      %v1678 = vadd.f32 %v1407, %v1652
      %v1679 = vadd.f32 %v1412, %v1657
      %v1680 = vadd.f32 %v1417, %v1662
      %v1681 = vadd.f32 %v1422, %v1667
      %v1682 = vadd.f32 %v1427, %v1672
      %s1683 = scalar_lea.vmem %s1, 192
      %v1684 = vld [vmem:[%s1683] sm:$0xff]
      %v1685 = vld [vmem:[%s1683 + $0x8] sm:$0xff]
      %v1686 = vld [vmem:[%s1683 + $0x10] sm:$0xff]
      %v1687 = vld [vmem:[%s1683 + $0x18] sm:$0xff]
      %v1688 = vld [vmem:[%s1683 + $0x20] sm:$0xff]
      %v1689 = vld [vmem:[%s1683 + $0x28] sm:$0xff]
      %v1690 = vld [vmem:[%s1683 + $0x30] sm:$0xff]
      %v1691 = vld [vmem:[%s1683 + $0x38] sm:$0xff]
      %s1692 = scalar_lea.vmem %s5, 24
      %v1693 = vld [vmem:[%s1692] sm:$0xff]
      %1694 = vmatprep.subr.mxu0 0.0
      %1695 = vmatpush1.msra.mxu0 %v1693
      %1696 = vmatprep.subr.mxu0 0.0
      %1697 = vmatpush1.msra.mxu0 0.0
      %1698 = vmatprep.subr.mxu0 0.0
      %1699 = vmatpush1.msra.mxu0 0.0
      %1700 = vmatprep.subr.mxu0 0.0
      %1701 = vmatpush1.msra.mxu0 0.0
      %1702 = vmatprep.subr.mxu0 0.0
      %1703 = vmatpush1.msra.mxu0 0.0
      %1704 = vmatprep.subr.mxu0 0.0
      %1705 = vmatpush1.msra.mxu0 0.0
      %1706 = vmatprep.subr.mxu0 0.0
      %1707 = vmatpush1.msra.mxu0 0.0
      %1708 = vmatprep.subr.mxu0 0.0
      %1709 = vmatpush1.msra.mxu0 0.0
      %1710 = vmatprep.subr.mxu0 0.0
      %1711 = vmatpush1.msra.mxu0 0.0
      %1712 = vmatprep.subr.mxu0 0.0
      %1713 = vmatpush1.msra.mxu0 0.0
      %1714 = vmatprep.subr.mxu0 0.0
      %1715 = vmatpush1.msra.mxu0 0.0
      %1716 = vmatprep.subr.mxu0 0.0
      %1717 = vmatpush1.msra.mxu0 0.0
      %1718 = vmatprep.subr.mxu0 0.0
      %1719 = vmatpush1.msra.mxu0 0.0
      %1720 = vmatprep.subr.mxu0 0.0
      %1721 = vmatpush1.msra.mxu0 0.0
      %1722 = vmatprep.subr.mxu0 0.0
      %1723 = vmatpush1.msra.mxu0 0.0
      %1724 = vmatprep.subr.mxu0 0.0
      %1725 = vmatpush1.msra.mxu0 0.0
      %1726 = vmatprep.subr.mxu0 0.0
      %1727 = vmatpush1.msra.mxu0 0.0
      %1728 = vmatprep.subr.mxu0 0.0
      %1729 = vmatpush1.msra.mxu0 0.0
      %1730 = vmatprep.subr.mxu0 0.0
      %1731 = vmatpush1.msra.mxu0 0.0
      %1732 = vmatprep.subr.mxu0 0.0
      %1733 = vmatpush1.msra.mxu0 0.0
      %1734 = vmatprep.subr.mxu0 0.0
      %1735 = vmatpush1.msra.mxu0 0.0
      %1736 = vmatprep.subr.mxu0 0.0
      %1737 = vmatpush1.msra.mxu0 0.0
      %1738 = vmatprep.subr.mxu0 0.0
      %1739 = vmatpush1.msra.mxu0 0.0
      %1740 = vmatprep.subr.mxu0 0.0
      %1741 = vmatpush1.msra.mxu0 0.0
      %1742 = vmatprep.subr.mxu0 0.0
      %1743 = vmatpush1.msra.mxu0 0.0
      %1744 = vmatprep.subr.mxu0 0.0
      %1745 = vmatpush1.msra.mxu0 0.0
      %1746 = vmatprep.subr.mxu0 0.0
      %1747 = vmatpush1.msra.mxu0 0.0
      %1748 = vmatprep.subr.mxu0 0.0
      %1749 = vmatpush1.msra.mxu0 0.0
      %1750 = vmatprep.subr.mxu0 0.0
      %1751 = vmatpush1.msra.mxu0 0.0
      %1752 = vmatprep.subr.mxu0 0.0
      %1753 = vmatpush1.msra.mxu0 0.0
      %1754 = vmatprep.subr.mxu0 0.0
      %1755 = vmatpush1.msra.mxu0 0.0
      %1756 = vmatprep.subr.mxu0 0.0
      %1757 = vmatpush1.msra.mxu0 0.0
      %1758 = vmatprep.mubr.f32.mxu0 0.0
      %1759 = vmatmul.mubr.f32.gmra.mrb[0].mxu0 %v927
      %v1760 = vpop.f32.mrb[0].mxu0
      %v1761 = vadd.f32 0.0, %v1760
      %v1762 = vpop.f32.mrb[0].mxu0
      %1763 = vmatprep.mubr.f32.mxu0 0.0
      %1764 = vmatmul.mubr.f32.gmra.mrb[0].mxu0 %v930
      %v1765 = vpop.f32.mrb[0].mxu0
      %v1766 = vadd.f32 0.0, %v1765
      %v1767 = vpop.f32.mrb[0].mxu0
      %1768 = vmatprep.mubr.f32.mxu0 0.0
      %1769 = vmatmul.mubr.f32.gmra.mrb[0].mxu0 %v933
      %v1770 = vpop.f32.mrb[0].mxu0
      %v1771 = vadd.f32 0.0, %v1770
      %v1772 = vpop.f32.mrb[0].mxu0
      %1773 = vmatprep.mubr.f32.mxu0 0.0
      %1774 = vmatmul.mubr.f32.gmra.mrb[0].mxu0 %v936
      %v1775 = vpop.f32.mrb[0].mxu0
      %v1776 = vadd.f32 0.0, %v1775
      %v1777 = vpop.f32.mrb[0].mxu0
      %1778 = vmatprep.mubr.f32.mxu0 0.0
      %1779 = vmatmul.mubr.f32.gmra.mrb[0].mxu0 %v939
      %v1780 = vpop.f32.mrb[0].mxu0
      %v1781 = vadd.f32 0.0, %v1780
      %v1782 = vpop.f32.mrb[0].mxu0
      %1783 = vmatprep.mubr.f32.mxu0 0.0
      %1784 = vmatmul.mubr.f32.gmra.mrb[0].mxu0 %v942
      %v1785 = vpop.f32.mrb[0].mxu0
      %v1786 = vadd.f32 0.0, %v1785
      %v1787 = vpop.f32.mrb[0].mxu0
      %1788 = vmatprep.mubr.f32.mxu0 0.0
      %1789 = vmatmul.mubr.f32.gmra.mrb[0].mxu0 %v945
      %v1790 = vpop.f32.mrb[0].mxu0
      %v1791 = vadd.f32 0.0, %v1790
      %v1792 = vpop.f32.mrb[0].mxu0
      %1793 = vmatprep.mubr.f32.mxu0 0.0
      %1794 = vmatmul.mubr.f32.gmra.mrb[0].mxu0 %v948
      %v1795 = vpop.f32.mrb[0].mxu0
      %v1796 = vadd.f32 0.0, %v1795
      %v1797 = vpop.f32.mrb[0].mxu0
      %1798 = vdwg.mxu0
      %v1800 = vsel %vm1171, %v1684, 0
      %v1803 = vsel %vm1171, %v1685, 0
      %v1806 = vsel %vm1171, %v1686, 0
      %v1809 = vsel %vm1171, %v1687, 0
      %v1812 = vsel %vm1171, %v1688, 0
      %v1815 = vsel %vm1171, %v1689, 0
      %v1818 = vsel %vm1171, %v1690, 0
      %v1821 = vsel %vm1171, %v1691, 0
      %1823 = vmatprep.subr.mxu0 0.0
      %1824 = vmatpush1.msra.mxu0 %v1761
      %1825 = vmatprep.subr.mxu0 0.0
      %1826 = vmatpush1.msra.mxu0 %v1766
      %1827 = vmatprep.subr.mxu0 0.0
      %1828 = vmatpush1.msra.mxu0 %v1771
      %1829 = vmatprep.subr.mxu0 0.0
      %1830 = vmatpush1.msra.mxu0 %v1776
      %1831 = vmatprep.subr.mxu0 0.0
      %1832 = vmatpush1.msra.mxu0 %v1781
      %1833 = vmatprep.subr.mxu0 0.0
      %1834 = vmatpush1.msra.mxu0 %v1786
      %1835 = vmatprep.subr.mxu0 0.0
      %1836 = vmatpush1.msra.mxu0 %v1791
      %1837 = vmatprep.subr.mxu0 0.0
      %1838 = vmatpush1.msra.mxu0 %v1796
      %1839 = vmatprep.subr.mxu0 0.0
      %1840 = vmatpush1.msra.mxu0 0.0
      %1841 = vmatprep.subr.mxu0 0.0
      %1842 = vmatpush1.msra.mxu0 0.0
      %1843 = vmatprep.subr.mxu0 0.0
      %1844 = vmatpush1.msra.mxu0 0.0
      %1845 = vmatprep.subr.mxu0 0.0
      %1846 = vmatpush1.msra.mxu0 0.0
      %1847 = vmatprep.subr.mxu0 0.0
      %1848 = vmatpush1.msra.mxu0 0.0
      %1849 = vmatprep.subr.mxu0 0.0
      %1850 = vmatpush1.msra.mxu0 0.0
      %1851 = vmatprep.subr.mxu0 0.0
      %1852 = vmatpush1.msra.mxu0 0.0
      %1853 = vmatprep.subr.mxu0 0.0
      %1854 = vmatpush1.msra.mxu0 0.0
      %1855 = vmatprep.subr.mxu0 0.0
      %1856 = vmatpush1.msra.mxu0 0.0
      %1857 = vmatprep.subr.mxu0 0.0
      %1858 = vmatpush1.msra.mxu0 0.0
      %1859 = vmatprep.subr.mxu0 0.0
      %1860 = vmatpush1.msra.mxu0 0.0
      %1861 = vmatprep.subr.mxu0 0.0
      %1862 = vmatpush1.msra.mxu0 0.0
      %1863 = vmatprep.subr.mxu0 0.0
      %1864 = vmatpush1.msra.mxu0 0.0
      %1865 = vmatprep.subr.mxu0 0.0
      %1866 = vmatpush1.msra.mxu0 0.0
      %1867 = vmatprep.subr.mxu0 0.0
      %1868 = vmatpush1.msra.mxu0 0.0
      %1869 = vmatprep.subr.mxu0 0.0
      %1870 = vmatpush1.msra.mxu0 0.0
      %1871 = vmatprep.subr.mxu0 0.0
      %1872 = vmatpush1.msra.mxu0 0.0
      %1873 = vmatprep.subr.mxu0 0.0
      %1874 = vmatpush1.msra.mxu0 0.0
      %1875 = vmatprep.subr.mxu0 0.0
      %1876 = vmatpush1.msra.mxu0 0.0
      %1877 = vmatprep.subr.mxu0 0.0
      %1878 = vmatpush1.msra.mxu0 0.0
      %1879 = vmatprep.subr.mxu0 0.0
      %1880 = vmatpush1.msra.mxu0 0.0
      %1881 = vmatprep.subr.mxu0 0.0
      %1882 = vmatpush1.msra.mxu0 0.0
      %1883 = vmatprep.subr.mxu0 0.0
      %1884 = vmatpush1.msra.mxu0 0.0
      %1885 = vmatprep.subr.mxu0 0.0
      %1886 = vmatpush1.msra.mxu0 0.0
      %1887 = vmatprep.mubr.f32.mxu0 0.0
      %1888 = vmatmul.mubr.f32.gmra.mrb[0].mxu0 %v1800
      %v1889 = vpop.f32.mrb[0].mxu0
      %v1890 = vadd.f32 0.0, %v1889
      %v1891 = vpop.f32.mrb[0].mxu0
      %1892 = vmatprep.mubr.f32.mxu0 0.0
      %1893 = vmatmul.mubr.f32.gmra.mrb[0].mxu0 %v1803
      %v1894 = vpop.f32.mrb[0].mxu0
      %v1895 = vadd.f32 0.0, %v1894
      %v1896 = vpop.f32.mrb[0].mxu0
      %1897 = vmatprep.mubr.f32.mxu0 0.0
      %1898 = vmatmul.mubr.f32.gmra.mrb[0].mxu0 %v1806
      %v1899 = vpop.f32.mrb[0].mxu0
      %v1900 = vadd.f32 0.0, %v1899
      %v1901 = vpop.f32.mrb[0].mxu0
      %1902 = vmatprep.mubr.f32.mxu0 0.0
      %1903 = vmatmul.mubr.f32.gmra.mrb[0].mxu0 %v1809
      %v1904 = vpop.f32.mrb[0].mxu0
      %v1905 = vadd.f32 0.0, %v1904
      %v1906 = vpop.f32.mrb[0].mxu0
      %1907 = vmatprep.mubr.f32.mxu0 0.0
      %1908 = vmatmul.mubr.f32.gmra.mrb[0].mxu0 %v1812
      %v1909 = vpop.f32.mrb[0].mxu0
      %v1910 = vadd.f32 0.0, %v1909
      %v1911 = vpop.f32.mrb[0].mxu0
      %1912 = vmatprep.mubr.f32.mxu0 0.0
      %1913 = vmatmul.mubr.f32.gmra.mrb[0].mxu0 %v1815
      %v1914 = vpop.f32.mrb[0].mxu0
      %v1915 = vadd.f32 0.0, %v1914
      %v1916 = vpop.f32.mrb[0].mxu0
      %1917 = vmatprep.mubr.f32.mxu0 0.0
      %1918 = vmatmul.mubr.f32.gmra.mrb[0].mxu0 %v1818
      %v1919 = vpop.f32.mrb[0].mxu0
      %v1920 = vadd.f32 0.0, %v1919
      %v1921 = vpop.f32.mrb[0].mxu0
      %1922 = vmatprep.mubr.f32.mxu0 0.0
      %1923 = vmatmul.mubr.f32.gmra.mrb[0].mxu0 %v1821
      %v1924 = vpop.f32.mrb[0].mxu0
      %v1925 = vadd.f32 0.0, %v1924
      %v1926 = vpop.f32.mrb[0].mxu0
      %1927 = vdwg.mxu0
      %v1928 = vadd.f32 %v1675, %v1890
      %v1929 = vadd.f32 %v1676, %v1895
      %v1930 = vadd.f32 %v1677, %v1900
      %v1931 = vadd.f32 %v1678, %v1905
      %v1932 = vadd.f32 %v1679, %v1910
      %v1933 = vadd.f32 %v1680, %v1915
      %v1934 = vadd.f32 %v1681, %v1920
      %v1935 = vadd.f32 %v1682, %v1925
      %s1936 = scalar_lea.vmem %s1, 256
      %v1937 = vld [vmem:[%s1936] sm:$0xff]
      %v1938 = vld [vmem:[%s1936 + $0x8] sm:$0xff]
      %v1939 = vld [vmem:[%s1936 + $0x10] sm:$0xff]
      %v1940 = vld [vmem:[%s1936 + $0x18] sm:$0xff]
      %v1941 = vld [vmem:[%s1936 + $0x20] sm:$0xff]
      %v1942 = vld [vmem:[%s1936 + $0x28] sm:$0xff]
      %v1943 = vld [vmem:[%s1936 + $0x30] sm:$0xff]
      %v1944 = vld [vmem:[%s1936 + $0x38] sm:$0xff]
      %s1945 = scalar_lea.vmem %s5, 32
      %v1946 = vld [vmem:[%s1945] sm:$0xff]
      %1947 = vmatprep.subr.mxu0 0.0
      %1948 = vmatpush1.msra.mxu0 %v1946
      %1949 = vmatprep.subr.mxu0 0.0
      %1950 = vmatpush1.msra.mxu0 0.0
      %1951 = vmatprep.subr.mxu0 0.0
      %1952 = vmatpush1.msra.mxu0 0.0
      %1953 = vmatprep.subr.mxu0 0.0
      %1954 = vmatpush1.msra.mxu0 0.0
      %1955 = vmatprep.subr.mxu0 0.0
      %1956 = vmatpush1.msra.mxu0 0.0
      %1957 = vmatprep.subr.mxu0 0.0
      %1958 = vmatpush1.msra.mxu0 0.0
      %1959 = vmatprep.subr.mxu0 0.0
      %1960 = vmatpush1.msra.mxu0 0.0
      %1961 = vmatprep.subr.mxu0 0.0
      %1962 = vmatpush1.msra.mxu0 0.0
      %1963 = vmatprep.subr.mxu0 0.0
      %1964 = vmatpush1.msra.mxu0 0.0
      %1965 = vmatprep.subr.mxu0 0.0
      %1966 = vmatpush1.msra.mxu0 0.0
      %1967 = vmatprep.subr.mxu0 0.0
      %1968 = vmatpush1.msra.mxu0 0.0
      %1969 = vmatprep.subr.mxu0 0.0
      %1970 = vmatpush1.msra.mxu0 0.0
      %1971 = vmatprep.subr.mxu0 0.0
      %1972 = vmatpush1.msra.mxu0 0.0
      %1973 = vmatprep.subr.mxu0 0.0
      %1974 = vmatpush1.msra.mxu0 0.0
      %1975 = vmatprep.subr.mxu0 0.0
      %1976 = vmatpush1.msra.mxu0 0.0
      %1977 = vmatprep.subr.mxu0 0.0
      %1978 = vmatpush1.msra.mxu0 0.0
      %1979 = vmatprep.subr.mxu0 0.0
      %1980 = vmatpush1.msra.mxu0 0.0
      %1981 = vmatprep.subr.mxu0 0.0
      %1982 = vmatpush1.msra.mxu0 0.0
      %1983 = vmatprep.subr.mxu0 0.0
      %1984 = vmatpush1.msra.mxu0 0.0
      %1985 = vmatprep.subr.mxu0 0.0
      %1986 = vmatpush1.msra.mxu0 0.0
      %1987 = vmatprep.subr.mxu0 0.0
      %1988 = vmatpush1.msra.mxu0 0.0
      %1989 = vmatprep.subr.mxu0 0.0
      %1990 = vmatpush1.msra.mxu0 0.0
      %1991 = vmatprep.subr.mxu0 0.0
      %1992 = vmatpush1.msra.mxu0 0.0
      %1993 = vmatprep.subr.mxu0 0.0
      %1994 = vmatpush1.msra.mxu0 0.0
      %1995 = vmatprep.subr.mxu0 0.0
      %1996 = vmatpush1.msra.mxu0 0.0
      %1997 = vmatprep.subr.mxu0 0.0
      %1998 = vmatpush1.msra.mxu0 0.0
      %1999 = vmatprep.subr.mxu0 0.0
      %2000 = vmatpush1.msra.mxu0 0.0
      %2001 = vmatprep.subr.mxu0 0.0
      %2002 = vmatpush1.msra.mxu0 0.0
      %2003 = vmatprep.subr.mxu0 0.0
      %2004 = vmatpush1.msra.mxu0 0.0
      %2005 = vmatprep.subr.mxu0 0.0
      %2006 = vmatpush1.msra.mxu0 0.0
      %2007 = vmatprep.subr.mxu0 0.0
      %2008 = vmatpush1.msra.mxu0 0.0
      %2009 = vmatprep.subr.mxu0 0.0
      %2010 = vmatpush1.msra.mxu0 0.0
      %2011 = vmatprep.mubr.f32.mxu0 0.0
      %2012 = vmatmul.mubr.f32.gmra.mrb[0].mxu0 %v927
      %v2013 = vpop.f32.mrb[0].mxu0
      %v2014 = vadd.f32 0.0, %v2013
      %v2015 = vpop.f32.mrb[0].mxu0
      %2016 = vmatprep.mubr.f32.mxu0 0.0
      %2017 = vmatmul.mubr.f32.gmra.mrb[0].mxu0 %v930
      %v2018 = vpop.f32.mrb[0].mxu0
      %v2019 = vadd.f32 0.0, %v2018
      %v2020 = vpop.f32.mrb[0].mxu0
      %2021 = vmatprep.mubr.f32.mxu0 0.0
      %2022 = vmatmul.mubr.f32.gmra.mrb[0].mxu0 %v933
      %v2023 = vpop.f32.mrb[0].mxu0
      %v2024 = vadd.f32 0.0, %v2023
      %v2025 = vpop.f32.mrb[0].mxu0
      %2026 = vmatprep.mubr.f32.mxu0 0.0
      %2027 = vmatmul.mubr.f32.gmra.mrb[0].mxu0 %v936
      %v2028 = vpop.f32.mrb[0].mxu0
      %v2029 = vadd.f32 0.0, %v2028
      %v2030 = vpop.f32.mrb[0].mxu0
      %2031 = vmatprep.mubr.f32.mxu0 0.0
      %2032 = vmatmul.mubr.f32.gmra.mrb[0].mxu0 %v939
      %v2033 = vpop.f32.mrb[0].mxu0
      %v2034 = vadd.f32 0.0, %v2033
      %v2035 = vpop.f32.mrb[0].mxu0
      %2036 = vmatprep.mubr.f32.mxu0 0.0
      %2037 = vmatmul.mubr.f32.gmra.mrb[0].mxu0 %v942
      %v2038 = vpop.f32.mrb[0].mxu0
      %v2039 = vadd.f32 0.0, %v2038
      %v2040 = vpop.f32.mrb[0].mxu0
      %2041 = vmatprep.mubr.f32.mxu0 0.0
      %2042 = vmatmul.mubr.f32.gmra.mrb[0].mxu0 %v945
      %v2043 = vpop.f32.mrb[0].mxu0
      %v2044 = vadd.f32 0.0, %v2043
      %v2045 = vpop.f32.mrb[0].mxu0
      %2046 = vmatprep.mubr.f32.mxu0 0.0
      %2047 = vmatmul.mubr.f32.gmra.mrb[0].mxu0 %v948
      %v2048 = vpop.f32.mrb[0].mxu0
      %v2049 = vadd.f32 0.0, %v2048
      %v2050 = vpop.f32.mrb[0].mxu0
      %2051 = vdwg.mxu0
      %v2053 = vsel %vm1171, %v1937, 0
      %v2056 = vsel %vm1171, %v1938, 0
      %v2059 = vsel %vm1171, %v1939, 0
      %v2062 = vsel %vm1171, %v1940, 0
      %v2065 = vsel %vm1171, %v1941, 0
      %v2068 = vsel %vm1171, %v1942, 0
      %v2071 = vsel %vm1171, %v1943, 0
      %v2074 = vsel %vm1171, %v1944, 0
      %2076 = vmatprep.subr.mxu0 0.0
      %2077 = vmatpush1.msra.mxu0 %v2014
      %2078 = vmatprep.subr.mxu0 0.0
      %2079 = vmatpush1.msra.mxu0 %v2019
      %2080 = vmatprep.subr.mxu0 0.0
      %2081 = vmatpush1.msra.mxu0 %v2024
      %2082 = vmatprep.subr.mxu0 0.0
      %2083 = vmatpush1.msra.mxu0 %v2029
      %2084 = vmatprep.subr.mxu0 0.0
      %2085 = vmatpush1.msra.mxu0 %v2034
      %2086 = vmatprep.subr.mxu0 0.0
      %2087 = vmatpush1.msra.mxu0 %v2039
      %2088 = vmatprep.subr.mxu0 0.0
      %2089 = vmatpush1.msra.mxu0 %v2044
      %2090 = vmatprep.subr.mxu0 0.0
      %2091 = vmatpush1.msra.mxu0 %v2049
      %2092 = vmatprep.subr.mxu0 0.0
      %2093 = vmatpush1.msra.mxu0 0.0
      %2094 = vmatprep.subr.mxu0 0.0
      %2095 = vmatpush1.msra.mxu0 0.0
      %2096 = vmatprep.subr.mxu0 0.0
      %2097 = vmatpush1.msra.mxu0 0.0
      %2098 = vmatprep.subr.mxu0 0.0
      %2099 = vmatpush1.msra.mxu0 0.0
      %2100 = vmatprep.subr.mxu0 0.0
      %2101 = vmatpush1.msra.mxu0 0.0
      %2102 = vmatprep.subr.mxu0 0.0
      %2103 = vmatpush1.msra.mxu0 0.0
      %2104 = vmatprep.subr.mxu0 0.0
      %2105 = vmatpush1.msra.mxu0 0.0
      %2106 = vmatprep.subr.mxu0 0.0
      %2107 = vmatpush1.msra.mxu0 0.0
      %2108 = vmatprep.subr.mxu0 0.0
      %2109 = vmatpush1.msra.mxu0 0.0
      %2110 = vmatprep.subr.mxu0 0.0
      %2111 = vmatpush1.msra.mxu0 0.0
      %2112 = vmatprep.subr.mxu0 0.0
      %2113 = vmatpush1.msra.mxu0 0.0
      %2114 = vmatprep.subr.mxu0 0.0
      %2115 = vmatpush1.msra.mxu0 0.0
      %2116 = vmatprep.subr.mxu0 0.0
      %2117 = vmatpush1.msra.mxu0 0.0
      %2118 = vmatprep.subr.mxu0 0.0
      %2119 = vmatpush1.msra.mxu0 0.0
      %2120 = vmatprep.subr.mxu0 0.0
      %2121 = vmatpush1.msra.mxu0 0.0
      %2122 = vmatprep.subr.mxu0 0.0
      %2123 = vmatpush1.msra.mxu0 0.0
      %2124 = vmatprep.subr.mxu0 0.0
      %2125 = vmatpush1.msra.mxu0 0.0
      %2126 = vmatprep.subr.mxu0 0.0
      %2127 = vmatpush1.msra.mxu0 0.0
      %2128 = vmatprep.subr.mxu0 0.0
      %2129 = vmatpush1.msra.mxu0 0.0
      %2130 = vmatprep.subr.mxu0 0.0
      %2131 = vmatpush1.msra.mxu0 0.0
      %2132 = vmatprep.subr.mxu0 0.0
      %2133 = vmatpush1.msra.mxu0 0.0
      %2134 = vmatprep.subr.mxu0 0.0
      %2135 = vmatpush1.msra.mxu0 0.0
      %2136 = vmatprep.subr.mxu0 0.0
      %2137 = vmatpush1.msra.mxu0 0.0
      %2138 = vmatprep.subr.mxu0 0.0
      %2139 = vmatpush1.msra.mxu0 0.0
      %2140 = vmatprep.mubr.f32.mxu0 0.0
      %2141 = vmatmul.mubr.f32.gmra.mrb[0].mxu0 %v2053
      %v2142 = vpop.f32.mrb[0].mxu0
      %v2143 = vadd.f32 0.0, %v2142
      %v2144 = vpop.f32.mrb[0].mxu0
      %2145 = vmatprep.mubr.f32.mxu0 0.0
      %2146 = vmatmul.mubr.f32.gmra.mrb[0].mxu0 %v2056
      %v2147 = vpop.f32.mrb[0].mxu0
      %v2148 = vadd.f32 0.0, %v2147
      %v2149 = vpop.f32.mrb[0].mxu0
      %2150 = vmatprep.mubr.f32.mxu0 0.0
      %2151 = vmatmul.mubr.f32.gmra.mrb[0].mxu0 %v2059
      %v2152 = vpop.f32.mrb[0].mxu0
      %v2153 = vadd.f32 0.0, %v2152
      %v2154 = vpop.f32.mrb[0].mxu0
      %2155 = vmatprep.mubr.f32.mxu0 0.0
      %2156 = vmatmul.mubr.f32.gmra.mrb[0].mxu0 %v2062
      %v2157 = vpop.f32.mrb[0].mxu0
      %v2158 = vadd.f32 0.0, %v2157
      %v2159 = vpop.f32.mrb[0].mxu0
      %2160 = vmatprep.mubr.f32.mxu0 0.0
      %2161 = vmatmul.mubr.f32.gmra.mrb[0].mxu0 %v2065
      %v2162 = vpop.f32.mrb[0].mxu0
      %v2163 = vadd.f32 0.0, %v2162
      %v2164 = vpop.f32.mrb[0].mxu0
      %2165 = vmatprep.mubr.f32.mxu0 0.0
      %2166 = vmatmul.mubr.f32.gmra.mrb[0].mxu0 %v2068
      %v2167 = vpop.f32.mrb[0].mxu0
      %v2168 = vadd.f32 0.0, %v2167
      %v2169 = vpop.f32.mrb[0].mxu0
      %2170 = vmatprep.mubr.f32.mxu0 0.0
      %2171 = vmatmul.mubr.f32.gmra.mrb[0].mxu0 %v2071
      %v2172 = vpop.f32.mrb[0].mxu0
      %v2173 = vadd.f32 0.0, %v2172
      %v2174 = vpop.f32.mrb[0].mxu0
      %2175 = vmatprep.mubr.f32.mxu0 0.0
      %2176 = vmatmul.mubr.f32.gmra.mrb[0].mxu0 %v2074
      %v2177 = vpop.f32.mrb[0].mxu0
      %v2178 = vadd.f32 0.0, %v2177
      %v2179 = vpop.f32.mrb[0].mxu0
      %2180 = vdwg.mxu0
      %v2181 = vadd.f32 %v1928, %v2143
      %v2182 = vadd.f32 %v1929, %v2148
      %v2183 = vadd.f32 %v1930, %v2153
      %v2184 = vadd.f32 %v1931, %v2158
      %v2185 = vadd.f32 %v1932, %v2163
      %v2186 = vadd.f32 %v1933, %v2168
      %v2187 = vadd.f32 %v1934, %v2173
      %v2188 = vadd.f32 %v1935, %v2178
      %s2189 = scalar_lea.vmem %s1, 320
      %v2190 = vld [vmem:[%s2189] sm:$0xff]
      %v2191 = vld [vmem:[%s2189 + $0x8] sm:$0xff]
      %v2192 = vld [vmem:[%s2189 + $0x10] sm:$0xff]
      %v2193 = vld [vmem:[%s2189 + $0x18] sm:$0xff]
      %v2194 = vld [vmem:[%s2189 + $0x20] sm:$0xff]
      %v2195 = vld [vmem:[%s2189 + $0x28] sm:$0xff]
      %v2196 = vld [vmem:[%s2189 + $0x30] sm:$0xff]
      %v2197 = vld [vmem:[%s2189 + $0x38] sm:$0xff]
      %s2198 = scalar_lea.vmem %s5, 40
      %v2199 = vld [vmem:[%s2198] sm:$0xff]
      %2200 = vmatprep.subr.mxu0 0.0
      %2201 = vmatpush1.msra.mxu0 %v2199
      %2202 = vmatprep.subr.mxu0 0.0
      %2203 = vmatpush1.msra.mxu0 0.0
      %2204 = vmatprep.subr.mxu0 0.0
      %2205 = vmatpush1.msra.mxu0 0.0
      %2206 = vmatprep.subr.mxu0 0.0
      %2207 = vmatpush1.msra.mxu0 0.0
      %2208 = vmatprep.subr.mxu0 0.0
      %2209 = vmatpush1.msra.mxu0 0.0
      %2210 = vmatprep.subr.mxu0 0.0
      %2211 = vmatpush1.msra.mxu0 0.0
      %2212 = vmatprep.subr.mxu0 0.0
      %2213 = vmatpush1.msra.mxu0 0.0
      %2214 = vmatprep.subr.mxu0 0.0
      %2215 = vmatpush1.msra.mxu0 0.0
      %2216 = vmatprep.subr.mxu0 0.0
      %2217 = vmatpush1.msra.mxu0 0.0
      %2218 = vmatprep.subr.mxu0 0.0
      %2219 = vmatpush1.msra.mxu0 0.0
      %2220 = vmatprep.subr.mxu0 0.0
      %2221 = vmatpush1.msra.mxu0 0.0
      %2222 = vmatprep.subr.mxu0 0.0
      %2223 = vmatpush1.msra.mxu0 0.0
      %2224 = vmatprep.subr.mxu0 0.0
      %2225 = vmatpush1.msra.mxu0 0.0
      %2226 = vmatprep.subr.mxu0 0.0
      %2227 = vmatpush1.msra.mxu0 0.0
      %2228 = vmatprep.subr.mxu0 0.0
      %2229 = vmatpush1.msra.mxu0 0.0
      %2230 = vmatprep.subr.mxu0 0.0
      %2231 = vmatpush1.msra.mxu0 0.0
      %2232 = vmatprep.subr.mxu0 0.0
      %2233 = vmatpush1.msra.mxu0 0.0
      %2234 = vmatprep.subr.mxu0 0.0
      %2235 = vmatpush1.msra.mxu0 0.0
      %2236 = vmatprep.subr.mxu0 0.0
      %2237 = vmatpush1.msra.mxu0 0.0
      %2238 = vmatprep.subr.mxu0 0.0
      %2239 = vmatpush1.msra.mxu0 0.0
      %2240 = vmatprep.subr.mxu0 0.0
      %2241 = vmatpush1.msra.mxu0 0.0
      %2242 = vmatprep.subr.mxu0 0.0
      %2243 = vmatpush1.msra.mxu0 0.0
      %2244 = vmatprep.subr.mxu0 0.0
      %2245 = vmatpush1.msra.mxu0 0.0
      %2246 = vmatprep.subr.mxu0 0.0
      %2247 = vmatpush1.msra.mxu0 0.0
      %2248 = vmatprep.subr.mxu0 0.0
      %2249 = vmatpush1.msra.mxu0 0.0
      %2250 = vmatprep.subr.mxu0 0.0
      %2251 = vmatpush1.msra.mxu0 0.0
      %2252 = vmatprep.subr.mxu0 0.0
      %2253 = vmatpush1.msra.mxu0 0.0
      %2254 = vmatprep.subr.mxu0 0.0
      %2255 = vmatpush1.msra.mxu0 0.0
      %2256 = vmatprep.subr.mxu0 0.0
      %2257 = vmatpush1.msra.mxu0 0.0
      %2258 = vmatprep.subr.mxu0 0.0
      %2259 = vmatpush1.msra.mxu0 0.0
      %2260 = vmatprep.subr.mxu0 0.0
      %2261 = vmatpush1.msra.mxu0 0.0
      %2262 = vmatprep.subr.mxu0 0.0
      %2263 = vmatpush1.msra.mxu0 0.0
      %2264 = vmatprep.mubr.f32.mxu0 0.0
      %2265 = vmatmul.mubr.f32.gmra.mrb[0].mxu0 %v927
      %v2266 = vpop.f32.mrb[0].mxu0
      %v2267 = vadd.f32 0.0, %v2266
      %v2268 = vpop.f32.mrb[0].mxu0
      %2269 = vmatprep.mubr.f32.mxu0 0.0
      %2270 = vmatmul.mubr.f32.gmra.mrb[0].mxu0 %v930
      %v2271 = vpop.f32.mrb[0].mxu0
      %v2272 = vadd.f32 0.0, %v2271
      %v2273 = vpop.f32.mrb[0].mxu0
      %2274 = vmatprep.mubr.f32.mxu0 0.0
      %2275 = vmatmul.mubr.f32.gmra.mrb[0].mxu0 %v933
      %v2276 = vpop.f32.mrb[0].mxu0
      %v2277 = vadd.f32 0.0, %v2276
      %v2278 = vpop.f32.mrb[0].mxu0
      %2279 = vmatprep.mubr.f32.mxu0 0.0
      %2280 = vmatmul.mubr.f32.gmra.mrb[0].mxu0 %v936
      %v2281 = vpop.f32.mrb[0].mxu0
      %v2282 = vadd.f32 0.0, %v2281
      %v2283 = vpop.f32.mrb[0].mxu0
      %2284 = vmatprep.mubr.f32.mxu0 0.0
      %2285 = vmatmul.mubr.f32.gmra.mrb[0].mxu0 %v939
      %v2286 = vpop.f32.mrb[0].mxu0
      %v2287 = vadd.f32 0.0, %v2286
      %v2288 = vpop.f32.mrb[0].mxu0
      %2289 = vmatprep.mubr.f32.mxu0 0.0
      %2290 = vmatmul.mubr.f32.gmra.mrb[0].mxu0 %v942
      %v2291 = vpop.f32.mrb[0].mxu0
      %v2292 = vadd.f32 0.0, %v2291
      %v2293 = vpop.f32.mrb[0].mxu0
      %2294 = vmatprep.mubr.f32.mxu0 0.0
      %2295 = vmatmul.mubr.f32.gmra.mrb[0].mxu0 %v945
      %v2296 = vpop.f32.mrb[0].mxu0
      %v2297 = vadd.f32 0.0, %v2296
      %v2298 = vpop.f32.mrb[0].mxu0
      %2299 = vmatprep.mubr.f32.mxu0 0.0
      %2300 = vmatmul.mubr.f32.gmra.mrb[0].mxu0 %v948
      %v2301 = vpop.f32.mrb[0].mxu0
      %v2302 = vadd.f32 0.0, %v2301
      %v2303 = vpop.f32.mrb[0].mxu0
      %2304 = vdwg.mxu0
      %v2306 = vsel %vm1171, %v2190, 0
      %v2309 = vsel %vm1171, %v2191, 0
      %v2312 = vsel %vm1171, %v2192, 0
      %v2315 = vsel %vm1171, %v2193, 0
      %v2318 = vsel %vm1171, %v2194, 0
      %v2321 = vsel %vm1171, %v2195, 0
      %v2324 = vsel %vm1171, %v2196, 0
      %v2327 = vsel %vm1171, %v2197, 0
      %2329 = vmatprep.subr.mxu0 0.0
      %2330 = vmatpush1.msra.mxu0 %v2267
      %2331 = vmatprep.subr.mxu0 0.0
      %2332 = vmatpush1.msra.mxu0 %v2272
      %2333 = vmatprep.subr.mxu0 0.0
      %2334 = vmatpush1.msra.mxu0 %v2277
      %2335 = vmatprep.subr.mxu0 0.0
      %2336 = vmatpush1.msra.mxu0 %v2282
      %2337 = vmatprep.subr.mxu0 0.0
      %2338 = vmatpush1.msra.mxu0 %v2287
      %2339 = vmatprep.subr.mxu0 0.0
      %2340 = vmatpush1.msra.mxu0 %v2292
      %2341 = vmatprep.subr.mxu0 0.0
      %2342 = vmatpush1.msra.mxu0 %v2297
      %2343 = vmatprep.subr.mxu0 0.0
      %2344 = vmatpush1.msra.mxu0 %v2302
      %2345 = vmatprep.subr.mxu0 0.0
      %2346 = vmatpush1.msra.mxu0 0.0
      %2347 = vmatprep.subr.mxu0 0.0
      %2348 = vmatpush1.msra.mxu0 0.0
      %2349 = vmatprep.subr.mxu0 0.0
      %2350 = vmatpush1.msra.mxu0 0.0
      %2351 = vmatprep.subr.mxu0 0.0
      %2352 = vmatpush1.msra.mxu0 0.0
      %2353 = vmatprep.subr.mxu0 0.0
      %2354 = vmatpush1.msra.mxu0 0.0
      %2355 = vmatprep.subr.mxu0 0.0
      %2356 = vmatpush1.msra.mxu0 0.0
      %2357 = vmatprep.subr.mxu0 0.0
      %2358 = vmatpush1.msra.mxu0 0.0
      %2359 = vmatprep.subr.mxu0 0.0
      %2360 = vmatpush1.msra.mxu0 0.0
      %2361 = vmatprep.subr.mxu0 0.0
      %2362 = vmatpush1.msra.mxu0 0.0
      %2363 = vmatprep.subr.mxu0 0.0
      %2364 = vmatpush1.msra.mxu0 0.0
      %2365 = vmatprep.subr.mxu0 0.0
      %2366 = vmatpush1.msra.mxu0 0.0
      %2367 = vmatprep.subr.mxu0 0.0
      %2368 = vmatpush1.msra.mxu0 0.0
      %2369 = vmatprep.subr.mxu0 0.0
      %2370 = vmatpush1.msra.mxu0 0.0
      %2371 = vmatprep.subr.mxu0 0.0
      %2372 = vmatpush1.msra.mxu0 0.0
      %2373 = vmatprep.subr.mxu0 0.0
      %2374 = vmatpush1.msra.mxu0 0.0
      %2375 = vmatprep.subr.mxu0 0.0
      %2376 = vmatpush1.msra.mxu0 0.0
      %2377 = vmatprep.subr.mxu0 0.0
      %2378 = vmatpush1.msra.mxu0 0.0
      %2379 = vmatprep.subr.mxu0 0.0
      %2380 = vmatpush1.msra.mxu0 0.0
      %2381 = vmatprep.subr.mxu0 0.0
      %2382 = vmatpush1.msra.mxu0 0.0
      %2383 = vmatprep.subr.mxu0 0.0
      %2384 = vmatpush1.msra.mxu0 0.0
      %2385 = vmatprep.subr.mxu0 0.0
      %2386 = vmatpush1.msra.mxu0 0.0
      %2387 = vmatprep.subr.mxu0 0.0
      %2388 = vmatpush1.msra.mxu0 0.0
      %2389 = vmatprep.subr.mxu0 0.0
      %2390 = vmatpush1.msra.mxu0 0.0
      %2391 = vmatprep.subr.mxu0 0.0
      %2392 = vmatpush1.msra.mxu0 0.0
      %2393 = vmatprep.mubr.f32.mxu0 0.0
      %2394 = vmatmul.mubr.f32.gmra.mrb[0].mxu0 %v2306
      %v2395 = vpop.f32.mrb[0].mxu0
      %v2396 = vadd.f32 0.0, %v2395
      %v2397 = vpop.f32.mrb[0].mxu0
      %2398 = vmatprep.mubr.f32.mxu0 0.0
      %2399 = vmatmul.mubr.f32.gmra.mrb[0].mxu0 %v2309
      %v2400 = vpop.f32.mrb[0].mxu0
      %v2401 = vadd.f32 0.0, %v2400
      %v2402 = vpop.f32.mrb[0].mxu0
      %2403 = vmatprep.mubr.f32.mxu0 0.0
      %2404 = vmatmul.mubr.f32.gmra.mrb[0].mxu0 %v2312
      %v2405 = vpop.f32.mrb[0].mxu0
      %v2406 = vadd.f32 0.0, %v2405
      %v2407 = vpop.f32.mrb[0].mxu0
      %2408 = vmatprep.mubr.f32.mxu0 0.0
      %2409 = vmatmul.mubr.f32.gmra.mrb[0].mxu0 %v2315
      %v2410 = vpop.f32.mrb[0].mxu0
      %v2411 = vadd.f32 0.0, %v2410
      %v2412 = vpop.f32.mrb[0].mxu0
      %2413 = vmatprep.mubr.f32.mxu0 0.0
      %2414 = vmatmul.mubr.f32.gmra.mrb[0].mxu0 %v2318
      %v2415 = vpop.f32.mrb[0].mxu0
      %v2416 = vadd.f32 0.0, %v2415
      %v2417 = vpop.f32.mrb[0].mxu0
      %2418 = vmatprep.mubr.f32.mxu0 0.0
      %2419 = vmatmul.mubr.f32.gmra.mrb[0].mxu0 %v2321
      %v2420 = vpop.f32.mrb[0].mxu0
      %v2421 = vadd.f32 0.0, %v2420
      %v2422 = vpop.f32.mrb[0].mxu0
      %2423 = vmatprep.mubr.f32.mxu0 0.0
      %2424 = vmatmul.mubr.f32.gmra.mrb[0].mxu0 %v2324
      %v2425 = vpop.f32.mrb[0].mxu0
      %v2426 = vadd.f32 0.0, %v2425
      %v2427 = vpop.f32.mrb[0].mxu0
      %2428 = vmatprep.mubr.f32.mxu0 0.0
      %2429 = vmatmul.mubr.f32.gmra.mrb[0].mxu0 %v2327
      %v2430 = vpop.f32.mrb[0].mxu0
      %v2431 = vadd.f32 0.0, %v2430
      %v2432 = vpop.f32.mrb[0].mxu0
      %2433 = vdwg.mxu0
      %v2434 = vadd.f32 %v2181, %v2396
      %v2435 = vadd.f32 %v2182, %v2401
      %v2436 = vadd.f32 %v2183, %v2406
      %v2437 = vadd.f32 %v2184, %v2411
      %v2438 = vadd.f32 %v2185, %v2416
      %v2439 = vadd.f32 %v2186, %v2421
      %v2440 = vadd.f32 %v2187, %v2426
      %v2441 = vadd.f32 %v2188, %v2431
      %s2442 = scalar_lea.vmem %s1, 384
      %v2443 = vld [vmem:[%s2442] sm:$0xff]
      %v2444 = vld [vmem:[%s2442 + $0x8] sm:$0xff]
      %v2445 = vld [vmem:[%s2442 + $0x10] sm:$0xff]
      %v2446 = vld [vmem:[%s2442 + $0x18] sm:$0xff]
      %v2447 = vld [vmem:[%s2442 + $0x20] sm:$0xff]
      %v2448 = vld [vmem:[%s2442 + $0x28] sm:$0xff]
      %v2449 = vld [vmem:[%s2442 + $0x30] sm:$0xff]
      %v2450 = vld [vmem:[%s2442 + $0x38] sm:$0xff]
      %s2451 = scalar_lea.vmem %s5, 48
      %v2452 = vld [vmem:[%s2451] sm:$0xff]
      %2453 = vmatprep.subr.mxu0 0.0
      %2454 = vmatpush1.msra.mxu0 %v2452
      %2455 = vmatprep.subr.mxu0 0.0
      %2456 = vmatpush1.msra.mxu0 0.0
      %2457 = vmatprep.subr.mxu0 0.0
      %2458 = vmatpush1.msra.mxu0 0.0
      %2459 = vmatprep.subr.mxu0 0.0
      %2460 = vmatpush1.msra.mxu0 0.0
      %2461 = vmatprep.subr.mxu0 0.0
      %2462 = vmatpush1.msra.mxu0 0.0
      %2463 = vmatprep.subr.mxu0 0.0
      %2464 = vmatpush1.msra.mxu0 0.0
      %2465 = vmatprep.subr.mxu0 0.0
      %2466 = vmatpush1.msra.mxu0 0.0
      %2467 = vmatprep.subr.mxu0 0.0
      %2468 = vmatpush1.msra.mxu0 0.0
      %2469 = vmatprep.subr.mxu0 0.0
      %2470 = vmatpush1.msra.mxu0 0.0
      %2471 = vmatprep.subr.mxu0 0.0
      %2472 = vmatpush1.msra.mxu0 0.0
      %2473 = vmatprep.subr.mxu0 0.0
      %2474 = vmatpush1.msra.mxu0 0.0
      %2475 = vmatprep.subr.mxu0 0.0
      %2476 = vmatpush1.msra.mxu0 0.0
      %2477 = vmatprep.subr.mxu0 0.0
      %2478 = vmatpush1.msra.mxu0 0.0
      %2479 = vmatprep.subr.mxu0 0.0
      %2480 = vmatpush1.msra.mxu0 0.0
      %2481 = vmatprep.subr.mxu0 0.0
      %2482 = vmatpush1.msra.mxu0 0.0
      %2483 = vmatprep.subr.mxu0 0.0
      %2484 = vmatpush1.msra.mxu0 0.0
      %2485 = vmatprep.subr.mxu0 0.0
      %2486 = vmatpush1.msra.mxu0 0.0
      %2487 = vmatprep.subr.mxu0 0.0
      %2488 = vmatpush1.msra.mxu0 0.0
      %2489 = vmatprep.subr.mxu0 0.0
      %2490 = vmatpush1.msra.mxu0 0.0
      %2491 = vmatprep.subr.mxu0 0.0
      %2492 = vmatpush1.msra.mxu0 0.0
      %2493 = vmatprep.subr.mxu0 0.0
      %2494 = vmatpush1.msra.mxu0 0.0
      %2495 = vmatprep.subr.mxu0 0.0
      %2496 = vmatpush1.msra.mxu0 0.0
      %2497 = vmatprep.subr.mxu0 0.0
      %2498 = vmatpush1.msra.mxu0 0.0
      %2499 = vmatprep.subr.mxu0 0.0
      %2500 = vmatpush1.msra.mxu0 0.0
      %2501 = vmatprep.subr.mxu0 0.0
      %2502 = vmatpush1.msra.mxu0 0.0
      %2503 = vmatprep.subr.mxu0 0.0
      %2504 = vmatpush1.msra.mxu0 0.0
      %2505 = vmatprep.subr.mxu0 0.0
      %2506 = vmatpush1.msra.mxu0 0.0
      %2507 = vmatprep.subr.mxu0 0.0
      %2508 = vmatpush1.msra.mxu0 0.0
      %2509 = vmatprep.subr.mxu0 0.0
      %2510 = vmatpush1.msra.mxu0 0.0
      %2511 = vmatprep.subr.mxu0 0.0
      %2512 = vmatpush1.msra.mxu0 0.0
      %2513 = vmatprep.subr.mxu0 0.0
      %2514 = vmatpush1.msra.mxu0 0.0
      %2515 = vmatprep.subr.mxu0 0.0
      %2516 = vmatpush1.msra.mxu0 0.0
      %2517 = vmatprep.mubr.f32.mxu0 0.0
      %2518 = vmatmul.mubr.f32.gmra.mrb[0].mxu0 %v927
      %v2519 = vpop.f32.mrb[0].mxu0
      %v2520 = vadd.f32 0.0, %v2519
      %v2521 = vpop.f32.mrb[0].mxu0
      %2522 = vmatprep.mubr.f32.mxu0 0.0
      %2523 = vmatmul.mubr.f32.gmra.mrb[0].mxu0 %v930
      %v2524 = vpop.f32.mrb[0].mxu0
      %v2525 = vadd.f32 0.0, %v2524
      %v2526 = vpop.f32.mrb[0].mxu0
      %2527 = vmatprep.mubr.f32.mxu0 0.0
      %2528 = vmatmul.mubr.f32.gmra.mrb[0].mxu0 %v933
      %v2529 = vpop.f32.mrb[0].mxu0
      %v2530 = vadd.f32 0.0, %v2529
      %v2531 = vpop.f32.mrb[0].mxu0
      %2532 = vmatprep.mubr.f32.mxu0 0.0
      %2533 = vmatmul.mubr.f32.gmra.mrb[0].mxu0 %v936
      %v2534 = vpop.f32.mrb[0].mxu0
      %v2535 = vadd.f32 0.0, %v2534
      %v2536 = vpop.f32.mrb[0].mxu0
      %2537 = vmatprep.mubr.f32.mxu0 0.0
      %2538 = vmatmul.mubr.f32.gmra.mrb[0].mxu0 %v939
      %v2539 = vpop.f32.mrb[0].mxu0
      %v2540 = vadd.f32 0.0, %v2539
      %v2541 = vpop.f32.mrb[0].mxu0
      %2542 = vmatprep.mubr.f32.mxu0 0.0
      %2543 = vmatmul.mubr.f32.gmra.mrb[0].mxu0 %v942
      %v2544 = vpop.f32.mrb[0].mxu0
      %v2545 = vadd.f32 0.0, %v2544
      %v2546 = vpop.f32.mrb[0].mxu0
      %2547 = vmatprep.mubr.f32.mxu0 0.0
      %2548 = vmatmul.mubr.f32.gmra.mrb[0].mxu0 %v945
      %v2549 = vpop.f32.mrb[0].mxu0
      %v2550 = vadd.f32 0.0, %v2549
      %v2551 = vpop.f32.mrb[0].mxu0
      %2552 = vmatprep.mubr.f32.mxu0 0.0
      %2553 = vmatmul.mubr.f32.gmra.mrb[0].mxu0 %v948
      %v2554 = vpop.f32.mrb[0].mxu0
      %v2555 = vadd.f32 0.0, %v2554
      %v2556 = vpop.f32.mrb[0].mxu0
      %2557 = vdwg.mxu0
      %v2559 = vsel %vm1171, %v2443, 0
      %v2562 = vsel %vm1171, %v2444, 0
      %v2565 = vsel %vm1171, %v2445, 0
      %v2568 = vsel %vm1171, %v2446, 0
      %v2571 = vsel %vm1171, %v2447, 0
      %v2574 = vsel %vm1171, %v2448, 0
      %v2577 = vsel %vm1171, %v2449, 0
      %v2580 = vsel %vm1171, %v2450, 0
      %2582 = vmatprep.subr.mxu0 0.0
      %2583 = vmatpush1.msra.mxu0 %v2520
      %2584 = vmatprep.subr.mxu0 0.0
      %2585 = vmatpush1.msra.mxu0 %v2525
      %2586 = vmatprep.subr.mxu0 0.0
      %2587 = vmatpush1.msra.mxu0 %v2530
      %2588 = vmatprep.subr.mxu0 0.0
      %2589 = vmatpush1.msra.mxu0 %v2535
      %2590 = vmatprep.subr.mxu0 0.0
      %2591 = vmatpush1.msra.mxu0 %v2540
      %2592 = vmatprep.subr.mxu0 0.0
      %2593 = vmatpush1.msra.mxu0 %v2545
      %2594 = vmatprep.subr.mxu0 0.0
      %2595 = vmatpush1.msra.mxu0 %v2550
      %2596 = vmatprep.subr.mxu0 0.0
      %2597 = vmatpush1.msra.mxu0 %v2555
      %2598 = vmatprep.subr.mxu0 0.0
      %2599 = vmatpush1.msra.mxu0 0.0
      %2600 = vmatprep.subr.mxu0 0.0
      %2601 = vmatpush1.msra.mxu0 0.0
      %2602 = vmatprep.subr.mxu0 0.0
      %2603 = vmatpush1.msra.mxu0 0.0
      %2604 = vmatprep.subr.mxu0 0.0
      %2605 = vmatpush1.msra.mxu0 0.0
      %2606 = vmatprep.subr.mxu0 0.0
      %2607 = vmatpush1.msra.mxu0 0.0
      %2608 = vmatprep.subr.mxu0 0.0
      %2609 = vmatpush1.msra.mxu0 0.0
      %2610 = vmatprep.subr.mxu0 0.0
      %2611 = vmatpush1.msra.mxu0 0.0
      %2612 = vmatprep.subr.mxu0 0.0
      %2613 = vmatpush1.msra.mxu0 0.0
      %2614 = vmatprep.subr.mxu0 0.0
      %2615 = vmatpush1.msra.mxu0 0.0
      %2616 = vmatprep.subr.mxu0 0.0
      %2617 = vmatpush1.msra.mxu0 0.0
      %2618 = vmatprep.subr.mxu0 0.0
      %2619 = vmatpush1.msra.mxu0 0.0
      %2620 = vmatprep.subr.mxu0 0.0
      %2621 = vmatpush1.msra.mxu0 0.0
      %2622 = vmatprep.subr.mxu0 0.0
      %2623 = vmatpush1.msra.mxu0 0.0
      %2624 = vmatprep.subr.mxu0 0.0
      %2625 = vmatpush1.msra.mxu0 0.0
      %2626 = vmatprep.subr.mxu0 0.0
      %2627 = vmatpush1.msra.mxu0 0.0
      %2628 = vmatprep.subr.mxu0 0.0
      %2629 = vmatpush1.msra.mxu0 0.0
      %2630 = vmatprep.subr.mxu0 0.0
      %2631 = vmatpush1.msra.mxu0 0.0
      %2632 = vmatprep.subr.mxu0 0.0
      %2633 = vmatpush1.msra.mxu0 0.0
      %2634 = vmatprep.subr.mxu0 0.0
      %2635 = vmatpush1.msra.mxu0 0.0
      %2636 = vmatprep.subr.mxu0 0.0
      %2637 = vmatpush1.msra.mxu0 0.0
      %2638 = vmatprep.subr.mxu0 0.0
      %2639 = vmatpush1.msra.mxu0 0.0
      %2640 = vmatprep.subr.mxu0 0.0
      %2641 = vmatpush1.msra.mxu0 0.0
      %2642 = vmatprep.subr.mxu0 0.0
      %2643 = vmatpush1.msra.mxu0 0.0
      %2644 = vmatprep.subr.mxu0 0.0
      %2645 = vmatpush1.msra.mxu0 0.0
      %2646 = vmatprep.mubr.f32.mxu0 0.0
      %2647 = vmatmul.mubr.f32.gmra.mrb[0].mxu0 %v2559
      %v2648 = vpop.f32.mrb[0].mxu0
      %v2649 = vadd.f32 0.0, %v2648
      %v2650 = vpop.f32.mrb[0].mxu0
      %2651 = vmatprep.mubr.f32.mxu0 0.0
      %2652 = vmatmul.mubr.f32.gmra.mrb[0].mxu0 %v2562
      %v2653 = vpop.f32.mrb[0].mxu0
      %v2654 = vadd.f32 0.0, %v2653
      %v2655 = vpop.f32.mrb[0].mxu0
      %2656 = vmatprep.mubr.f32.mxu0 0.0
      %2657 = vmatmul.mubr.f32.gmra.mrb[0].mxu0 %v2565
      %v2658 = vpop.f32.mrb[0].mxu0
      %v2659 = vadd.f32 0.0, %v2658
      %v2660 = vpop.f32.mrb[0].mxu0
      %2661 = vmatprep.mubr.f32.mxu0 0.0
      %2662 = vmatmul.mubr.f32.gmra.mrb[0].mxu0 %v2568
      %v2663 = vpop.f32.mrb[0].mxu0
      %v2664 = vadd.f32 0.0, %v2663
      %v2665 = vpop.f32.mrb[0].mxu0
      %2666 = vmatprep.mubr.f32.mxu0 0.0
      %2667 = vmatmul.mubr.f32.gmra.mrb[0].mxu0 %v2571
      %v2668 = vpop.f32.mrb[0].mxu0
      %v2669 = vadd.f32 0.0, %v2668
      %v2670 = vpop.f32.mrb[0].mxu0
      %2671 = vmatprep.mubr.f32.mxu0 0.0
      %2672 = vmatmul.mubr.f32.gmra.mrb[0].mxu0 %v2574
      %v2673 = vpop.f32.mrb[0].mxu0
      %v2674 = vadd.f32 0.0, %v2673
      %v2675 = vpop.f32.mrb[0].mxu0
      %2676 = vmatprep.mubr.f32.mxu0 0.0
      %2677 = vmatmul.mubr.f32.gmra.mrb[0].mxu0 %v2577
      %v2678 = vpop.f32.mrb[0].mxu0
      %v2679 = vadd.f32 0.0, %v2678
      %v2680 = vpop.f32.mrb[0].mxu0
      %2681 = vmatprep.mubr.f32.mxu0 0.0
      %2682 = vmatmul.mubr.f32.gmra.mrb[0].mxu0 %v2580
      %v2683 = vpop.f32.mrb[0].mxu0
      %v2684 = vadd.f32 0.0, %v2683
      %v2685 = vpop.f32.mrb[0].mxu0
      %2686 = vdwg.mxu0
      %v2687 = vadd.f32 %v2434, %v2649
      %v2688 = vadd.f32 %v2435, %v2654
      %v2689 = vadd.f32 %v2436, %v2659
      %v2690 = vadd.f32 %v2437, %v2664
      %v2691 = vadd.f32 %v2438, %v2669
      %v2692 = vadd.f32 %v2439, %v2674
      %v2693 = vadd.f32 %v2440, %v2679
      %v2694 = vadd.f32 %v2441, %v2684
      %s2695 = scalar_lea.vmem %s1, 448
      %v2696 = vld [vmem:[%s2695] sm:$0xff]
      %v2697 = vld [vmem:[%s2695 + $0x8] sm:$0xff]
      %v2698 = vld [vmem:[%s2695 + $0x10] sm:$0xff]
      %v2699 = vld [vmem:[%s2695 + $0x18] sm:$0xff]
      %v2700 = vld [vmem:[%s2695 + $0x20] sm:$0xff]
      %v2701 = vld [vmem:[%s2695 + $0x28] sm:$0xff]
      %v2702 = vld [vmem:[%s2695 + $0x30] sm:$0xff]
      %v2703 = vld [vmem:[%s2695 + $0x38] sm:$0xff]
      %s2704 = scalar_lea.vmem %s5, 56
      %v2705 = vld [vmem:[%s2704] sm:$0xff]
      %2706 = vmatprep.subr.mxu0 0.0
      %2707 = vmatpush1.msra.mxu0 %v2705
      %2708 = vmatprep.subr.mxu0 0.0
      %2709 = vmatpush1.msra.mxu0 0.0
      %2710 = vmatprep.subr.mxu0 0.0
      %2711 = vmatpush1.msra.mxu0 0.0
      %2712 = vmatprep.subr.mxu0 0.0
      %2713 = vmatpush1.msra.mxu0 0.0
      %2714 = vmatprep.subr.mxu0 0.0
      %2715 = vmatpush1.msra.mxu0 0.0
      %2716 = vmatprep.subr.mxu0 0.0
      %2717 = vmatpush1.msra.mxu0 0.0
      %2718 = vmatprep.subr.mxu0 0.0
      %2719 = vmatpush1.msra.mxu0 0.0
      %2720 = vmatprep.subr.mxu0 0.0
      %2721 = vmatpush1.msra.mxu0 0.0
      %2722 = vmatprep.subr.mxu0 0.0
      %2723 = vmatpush1.msra.mxu0 0.0
      %2724 = vmatprep.subr.mxu0 0.0
      %2725 = vmatpush1.msra.mxu0 0.0
      %2726 = vmatprep.subr.mxu0 0.0
      %2727 = vmatpush1.msra.mxu0 0.0
      %2728 = vmatprep.subr.mxu0 0.0
      %2729 = vmatpush1.msra.mxu0 0.0
      %2730 = vmatprep.subr.mxu0 0.0
      %2731 = vmatpush1.msra.mxu0 0.0
      %2732 = vmatprep.subr.mxu0 0.0
      %2733 = vmatpush1.msra.mxu0 0.0
      %2734 = vmatprep.subr.mxu0 0.0
      %2735 = vmatpush1.msra.mxu0 0.0
      %2736 = vmatprep.subr.mxu0 0.0
      %2737 = vmatpush1.msra.mxu0 0.0
      %2738 = vmatprep.subr.mxu0 0.0
      %2739 = vmatpush1.msra.mxu0 0.0
      %2740 = vmatprep.subr.mxu0 0.0
      %2741 = vmatpush1.msra.mxu0 0.0
      %2742 = vmatprep.subr.mxu0 0.0
      %2743 = vmatpush1.msra.mxu0 0.0
      %2744 = vmatprep.subr.mxu0 0.0
      %2745 = vmatpush1.msra.mxu0 0.0
      %2746 = vmatprep.subr.mxu0 0.0
      %2747 = vmatpush1.msra.mxu0 0.0
      %2748 = vmatprep.subr.mxu0 0.0
      %2749 = vmatpush1.msra.mxu0 0.0
      %2750 = vmatprep.subr.mxu0 0.0
      %2751 = vmatpush1.msra.mxu0 0.0
      %2752 = vmatprep.subr.mxu0 0.0
      %2753 = vmatpush1.msra.mxu0 0.0
      %2754 = vmatprep.subr.mxu0 0.0
      %2755 = vmatpush1.msra.mxu0 0.0
      %2756 = vmatprep.subr.mxu0 0.0
      %2757 = vmatpush1.msra.mxu0 0.0
      %2758 = vmatprep.subr.mxu0 0.0
      %2759 = vmatpush1.msra.mxu0 0.0
      %2760 = vmatprep.subr.mxu0 0.0
      %2761 = vmatpush1.msra.mxu0 0.0
      %2762 = vmatprep.subr.mxu0 0.0
      %2763 = vmatpush1.msra.mxu0 0.0
      %2764 = vmatprep.subr.mxu0 0.0
      %2765 = vmatpush1.msra.mxu0 0.0
      %2766 = vmatprep.subr.mxu0 0.0
      %2767 = vmatpush1.msra.mxu0 0.0
      %2768 = vmatprep.subr.mxu0 0.0
      %2769 = vmatpush1.msra.mxu0 0.0
      %2770 = vmatprep.mubr.f32.mxu0 0.0
      %2771 = vmatmul.mubr.f32.gmra.mrb[0].mxu0 %v927
      %v2772 = vpop.f32.mrb[0].mxu0
      %v2773 = vadd.f32 0.0, %v2772
      %v2774 = vpop.f32.mrb[0].mxu0
      %2775 = vmatprep.mubr.f32.mxu0 0.0
      %2776 = vmatmul.mubr.f32.gmra.mrb[0].mxu0 %v930
      %v2777 = vpop.f32.mrb[0].mxu0
      %v2778 = vadd.f32 0.0, %v2777
      %v2779 = vpop.f32.mrb[0].mxu0
      %2780 = vmatprep.mubr.f32.mxu0 0.0
      %2781 = vmatmul.mubr.f32.gmra.mrb[0].mxu0 %v933
      %v2782 = vpop.f32.mrb[0].mxu0
      %v2783 = vadd.f32 0.0, %v2782
      %v2784 = vpop.f32.mrb[0].mxu0
      %2785 = vmatprep.mubr.f32.mxu0 0.0
      %2786 = vmatmul.mubr.f32.gmra.mrb[0].mxu0 %v936
      %v2787 = vpop.f32.mrb[0].mxu0
      %v2788 = vadd.f32 0.0, %v2787
      %v2789 = vpop.f32.mrb[0].mxu0
      %2790 = vmatprep.mubr.f32.mxu0 0.0
      %2791 = vmatmul.mubr.f32.gmra.mrb[0].mxu0 %v939
      %v2792 = vpop.f32.mrb[0].mxu0
      %v2793 = vadd.f32 0.0, %v2792
      %v2794 = vpop.f32.mrb[0].mxu0
      %2795 = vmatprep.mubr.f32.mxu0 0.0
      %2796 = vmatmul.mubr.f32.gmra.mrb[0].mxu0 %v942
      %v2797 = vpop.f32.mrb[0].mxu0
      %v2798 = vadd.f32 0.0, %v2797
      %v2799 = vpop.f32.mrb[0].mxu0
      %2800 = vmatprep.mubr.f32.mxu0 0.0
      %2801 = vmatmul.mubr.f32.gmra.mrb[0].mxu0 %v945
      %v2802 = vpop.f32.mrb[0].mxu0
      %v2803 = vadd.f32 0.0, %v2802
      %v2804 = vpop.f32.mrb[0].mxu0
      %2805 = vmatprep.mubr.f32.mxu0 0.0
      %2806 = vmatmul.mubr.f32.gmra.mrb[0].mxu0 %v948
      %v2807 = vpop.f32.mrb[0].mxu0
      %v2808 = vadd.f32 0.0, %v2807
      %v2809 = vpop.f32.mrb[0].mxu0
      %2810 = vdwg.mxu0
      %v2812 = vsel %vm1171, %v2696, 0
      %v2815 = vsel %vm1171, %v2697, 0
      %v2818 = vsel %vm1171, %v2698, 0
      %v2821 = vsel %vm1171, %v2699, 0
      %v2824 = vsel %vm1171, %v2700, 0
      %v2827 = vsel %vm1171, %v2701, 0
      %v2830 = vsel %vm1171, %v2702, 0
      %v2833 = vsel %vm1171, %v2703, 0
      %2835 = vmatprep.subr.mxu0 0.0
      %2836 = vmatpush1.msra.mxu0 %v2773
      %2837 = vmatprep.subr.mxu0 0.0
      %2838 = vmatpush1.msra.mxu0 %v2778
      %2839 = vmatprep.subr.mxu0 0.0
      %2840 = vmatpush1.msra.mxu0 %v2783
      %2841 = vmatprep.subr.mxu0 0.0
      %2842 = vmatpush1.msra.mxu0 %v2788
      %2843 = vmatprep.subr.mxu0 0.0
      %2844 = vmatpush1.msra.mxu0 %v2793
      %2845 = vmatprep.subr.mxu0 0.0
      %2846 = vmatpush1.msra.mxu0 %v2798
      %2847 = vmatprep.subr.mxu0 0.0
      %2848 = vmatpush1.msra.mxu0 %v2803
      %2849 = vmatprep.subr.mxu0 0.0
      %2850 = vmatpush1.msra.mxu0 %v2808
      %2851 = vmatprep.subr.mxu0 0.0
      %2852 = vmatpush1.msra.mxu0 0.0
      %2853 = vmatprep.subr.mxu0 0.0
      %2854 = vmatpush1.msra.mxu0 0.0
      %2855 = vmatprep.subr.mxu0 0.0
      %2856 = vmatpush1.msra.mxu0 0.0
      %2857 = vmatprep.subr.mxu0 0.0
      %2858 = vmatpush1.msra.mxu0 0.0
      %2859 = vmatprep.subr.mxu0 0.0
      %2860 = vmatpush1.msra.mxu0 0.0
      %2861 = vmatprep.subr.mxu0 0.0
      %2862 = vmatpush1.msra.mxu0 0.0
      %2863 = vmatprep.subr.mxu0 0.0
      %2864 = vmatpush1.msra.mxu0 0.0
      %2865 = vmatprep.subr.mxu0 0.0
      %2866 = vmatpush1.msra.mxu0 0.0
      %2867 = vmatprep.subr.mxu0 0.0
      %2868 = vmatpush1.msra.mxu0 0.0
      %2869 = vmatprep.subr.mxu0 0.0
      %2870 = vmatpush1.msra.mxu0 0.0
      %2871 = vmatprep.subr.mxu0 0.0
      %2872 = vmatpush1.msra.mxu0 0.0
      %2873 = vmatprep.subr.mxu0 0.0
      %2874 = vmatpush1.msra.mxu0 0.0
      %2875 = vmatprep.subr.mxu0 0.0
      %2876 = vmatpush1.msra.mxu0 0.0
      %2877 = vmatprep.subr.mxu0 0.0
      %2878 = vmatpush1.msra.mxu0 0.0
      %2879 = vmatprep.subr.mxu0 0.0
      %2880 = vmatpush1.msra.mxu0 0.0
      %2881 = vmatprep.subr.mxu0 0.0
      %2882 = vmatpush1.msra.mxu0 0.0
      %2883 = vmatprep.subr.mxu0 0.0
      %2884 = vmatpush1.msra.mxu0 0.0
      %2885 = vmatprep.subr.mxu0 0.0
      %2886 = vmatpush1.msra.mxu0 0.0
      %2887 = vmatprep.subr.mxu0 0.0
      %2888 = vmatpush1.msra.mxu0 0.0
      %2889 = vmatprep.subr.mxu0 0.0
      %2890 = vmatpush1.msra.mxu0 0.0
      %2891 = vmatprep.subr.mxu0 0.0
      %2892 = vmatpush1.msra.mxu0 0.0
      %2893 = vmatprep.subr.mxu0 0.0
      %2894 = vmatpush1.msra.mxu0 0.0
      %2895 = vmatprep.subr.mxu0 0.0
      %2896 = vmatpush1.msra.mxu0 0.0
      %2897 = vmatprep.subr.mxu0 0.0
      %2898 = vmatpush1.msra.mxu0 0.0
      %2899 = vmatprep.mubr.f32.mxu0 0.0
      %2900 = vmatmul.mubr.f32.gmra.mrb[0].mxu0 %v2812
      %v2901 = vpop.f32.mrb[0].mxu0
      %v2902 = vadd.f32 0.0, %v2901
      %v2903 = vpop.f32.mrb[0].mxu0
      %2904 = vmatprep.mubr.f32.mxu0 0.0
      %2905 = vmatmul.mubr.f32.gmra.mrb[0].mxu0 %v2815
      %v2906 = vpop.f32.mrb[0].mxu0
      %v2907 = vadd.f32 0.0, %v2906
      %v2908 = vpop.f32.mrb[0].mxu0
      %2909 = vmatprep.mubr.f32.mxu0 0.0
      %2910 = vmatmul.mubr.f32.gmra.mrb[0].mxu0 %v2818
      %v2911 = vpop.f32.mrb[0].mxu0
      %v2912 = vadd.f32 0.0, %v2911
      %v2913 = vpop.f32.mrb[0].mxu0
      %2914 = vmatprep.mubr.f32.mxu0 0.0
      %2915 = vmatmul.mubr.f32.gmra.mrb[0].mxu0 %v2821
      %v2916 = vpop.f32.mrb[0].mxu0
      %v2917 = vadd.f32 0.0, %v2916
      %v2918 = vpop.f32.mrb[0].mxu0
      %2919 = vmatprep.mubr.f32.mxu0 0.0
      %2920 = vmatmul.mubr.f32.gmra.mrb[0].mxu0 %v2824
      %v2921 = vpop.f32.mrb[0].mxu0
      %v2922 = vadd.f32 0.0, %v2921
      %v2923 = vpop.f32.mrb[0].mxu0
      %2924 = vmatprep.mubr.f32.mxu0 0.0
      %2925 = vmatmul.mubr.f32.gmra.mrb[0].mxu0 %v2827
      %v2926 = vpop.f32.mrb[0].mxu0
      %v2927 = vadd.f32 0.0, %v2926
      %v2928 = vpop.f32.mrb[0].mxu0
      %2929 = vmatprep.mubr.f32.mxu0 0.0
      %2930 = vmatmul.mubr.f32.gmra.mrb[0].mxu0 %v2830
      %v2931 = vpop.f32.mrb[0].mxu0
      %v2932 = vadd.f32 0.0, %v2931
      %v2933 = vpop.f32.mrb[0].mxu0
      %2934 = vmatprep.mubr.f32.mxu0 0.0
      %2935 = vmatmul.mubr.f32.gmra.mrb[0].mxu0 %v2833
      %v2936 = vpop.f32.mrb[0].mxu0
      %v2937 = vadd.f32 0.0, %v2936
      %v2938 = vpop.f32.mrb[0].mxu0
      %2939 = vdwg.mxu0
      %v2940 = vadd.f32 %v2687, %v2902
      %v2941 = vadd.f32 %v2688, %v2907
      %v2942 = vadd.f32 %v2689, %v2912
      %v2943 = vadd.f32 %v2690, %v2917
      %v2944 = vadd.f32 %v2691, %v2922
      %v2945 = vadd.f32 %v2692, %v2927
      %v2946 = vadd.f32 %v2693, %v2932
      %v2947 = vadd.f32 %v2694, %v2937
      %s2948 = scalar_lea.vmem %s1, 512
      %v2949 = vld [vmem:[%s2948] sm:$0xff]
      %v2950 = vld [vmem:[%s2948 + $0x8] sm:$0xff]
      %v2951 = vld [vmem:[%s2948 + $0x10] sm:$0xff]
      %v2952 = vld [vmem:[%s2948 + $0x18] sm:$0xff]
      %v2953 = vld [vmem:[%s2948 + $0x20] sm:$0xff]
      %v2954 = vld [vmem:[%s2948 + $0x28] sm:$0xff]
      %v2955 = vld [vmem:[%s2948 + $0x30] sm:$0xff]
      %v2956 = vld [vmem:[%s2948 + $0x38] sm:$0xff]
      %s2957 = scalar_lea.vmem %s5, 64
      %v2958 = vld [vmem:[%s2957] sm:$0xff]
      %2959 = vmatprep.subr.mxu0 0.0
      %2960 = vmatpush1.msra.mxu0 %v2958
      %2961 = vmatprep.subr.mxu0 0.0
      %2962 = vmatpush1.msra.mxu0 0.0
      %2963 = vmatprep.subr.mxu0 0.0
      %2964 = vmatpush1.msra.mxu0 0.0
      %2965 = vmatprep.subr.mxu0 0.0
      %2966 = vmatpush1.msra.mxu0 0.0
      %2967 = vmatprep.subr.mxu0 0.0
      %2968 = vmatpush1.msra.mxu0 0.0
      %2969 = vmatprep.subr.mxu0 0.0
      %2970 = vmatpush1.msra.mxu0 0.0
      %2971 = vmatprep.subr.mxu0 0.0
      %2972 = vmatpush1.msra.mxu0 0.0
      %2973 = vmatprep.subr.mxu0 0.0
      %2974 = vmatpush1.msra.mxu0 0.0
      %2975 = vmatprep.subr.mxu0 0.0
      %2976 = vmatpush1.msra.mxu0 0.0
      %2977 = vmatprep.subr.mxu0 0.0
      %2978 = vmatpush1.msra.mxu0 0.0
      %2979 = vmatprep.subr.mxu0 0.0
      %2980 = vmatpush1.msra.mxu0 0.0
      %2981 = vmatprep.subr.mxu0 0.0
      %2982 = vmatpush1.msra.mxu0 0.0
      %2983 = vmatprep.subr.mxu0 0.0
      %2984 = vmatpush1.msra.mxu0 0.0
      %2985 = vmatprep.subr.mxu0 0.0
      %2986 = vmatpush1.msra.mxu0 0.0
      %2987 = vmatprep.subr.mxu0 0.0
      %2988 = vmatpush1.msra.mxu0 0.0
      %2989 = vmatprep.subr.mxu0 0.0
      %2990 = vmatpush1.msra.mxu0 0.0
      %2991 = vmatprep.subr.mxu0 0.0
      %2992 = vmatpush1.msra.mxu0 0.0
      %2993 = vmatprep.subr.mxu0 0.0
      %2994 = vmatpush1.msra.mxu0 0.0
      %2995 = vmatprep.subr.mxu0 0.0
      %2996 = vmatpush1.msra.mxu0 0.0
      %2997 = vmatprep.subr.mxu0 0.0
      %2998 = vmatpush1.msra.mxu0 0.0
      %2999 = vmatprep.subr.mxu0 0.0
      %3000 = vmatpush1.msra.mxu0 0.0
      %3001 = vmatprep.subr.mxu0 0.0
      %3002 = vmatpush1.msra.mxu0 0.0
      %3003 = vmatprep.subr.mxu0 0.0
      %3004 = vmatpush1.msra.mxu0 0.0
      %3005 = vmatprep.subr.mxu0 0.0
      %3006 = vmatpush1.msra.mxu0 0.0
      %3007 = vmatprep.subr.mxu0 0.0
      %3008 = vmatpush1.msra.mxu0 0.0
      %3009 = vmatprep.subr.mxu0 0.0
      %3010 = vmatpush1.msra.mxu0 0.0
      %3011 = vmatprep.subr.mxu0 0.0
      %3012 = vmatpush1.msra.mxu0 0.0
      %3013 = vmatprep.subr.mxu0 0.0
      %3014 = vmatpush1.msra.mxu0 0.0
      %3015 = vmatprep.subr.mxu0 0.0
      %3016 = vmatpush1.msra.mxu0 0.0
      %3017 = vmatprep.subr.mxu0 0.0
      %3018 = vmatpush1.msra.mxu0 0.0
      %3019 = vmatprep.subr.mxu0 0.0
      %3020 = vmatpush1.msra.mxu0 0.0
      %3021 = vmatprep.subr.mxu0 0.0
      %3022 = vmatpush1.msra.mxu0 0.0
      %3023 = vmatprep.mubr.f32.mxu0 0.0
      %3024 = vmatmul.mubr.f32.gmra.mrb[0].mxu0 %v927
      %v3025 = vpop.f32.mrb[0].mxu0
      %v3026 = vadd.f32 0.0, %v3025
      %v3027 = vpop.f32.mrb[0].mxu0
      %3028 = vmatprep.mubr.f32.mxu0 0.0
      %3029 = vmatmul.mubr.f32.gmra.mrb[0].mxu0 %v930
      %v3030 = vpop.f32.mrb[0].mxu0
      %v3031 = vadd.f32 0.0, %v3030
      %v3032 = vpop.f32.mrb[0].mxu0
      %3033 = vmatprep.mubr.f32.mxu0 0.0
      %3034 = vmatmul.mubr.f32.gmra.mrb[0].mxu0 %v933
      %v3035 = vpop.f32.mrb[0].mxu0
      %v3036 = vadd.f32 0.0, %v3035
      %v3037 = vpop.f32.mrb[0].mxu0
      %3038 = vmatprep.mubr.f32.mxu0 0.0
      %3039 = vmatmul.mubr.f32.gmra.mrb[0].mxu0 %v936
      %v3040 = vpop.f32.mrb[0].mxu0
      %v3041 = vadd.f32 0.0, %v3040
      %v3042 = vpop.f32.mrb[0].mxu0
      %3043 = vmatprep.mubr.f32.mxu0 0.0
      %3044 = vmatmul.mubr.f32.gmra.mrb[0].mxu0 %v939
      %v3045 = vpop.f32.mrb[0].mxu0
      %v3046 = vadd.f32 0.0, %v3045
      %v3047 = vpop.f32.mrb[0].mxu0
      %3048 = vmatprep.mubr.f32.mxu0 0.0
      %3049 = vmatmul.mubr.f32.gmra.mrb[0].mxu0 %v942
      %v3050 = vpop.f32.mrb[0].mxu0
      %v3051 = vadd.f32 0.0, %v3050
      %v3052 = vpop.f32.mrb[0].mxu0
      %3053 = vmatprep.mubr.f32.mxu0 0.0
      %3054 = vmatmul.mubr.f32.gmra.mrb[0].mxu0 %v945
      %v3055 = vpop.f32.mrb[0].mxu0
      %v3056 = vadd.f32 0.0, %v3055
      %v3057 = vpop.f32.mrb[0].mxu0
      %3058 = vmatprep.mubr.f32.mxu0 0.0
      %3059 = vmatmul.mubr.f32.gmra.mrb[0].mxu0 %v948
      %v3060 = vpop.f32.mrb[0].mxu0
      %v3061 = vadd.f32 0.0, %v3060
      %v3062 = vpop.f32.mrb[0].mxu0
      %3063 = vdwg.mxu0
      %v3065 = vsel %vm1171, %v2949, 0
      %v3068 = vsel %vm1171, %v2950, 0
      %v3071 = vsel %vm1171, %v2951, 0
      %v3074 = vsel %vm1171, %v2952, 0
      %v3077 = vsel %vm1171, %v2953, 0
      %v3080 = vsel %vm1171, %v2954, 0
      %v3083 = vsel %vm1171, %v2955, 0
      %v3086 = vsel %vm1171, %v2956, 0
      %3088 = vmatprep.subr.mxu0 0.0
      %3089 = vmatpush1.msra.mxu0 %v3026
      %3090 = vmatprep.subr.mxu0 0.0
      %3091 = vmatpush1.msra.mxu0 %v3031
      %3092 = vmatprep.subr.mxu0 0.0
      %3093 = vmatpush1.msra.mxu0 %v3036
      %3094 = vmatprep.subr.mxu0 0.0
      %3095 = vmatpush1.msra.mxu0 %v3041
      %3096 = vmatprep.subr.mxu0 0.0
      %3097 = vmatpush1.msra.mxu0 %v3046
      %3098 = vmatprep.subr.mxu0 0.0
      %3099 = vmatpush1.msra.mxu0 %v3051
      %3100 = vmatprep.subr.mxu0 0.0
      %3101 = vmatpush1.msra.mxu0 %v3056
      %3102 = vmatprep.subr.mxu0 0.0
      %3103 = vmatpush1.msra.mxu0 %v3061
      %3104 = vmatprep.subr.mxu0 0.0
      %3105 = vmatpush1.msra.mxu0 0.0
      %3106 = vmatprep.subr.mxu0 0.0
      %3107 = vmatpush1.msra.mxu0 0.0
      %3108 = vmatprep.subr.mxu0 0.0
      %3109 = vmatpush1.msra.mxu0 0.0
      %3110 = vmatprep.subr.mxu0 0.0
      %3111 = vmatpush1.msra.mxu0 0.0
      %3112 = vmatprep.subr.mxu0 0.0
      %3113 = vmatpush1.msra.mxu0 0.0
      %3114 = vmatprep.subr.mxu0 0.0
      %3115 = vmatpush1.msra.mxu0 0.0
      %3116 = vmatprep.subr.mxu0 0.0
      %3117 = vmatpush1.msra.mxu0 0.0
      %3118 = vmatprep.subr.mxu0 0.0
      %3119 = vmatpush1.msra.mxu0 0.0
      %3120 = vmatprep.subr.mxu0 0.0
      %3121 = vmatpush1.msra.mxu0 0.0
      %3122 = vmatprep.subr.mxu0 0.0
      %3123 = vmatpush1.msra.mxu0 0.0
      %3124 = vmatprep.subr.mxu0 0.0
      %3125 = vmatpush1.msra.mxu0 0.0
      %3126 = vmatprep.subr.mxu0 0.0
      %3127 = vmatpush1.msra.mxu0 0.0
      %3128 = vmatprep.subr.mxu0 0.0
      %3129 = vmatpush1.msra.mxu0 0.0
      %3130 = vmatprep.subr.mxu0 0.0
      %3131 = vmatpush1.msra.mxu0 0.0
      %3132 = vmatprep.subr.mxu0 0.0
      %3133 = vmatpush1.msra.mxu0 0.0
      %3134 = vmatprep.subr.mxu0 0.0
      %3135 = vmatpush1.msra.mxu0 0.0
      %3136 = vmatprep.subr.mxu0 0.0
      %3137 = vmatpush1.msra.mxu0 0.0
      %3138 = vmatprep.subr.mxu0 0.0
      %3139 = vmatpush1.msra.mxu0 0.0
      %3140 = vmatprep.subr.mxu0 0.0
      %3141 = vmatpush1.msra.mxu0 0.0
      %3142 = vmatprep.subr.mxu0 0.0
      %3143 = vmatpush1.msra.mxu0 0.0
      %3144 = vmatprep.subr.mxu0 0.0
      %3145 = vmatpush1.msra.mxu0 0.0
      %3146 = vmatprep.subr.mxu0 0.0
      %3147 = vmatpush1.msra.mxu0 0.0
      %3148 = vmatprep.subr.mxu0 0.0
      %3149 = vmatpush1.msra.mxu0 0.0
      %3150 = vmatprep.subr.mxu0 0.0
      %3151 = vmatpush1.msra.mxu0 0.0
      %3152 = vmatprep.mubr.f32.mxu0 0.0
      %3153 = vmatmul.mubr.f32.gmra.mrb[0].mxu0 %v3065
      %v3154 = vpop.f32.mrb[0].mxu0
      %v3155 = vadd.f32 0.0, %v3154
      %v3156 = vpop.f32.mrb[0].mxu0
      %3157 = vmatprep.mubr.f32.mxu0 0.0
      %3158 = vmatmul.mubr.f32.gmra.mrb[0].mxu0 %v3068
      %v3159 = vpop.f32.mrb[0].mxu0
      %v3160 = vadd.f32 0.0, %v3159
      %v3161 = vpop.f32.mrb[0].mxu0
      %3162 = vmatprep.mubr.f32.mxu0 0.0
      %3163 = vmatmul.mubr.f32.gmra.mrb[0].mxu0 %v3071
      %v3164 = vpop.f32.mrb[0].mxu0
      %v3165 = vadd.f32 0.0, %v3164
      %v3166 = vpop.f32.mrb[0].mxu0
      %3167 = vmatprep.mubr.f32.mxu0 0.0
      %3168 = vmatmul.mubr.f32.gmra.mrb[0].mxu0 %v3074
      %v3169 = vpop.f32.mrb[0].mxu0
      %v3170 = vadd.f32 0.0, %v3169
      %v3171 = vpop.f32.mrb[0].mxu0
      %3172 = vmatprep.mubr.f32.mxu0 0.0
      %3173 = vmatmul.mubr.f32.gmra.mrb[0].mxu0 %v3077
      %v3174 = vpop.f32.mrb[0].mxu0
      %v3175 = vadd.f32 0.0, %v3174
      %v3176 = vpop.f32.mrb[0].mxu0
      %3177 = vmatprep.mubr.f32.mxu0 0.0
      %3178 = vmatmul.mubr.f32.gmra.mrb[0].mxu0 %v3080
      %v3179 = vpop.f32.mrb[0].mxu0
      %v3180 = vadd.f32 0.0, %v3179
      %v3181 = vpop.f32.mrb[0].mxu0
      %3182 = vmatprep.mubr.f32.mxu0 0.0
      %3183 = vmatmul.mubr.f32.gmra.mrb[0].mxu0 %v3083
      %v3184 = vpop.f32.mrb[0].mxu0
      %v3185 = vadd.f32 0.0, %v3184
      %v3186 = vpop.f32.mrb[0].mxu0
      %3187 = vmatprep.mubr.f32.mxu0 0.0
      %3188 = vmatmul.mubr.f32.gmra.mrb[0].mxu0 %v3086
      %v3189 = vpop.f32.mrb[0].mxu0
      %v3190 = vadd.f32 0.0, %v3189
      %v3191 = vpop.f32.mrb[0].mxu0
      %3192 = vdwg.mxu0
      %v3193 = vadd.f32 %v2940, %v3155
      %v3194 = vadd.f32 %v2941, %v3160
      %v3195 = vadd.f32 %v2942, %v3165
      %v3196 = vadd.f32 %v2943, %v3170
      %v3197 = vadd.f32 %v2944, %v3175
      %v3198 = vadd.f32 %v2945, %v3180
      %v3199 = vadd.f32 %v2946, %v3185
      %v3200 = vadd.f32 %v2947, %v3190
      %v3201 = vld [vmem:[%s6] sm:$0x1]
      %v3203 = vlaneseq
      %v3204 = vshrl.u32 %v3203, 7
      %v3205 = vsub.s32 0, %v3204
      %v3206 = vrot.slane %v3201, %v3205
      %v3208 = vadd.f32 %v3193, %v3206
      %v3209 = vadd.f32 %v3194, %v3206
      %v3210 = vadd.f32 %v3195, %v3206
      %v3211 = vadd.f32 %v3196, %v3206
      %v3212 = vadd.f32 %v3197, %v3206
      %v3213 = vadd.f32 %v3198, %v3206
      %v3214 = vadd.f32 %v3199, %v3206
      %v3215 = vadd.f32 %v3200, %v3206
      %v3216 = vxor.u32 %v3208, 2147483648
      %v3217 = vxor.u32 %v3209, 2147483648
      %v3218 = vxor.u32 %v3210, 2147483648
      %v3219 = vxor.u32 %v3211, 2147483648
      %v3220 = vxor.u32 %v3212, 2147483648
      %v3221 = vxor.u32 %v3213, 2147483648
      %v3222 = vxor.u32 %v3214, 2147483648
      %v3223 = vxor.u32 %v3215, 2147483648
      %v3224 = vmul.f32 %v3216, 1.442695
      %v3225 = vpow.pop %v3224
      %v3226 = vmul.f32 %v3217, 1.442695
      %v3227 = vpow.pop %v3226
      %v3228 = vmul.f32 %v3218, 1.442695
      %v3229 = vpow.pop %v3228
      %v3230 = vmul.f32 %v3219, 1.442695
      %v3231 = vpow.pop %v3230
      %v3232 = vmul.f32 %v3220, 1.442695
      %v3233 = vpow.pop %v3232
      %v3234 = vmul.f32 %v3221, 1.442695
      %v3235 = vpow.pop %v3234
      %v3236 = vmul.f32 %v3222, 1.442695
      %v3237 = vpow.pop %v3236
      %v3238 = vmul.f32 %v3223, 1.442695
      %v3239 = vpow.pop %v3238
      %v3240 = vadd.f32 %v3225, 1.0
      %v3241 = vadd.f32 %v3227, 1.0
      %v3242 = vadd.f32 %v3229, 1.0
      %v3243 = vadd.f32 %v3231, 1.0
      %v3244 = vadd.f32 %v3233, 1.0
      %v3245 = vadd.f32 %v3235, 1.0
      %v3246 = vadd.f32 %v3237, 1.0
      %v3247 = vadd.f32 %v3239, 1.0
      %v3248 = vrcp.pop %v3240
      %v3249 = vmul.f32 1.0, %v3248
      %v3250 = vrcp.pop %v3241
      %v3251 = vmul.f32 1.0, %v3250
      %v3252 = vrcp.pop %v3242
      %v3253 = vmul.f32 1.0, %v3252
      %v3254 = vrcp.pop %v3243
      %v3255 = vmul.f32 1.0, %v3254
      %v3256 = vrcp.pop %v3244
      %v3257 = vmul.f32 1.0, %v3256
      %v3258 = vrcp.pop %v3245
      %v3259 = vmul.f32 1.0, %v3258
      %v3260 = vrcp.pop %v3246
      %v3261 = vmul.f32 1.0, %v3260
      %v3262 = vrcp.pop %v3247
      %v3263 = vmul.f32 1.0, %v3262
      %v3264 = vmul.f32 %v3208, %v3249
      %v3265 = vmul.f32 %v3209, %v3251
      %v3266 = vmul.f32 %v3210, %v3253
      %v3267 = vmul.f32 %v3211, %v3255
      %v3268 = vmul.f32 %v3212, %v3257
      %v3269 = vmul.f32 %v3213, %v3259
      %v3270 = vmul.f32 %v3214, %v3261
      %v3271 = vmul.f32 %v3215, %v3263
      %v3272 = vld [vmem:[%s7] sm:$0xff]
      %v3273 = vld [vmem:[%s7 + $0x8] sm:$0xff]
      %v3274 = vld [vmem:[%s8] sm:$0x1]
      %v3276 = vlaneseq
      %v3277 = vshrl.u32 %v3276, 7
      %v3278 = vsub.s32 0, %v3277
      %v3279 = vrot.slane %v3274, %v3278
      %vm3281 = vcmask 130048
      %v3283 = vsel %vm3281, %v3264, 0
      %v3286 = vsel %vm3281, %v3265, 0
      %v3289 = vsel %vm3281, %v3266, 0
      %v3292 = vsel %vm3281, %v3267, 0
      %v3295 = vsel %vm3281, %v3268, 0
      %v3298 = vsel %vm3281, %v3269, 0
      %v3301 = vsel %vm3281, %v3270, 0
      %v3304 = vsel %vm3281, %v3271, 0
      %3306 = vmatprep.subr.mxu0 0.0
      %3307 = vmatpush1.msra.mxu0 %v3272
      %3308 = vmatprep.subr.mxu0 0.0
      %3309 = vmatpush1.msra.mxu0 %v3273
      %3310 = vmatprep.subr.mxu0 0.0
      %3311 = vmatpush1.msra.mxu0 0.0
      %3312 = vmatprep.subr.mxu0 0.0
      %3313 = vmatpush1.msra.mxu0 0.0
      %3314 = vmatprep.subr.mxu0 0.0
      %3315 = vmatpush1.msra.mxu0 0.0
      %3316 = vmatprep.subr.mxu0 0.0
      %3317 = vmatpush1.msra.mxu0 0.0
      %3318 = vmatprep.subr.mxu0 0.0
      %3319 = vmatpush1.msra.mxu0 0.0
      %3320 = vmatprep.subr.mxu0 0.0
      %3321 = vmatpush1.msra.mxu0 0.0
      %3322 = vmatprep.subr.mxu0 0.0
      %3323 = vmatpush1.msra.mxu0 0.0
      %3324 = vmatprep.subr.mxu0 0.0
      %3325 = vmatpush1.msra.mxu0 0.0
      %3326 = vmatprep.subr.mxu0 0.0
      %3327 = vmatpush1.msra.mxu0 0.0
      %3328 = vmatprep.subr.mxu0 0.0
      %3329 = vmatpush1.msra.mxu0 0.0
      %3330 = vmatprep.subr.mxu0 0.0
      %3331 = vmatpush1.msra.mxu0 0.0
      %3332 = vmatprep.subr.mxu0 0.0
      %3333 = vmatpush1.msra.mxu0 0.0
      %3334 = vmatprep.subr.mxu0 0.0
      %3335 = vmatpush1.msra.mxu0 0.0
      %3336 = vmatprep.subr.mxu0 0.0
      %3337 = vmatpush1.msra.mxu0 0.0
      %3338 = vmatprep.subr.mxu0 0.0
      %3339 = vmatpush1.msra.mxu0 0.0
      %3340 = vmatprep.subr.mxu0 0.0
      %3341 = vmatpush1.msra.mxu0 0.0
      %3342 = vmatprep.subr.mxu0 0.0
      %3343 = vmatpush1.msra.mxu0 0.0
      %3344 = vmatprep.subr.mxu0 0.0
      %3345 = vmatpush1.msra.mxu0 0.0
      %3346 = vmatprep.subr.mxu0 0.0
      %3347 = vmatpush1.msra.mxu0 0.0
      %3348 = vmatprep.subr.mxu0 0.0
      %3349 = vmatpush1.msra.mxu0 0.0
      %3350 = vmatprep.subr.mxu0 0.0
      %3351 = vmatpush1.msra.mxu0 0.0
      %3352 = vmatprep.subr.mxu0 0.0
      %3353 = vmatpush1.msra.mxu0 0.0
      %3354 = vmatprep.subr.mxu0 0.0
      %3355 = vmatpush1.msra.mxu0 0.0
      %3356 = vmatprep.subr.mxu0 0.0
      %3357 = vmatpush1.msra.mxu0 0.0
      %3358 = vmatprep.subr.mxu0 0.0
      %3359 = vmatpush1.msra.mxu0 0.0
      %3360 = vmatprep.subr.mxu0 0.0
      %3361 = vmatpush1.msra.mxu0 0.0
      %3362 = vmatprep.subr.mxu0 0.0
      %3363 = vmatpush1.msra.mxu0 0.0
      %3364 = vmatprep.subr.mxu0 0.0
      %3365 = vmatpush1.msra.mxu0 0.0
      %3366 = vmatprep.subr.mxu0 0.0
      %3367 = vmatpush1.msra.mxu0 0.0
      %3368 = vmatprep.subr.mxu0 0.0
      %3369 = vmatpush1.msra.mxu0 0.0
      %3370 = vmatprep.mubr.f32.mxu0 0.0
      %3371 = vmatmul.mubr.f32.gmra.mrb[0].mxu0 %v3283
      %v3372 = vpop.f32.mrb[0].mxu0
      %v3373 = vadd.f32 %v3279, %v3372
      %v3374 = vpop.f32.mrb[0].mxu0
      %3375 = vmatprep.mubr.f32.mxu0 0.0
      %3376 = vmatmul.mubr.f32.gmra.mrb[0].mxu0 %v3286
      %v3377 = vpop.f32.mrb[0].mxu0
      %v3378 = vadd.f32 %v3279, %v3377
      %v3379 = vpop.f32.mrb[0].mxu0
      %3380 = vmatprep.mubr.f32.mxu0 0.0
      %3381 = vmatmul.mubr.f32.gmra.mrb[0].mxu0 %v3289
      %v3382 = vpop.f32.mrb[0].mxu0
      %v3383 = vadd.f32 %v3279, %v3382
      %v3384 = vpop.f32.mrb[0].mxu0
      %3385 = vmatprep.mubr.f32.mxu0 0.0
      %3386 = vmatmul.mubr.f32.gmra.mrb[0].mxu0 %v3292
      %v3387 = vpop.f32.mrb[0].mxu0
      %v3388 = vadd.f32 %v3279, %v3387
      %v3389 = vpop.f32.mrb[0].mxu0
      %3390 = vmatprep.mubr.f32.mxu0 0.0
      %3391 = vmatmul.mubr.f32.gmra.mrb[0].mxu0 %v3295
      %v3392 = vpop.f32.mrb[0].mxu0
      %v3393 = vadd.f32 %v3279, %v3392
      %v3394 = vpop.f32.mrb[0].mxu0
      %3395 = vmatprep.mubr.f32.mxu0 0.0
      %3396 = vmatmul.mubr.f32.gmra.mrb[0].mxu0 %v3298
      %v3397 = vpop.f32.mrb[0].mxu0
      %v3398 = vadd.f32 %v3279, %v3397
      %v3399 = vpop.f32.mrb[0].mxu0
      %3400 = vmatprep.mubr.f32.mxu0 0.0
      %3401 = vmatmul.mubr.f32.gmra.mrb[0].mxu0 %v3301
      %v3402 = vpop.f32.mrb[0].mxu0
      %v3403 = vadd.f32 %v3279, %v3402
      %v3404 = vpop.f32.mrb[0].mxu0
      %3405 = vmatprep.mubr.f32.mxu0 0.0
      %3406 = vmatmul.mubr.f32.gmra.mrb[0].mxu0 %v3304
      %v3407 = vpop.f32.mrb[0].mxu0
      %v3408 = vadd.f32 %v3279, %v3407
      %v3409 = vpop.f32.mrb[0].mxu0
      %3410 = vdwg.mxu0
      %v3411 = vadd.f32 %v3373, %v908
      %v3412 = vadd.f32 %v3378, %v909
      %v3413 = vadd.f32 %v3383, %v910
      %v3414 = vadd.f32 %v3388, %v911
      %v3415 = vadd.f32 %v3393, %v912
      %v3416 = vadd.f32 %v3398, %v913
      %v3417 = vadd.f32 %v3403, %v914
      %v3418 = vadd.f32 %v3408, %v915
      %v3419 = vld [vmem:[%s9] sm:$0xff]
      %v3420 = vld [vmem:[%s10] sm:$0x1]
      %v3422 = vlaneseq
      %v3423 = vshrl.u32 %v3422, 7
      %v3424 = vsub.s32 0, %v3423
      %v3425 = vrot.slane %v3420, %v3424
      %v3428 = vsel %vm925, %v3411, 0
      %v3431 = vsel %vm925, %v3412, 0
      %v3434 = vsel %vm925, %v3413, 0
      %v3437 = vsel %vm925, %v3414, 0
      %v3440 = vsel %vm925, %v3415, 0
      %v3443 = vsel %vm925, %v3416, 0
      %v3446 = vsel %vm925, %v3417, 0
      %v3449 = vsel %vm925, %v3418, 0
      %3451 = vmatprep.subr.mxu0 0.0
      %3452 = vmatpush1.msra.mxu0 %v3419
      %3453 = vmatprep.subr.mxu0 0.0
      %3454 = vmatpush1.msra.mxu0 0.0
      %3455 = vmatprep.subr.mxu0 0.0
      %3456 = vmatpush1.msra.mxu0 0.0
      %3457 = vmatprep.subr.mxu0 0.0
      %3458 = vmatpush1.msra.mxu0 0.0
      %3459 = vmatprep.subr.mxu0 0.0
      %3460 = vmatpush1.msra.mxu0 0.0
      %3461 = vmatprep.subr.mxu0 0.0
      %3462 = vmatpush1.msra.mxu0 0.0
      %3463 = vmatprep.subr.mxu0 0.0
      %3464 = vmatpush1.msra.mxu0 0.0
      %3465 = vmatprep.subr.mxu0 0.0
      %3466 = vmatpush1.msra.mxu0 0.0
      %3467 = vmatprep.subr.mxu0 0.0
      %3468 = vmatpush1.msra.mxu0 0.0
      %3469 = vmatprep.subr.mxu0 0.0
      %3470 = vmatpush1.msra.mxu0 0.0
      %3471 = vmatprep.subr.mxu0 0.0
      %3472 = vmatpush1.msra.mxu0 0.0
      %3473 = vmatprep.subr.mxu0 0.0
      %3474 = vmatpush1.msra.mxu0 0.0
      %3475 = vmatprep.subr.mxu0 0.0
      %3476 = vmatpush1.msra.mxu0 0.0
      %3477 = vmatprep.subr.mxu0 0.0
      %3478 = vmatpush1.msra.mxu0 0.0
      %3479 = vmatprep.subr.mxu0 0.0
      %3480 = vmatpush1.msra.mxu0 0.0
      %3481 = vmatprep.subr.mxu0 0.0
      %3482 = vmatpush1.msra.mxu0 0.0
      %3483 = vmatprep.subr.mxu0 0.0
      %3484 = vmatpush1.msra.mxu0 0.0
      %3485 = vmatprep.subr.mxu0 0.0
      %3486 = vmatpush1.msra.mxu0 0.0
      %3487 = vmatprep.subr.mxu0 0.0
      %3488 = vmatpush1.msra.mxu0 0.0
      %3489 = vmatprep.subr.mxu0 0.0
      %3490 = vmatpush1.msra.mxu0 0.0
      %3491 = vmatprep.subr.mxu0 0.0
      %3492 = vmatpush1.msra.mxu0 0.0
      %3493 = vmatprep.subr.mxu0 0.0
      %3494 = vmatpush1.msra.mxu0 0.0
      %3495 = vmatprep.subr.mxu0 0.0
      %3496 = vmatpush1.msra.mxu0 0.0
      %3497 = vmatprep.subr.mxu0 0.0
      %3498 = vmatpush1.msra.mxu0 0.0
      %3499 = vmatprep.subr.mxu0 0.0
      %3500 = vmatpush1.msra.mxu0 0.0
      %3501 = vmatprep.subr.mxu0 0.0
      %3502 = vmatpush1.msra.mxu0 0.0
      %3503 = vmatprep.subr.mxu0 0.0
      %3504 = vmatpush1.msra.mxu0 0.0
      %3505 = vmatprep.subr.mxu0 0.0
      %3506 = vmatpush1.msra.mxu0 0.0
      %3507 = vmatprep.subr.mxu0 0.0
      %3508 = vmatpush1.msra.mxu0 0.0
      %3509 = vmatprep.subr.mxu0 0.0
      %3510 = vmatpush1.msra.mxu0 0.0
      %3511 = vmatprep.subr.mxu0 0.0
      %3512 = vmatpush1.msra.mxu0 0.0
      %3513 = vmatprep.subr.mxu0 0.0
      %3514 = vmatpush1.msra.mxu0 0.0
      %3515 = vmatprep.mubr.f32.mxu0 0.0
      %3516 = vmatmul.mubr.f32.gmra.mrb[0].mxu0 %v3428
      %v3517 = vpop.f32.mrb[0].mxu0
      %v3518 = vadd.f32 %v3425, %v3517
      %v3519 = vpop.f32.mrb[0].mxu0
      %3520 = vmatprep.mubr.f32.mxu0 0.0
      %3521 = vmatmul.mubr.f32.gmra.mrb[0].mxu0 %v3431
      %v3522 = vpop.f32.mrb[0].mxu0
      %v3523 = vadd.f32 %v3425, %v3522
      %v3524 = vpop.f32.mrb[0].mxu0
      %3525 = vmatprep.mubr.f32.mxu0 0.0
      %3526 = vmatmul.mubr.f32.gmra.mrb[0].mxu0 %v3434
      %v3527 = vpop.f32.mrb[0].mxu0
      %v3528 = vadd.f32 %v3425, %v3527
      %v3529 = vpop.f32.mrb[0].mxu0
      %3530 = vmatprep.mubr.f32.mxu0 0.0
      %3531 = vmatmul.mubr.f32.gmra.mrb[0].mxu0 %v3437
      %v3532 = vpop.f32.mrb[0].mxu0
      %v3533 = vadd.f32 %v3425, %v3532
      %v3534 = vpop.f32.mrb[0].mxu0
      %3535 = vmatprep.mubr.f32.mxu0 0.0
      %3536 = vmatmul.mubr.f32.gmra.mrb[0].mxu0 %v3440
      %v3537 = vpop.f32.mrb[0].mxu0
      %v3538 = vadd.f32 %v3425, %v3537
      %v3539 = vpop.f32.mrb[0].mxu0
      %3540 = vmatprep.mubr.f32.mxu0 0.0
      %3541 = vmatmul.mubr.f32.gmra.mrb[0].mxu0 %v3443
      %v3542 = vpop.f32.mrb[0].mxu0
      %v3543 = vadd.f32 %v3425, %v3542
      %v3544 = vpop.f32.mrb[0].mxu0
      %3545 = vmatprep.mubr.f32.mxu0 0.0
      %3546 = vmatmul.mubr.f32.gmra.mrb[0].mxu0 %v3446
      %v3547 = vpop.f32.mrb[0].mxu0
      %v3548 = vadd.f32 %v3425, %v3547
      %v3549 = vpop.f32.mrb[0].mxu0
      %3550 = vmatprep.mubr.f32.mxu0 0.0
      %3551 = vmatmul.mubr.f32.gmra.mrb[0].mxu0 %v3449
      %v3552 = vpop.f32.mrb[0].mxu0
      %v3553 = vadd.f32 %v3425, %v3552
      %v3554 = vpop.f32.mrb[0].mxu0
      %3555 = vdwg.mxu0
      %v3556 = vxor.u32 %v3518, 2147483648
      %v3557 = vxor.u32 %v3523, 2147483648
      %v3558 = vxor.u32 %v3528, 2147483648
      %v3559 = vxor.u32 %v3533, 2147483648
      %v3560 = vxor.u32 %v3538, 2147483648
      %v3561 = vxor.u32 %v3543, 2147483648
      %v3562 = vxor.u32 %v3548, 2147483648
      %v3563 = vxor.u32 %v3553, 2147483648
      %v3564 = vmul.f32 %v3556, 1.442695
      %v3565 = vpow.pop %v3564
      %v3566 = vmul.f32 %v3557, 1.442695
      %v3567 = vpow.pop %v3566
      %v3568 = vmul.f32 %v3558, 1.442695
      %v3569 = vpow.pop %v3568
      %v3570 = vmul.f32 %v3559, 1.442695
      %v3571 = vpow.pop %v3570
      %v3572 = vmul.f32 %v3560, 1.442695
      %v3573 = vpow.pop %v3572
      %v3574 = vmul.f32 %v3561, 1.442695
      %v3575 = vpow.pop %v3574
      %v3576 = vmul.f32 %v3562, 1.442695
      %v3577 = vpow.pop %v3576
      %v3578 = vmul.f32 %v3563, 1.442695
      %v3579 = vpow.pop %v3578
      %v3580 = vadd.f32 %v3565, 1.0
      %v3581 = vadd.f32 %v3567, 1.0
      %v3582 = vadd.f32 %v3569, 1.0
      %v3583 = vadd.f32 %v3571, 1.0
      %v3584 = vadd.f32 %v3573, 1.0
      %v3585 = vadd.f32 %v3575, 1.0
      %v3586 = vadd.f32 %v3577, 1.0
      %v3587 = vadd.f32 %v3579, 1.0
      %v3588 = vrcp.pop %v3580
      %v3589 = vmul.f32 1.0, %v3588
      %v3590 = vrcp.pop %v3581
      %v3591 = vmul.f32 1.0, %v3590
      %v3592 = vrcp.pop %v3582
      %v3593 = vmul.f32 1.0, %v3592
      %v3594 = vrcp.pop %v3583
      %v3595 = vmul.f32 1.0, %v3594
      %v3596 = vrcp.pop %v3584
      %v3597 = vmul.f32 1.0, %v3596
      %v3598 = vrcp.pop %v3585
      %v3599 = vmul.f32 1.0, %v3598
      %v3600 = vrcp.pop %v3586
      %v3601 = vmul.f32 1.0, %v3600
      %v3602 = vrcp.pop %v3587
      %v3603 = vmul.f32 1.0, %v3602
      %v3604 = vmul.f32 %v3518, %v3589
      %v3605 = vmul.f32 %v3523, %v3591
      %v3606 = vmul.f32 %v3528, %v3593
      %v3607 = vmul.f32 %v3533, %v3595
      %v3608 = vmul.f32 %v3538, %v3597
      %v3609 = vmul.f32 %v3543, %v3599
      %v3610 = vmul.f32 %v3548, %v3601
      %v3611 = vmul.f32 %v3553, %v3603
      %v3612 = vld [vmem:[%s2] sm:$0xff]
      %v3613 = vld [vmem:[%s2 + $0x8] sm:$0xff]
      %v3614 = vld [vmem:[%s11] sm:$0x1]
      %v3615 = vlaneseq
      %v3616 = vshrl.u32 %v3615, 7
      %v3617 = vsub.s32 0, %v3616
      %v3618 = vrot.slane %v3614, %v3617
      %v3619 = vmul.f32 %v3604, %v3618
      %v3620 = vmul.f32 %v3605, %v3618
      %v3621 = vmul.f32 %v3606, %v3618
      %v3622 = vmul.f32 %v3607, %v3618
      %v3623 = vmul.f32 %v3608, %v3618
      %v3624 = vmul.f32 %v3609, %v3618
      %v3625 = vmul.f32 %v3610, %v3618
      %v3626 = vmul.f32 %v3611, %v3618
      %s3627 = scalar_lea.vmem %s2, 16
      %v3628 = vld [vmem:[%s3627] sm:$0xff]
      %v3629 = vld [vmem:[%s3627 + $0x8] sm:$0xff]
      %v3630 = vld [vmem:[%s11 + $0x1] sm:$0x1]
      %v3631 = vlaneseq
      %v3632 = vshrl.u32 %v3631, 7
      %v3633 = vsub.s32 0, %v3632
      %v3634 = vrot.slane %v3630, %v3633
      %v3635 = vmul.f32 %v3604, %v3634
      %v3636 = vmul.f32 %v3605, %v3634
      %v3637 = vmul.f32 %v3606, %v3634
      %v3638 = vmul.f32 %v3607, %v3634
      %v3639 = vmul.f32 %v3608, %v3634
      %v3640 = vmul.f32 %v3609, %v3634
      %v3641 = vmul.f32 %v3610, %v3634
      %v3642 = vmul.f32 %v3611, %v3634
      %v3644 = vsel %vm1171, %v3628, 0
      %v3647 = vsel %vm1171, %v3629, 0
      %3649 = vmatprep.subr.mxu0 0.0
      %3650 = vmatpush1.msra.mxu0 %v3635
      %3651 = vmatprep.subr.mxu0 0.0
      %3652 = vmatpush1.msra.mxu0 %v3636
      %3653 = vmatprep.subr.mxu0 0.0
      %3654 = vmatpush1.msra.mxu0 %v3637
      %3655 = vmatprep.subr.mxu0 0.0
      %3656 = vmatpush1.msra.mxu0 %v3638
      %3657 = vmatprep.subr.mxu0 0.0
      %3658 = vmatpush1.msra.mxu0 %v3639
      %3659 = vmatprep.subr.mxu0 0.0
      %3660 = vmatpush1.msra.mxu0 %v3640
      %3661 = vmatprep.subr.mxu0 0.0
      %3662 = vmatpush1.msra.mxu0 %v3641
      %3663 = vmatprep.subr.mxu0 0.0
      %3664 = vmatpush1.msra.mxu0 %v3642
      %3665 = vmatprep.subr.mxu0 0.0
      %3666 = vmatpush1.msra.mxu0 0.0
      %3667 = vmatprep.subr.mxu0 0.0
      %3668 = vmatpush1.msra.mxu0 0.0
      %3669 = vmatprep.subr.mxu0 0.0
      %3670 = vmatpush1.msra.mxu0 0.0
      %3671 = vmatprep.subr.mxu0 0.0
      %3672 = vmatpush1.msra.mxu0 0.0
      %3673 = vmatprep.subr.mxu0 0.0
      %3674 = vmatpush1.msra.mxu0 0.0
      %3675 = vmatprep.subr.mxu0 0.0
      %3676 = vmatpush1.msra.mxu0 0.0
      %3677 = vmatprep.subr.mxu0 0.0
      %3678 = vmatpush1.msra.mxu0 0.0
      %3679 = vmatprep.subr.mxu0 0.0
      %3680 = vmatpush1.msra.mxu0 0.0
      %3681 = vmatprep.subr.mxu0 0.0
      %3682 = vmatpush1.msra.mxu0 0.0
      %3683 = vmatprep.subr.mxu0 0.0
      %3684 = vmatpush1.msra.mxu0 0.0
      %3685 = vmatprep.subr.mxu0 0.0
      %3686 = vmatpush1.msra.mxu0 0.0
      %3687 = vmatprep.subr.mxu0 0.0
      %3688 = vmatpush1.msra.mxu0 0.0
      %3689 = vmatprep.subr.mxu0 0.0
      %3690 = vmatpush1.msra.mxu0 0.0
      %3691 = vmatprep.subr.mxu0 0.0
      %3692 = vmatpush1.msra.mxu0 0.0
      %3693 = vmatprep.subr.mxu0 0.0
      %3694 = vmatpush1.msra.mxu0 0.0
      %3695 = vmatprep.subr.mxu0 0.0
      %3696 = vmatpush1.msra.mxu0 0.0
      %3697 = vmatprep.subr.mxu0 0.0
      %3698 = vmatpush1.msra.mxu0 0.0
      %3699 = vmatprep.subr.mxu0 0.0
      %3700 = vmatpush1.msra.mxu0 0.0
      %3701 = vmatprep.subr.mxu0 0.0
      %3702 = vmatpush1.msra.mxu0 0.0
      %3703 = vmatprep.subr.mxu0 0.0
      %3704 = vmatpush1.msra.mxu0 0.0
      %3705 = vmatprep.subr.mxu0 0.0
      %3706 = vmatpush1.msra.mxu0 0.0
      %3707 = vmatprep.subr.mxu0 0.0
      %3708 = vmatpush1.msra.mxu0 0.0
      %3709 = vmatprep.subr.mxu0 0.0
      %3710 = vmatpush1.msra.mxu0 0.0
      %3711 = vmatprep.subr.mxu0 0.0
      %3712 = vmatpush1.msra.mxu0 0.0
      %3713 = vmatprep.mubr.f32.mxu0 0.0
      %3714 = vmatmul.mubr.f32.gmra.mrb[0].mxu0 %v3644
      %v3715 = vpop.f32.mrb[0].mxu0
      %v3716 = vadd.f32 0.0, %v3715
      %v3717 = vpop.f32.mrb[0].mxu0
      %3718 = vmatprep.mubr.f32.mxu0 0.0
      %3719 = vmatmul.mubr.f32.gmra.mrb[0].mxu0 %v3647
      %v3720 = vpop.f32.mrb[0].mxu0
      %v3721 = vadd.f32 0.0, %v3720
      %v3722 = vpop.f32.mrb[0].mxu0
      %3723 = vdwg.mxu0
      %v3725 = vsel %vm1171, %v3612, 0
      %v3728 = vsel %vm1171, %v3613, 0
      %3730 = vmatprep.subr.mxu0 0.0
      %3731 = vmatpush1.msra.mxu0 %v3619
      %3732 = vmatprep.subr.mxu0 0.0
      %3733 = vmatpush1.msra.mxu0 %v3620
      %3734 = vmatprep.subr.mxu0 0.0
      %3735 = vmatpush1.msra.mxu0 %v3621
      %3736 = vmatprep.subr.mxu0 0.0
      %3737 = vmatpush1.msra.mxu0 %v3622
      %3738 = vmatprep.subr.mxu0 0.0
      %3739 = vmatpush1.msra.mxu0 %v3623
      %3740 = vmatprep.subr.mxu0 0.0
      %3741 = vmatpush1.msra.mxu0 %v3624
      %3742 = vmatprep.subr.mxu0 0.0
      %3743 = vmatpush1.msra.mxu0 %v3625
      %3744 = vmatprep.subr.mxu0 0.0
      %3745 = vmatpush1.msra.mxu0 %v3626
      %3746 = vmatprep.subr.mxu0 0.0
      %3747 = vmatpush1.msra.mxu0 0.0
      %3748 = vmatprep.subr.mxu0 0.0
      %3749 = vmatpush1.msra.mxu0 0.0
      %3750 = vmatprep.subr.mxu0 0.0
      %3751 = vmatpush1.msra.mxu0 0.0
      %3752 = vmatprep.subr.mxu0 0.0
      %3753 = vmatpush1.msra.mxu0 0.0
      %3754 = vmatprep.subr.mxu0 0.0
      %3755 = vmatpush1.msra.mxu0 0.0
      %3756 = vmatprep.subr.mxu0 0.0
      %3757 = vmatpush1.msra.mxu0 0.0
      %3758 = vmatprep.subr.mxu0 0.0
      %3759 = vmatpush1.msra.mxu0 0.0
      %3760 = vmatprep.subr.mxu0 0.0
      %3761 = vmatpush1.msra.mxu0 0.0
      %3762 = vmatprep.subr.mxu0 0.0
      %3763 = vmatpush1.msra.mxu0 0.0
      %3764 = vmatprep.subr.mxu0 0.0
      %3765 = vmatpush1.msra.mxu0 0.0
      %3766 = vmatprep.subr.mxu0 0.0
      %3767 = vmatpush1.msra.mxu0 0.0
      %3768 = vmatprep.subr.mxu0 0.0
      %3769 = vmatpush1.msra.mxu0 0.0
      %3770 = vmatprep.subr.mxu0 0.0
      %3771 = vmatpush1.msra.mxu0 0.0
      %3772 = vmatprep.subr.mxu0 0.0
      %3773 = vmatpush1.msra.mxu0 0.0
      %3774 = vmatprep.subr.mxu0 0.0
      %3775 = vmatpush1.msra.mxu0 0.0
      %3776 = vmatprep.subr.mxu0 0.0
      %3777 = vmatpush1.msra.mxu0 0.0
      %3778 = vmatprep.subr.mxu0 0.0
      %3779 = vmatpush1.msra.mxu0 0.0
      %3780 = vmatprep.subr.mxu0 0.0
      %3781 = vmatpush1.msra.mxu0 0.0
      %3782 = vmatprep.subr.mxu0 0.0
      %3783 = vmatpush1.msra.mxu0 0.0
      %3784 = vmatprep.subr.mxu0 0.0
      %3785 = vmatpush1.msra.mxu0 0.0
      %3786 = vmatprep.subr.mxu0 0.0
      %3787 = vmatpush1.msra.mxu0 0.0
      %3788 = vmatprep.subr.mxu0 0.0
      %3789 = vmatpush1.msra.mxu0 0.0
      %3790 = vmatprep.subr.mxu0 0.0
      %3791 = vmatpush1.msra.mxu0 0.0
      %3792 = vmatprep.subr.mxu0 0.0
      %3793 = vmatpush1.msra.mxu0 0.0
      %3794 = vmatprep.mubr.f32.mxu0 0.0
      %3795 = vmatmul.mubr.f32.gmra.mrb[0].mxu0 %v3725
      %v3796 = vpop.f32.mrb[0].mxu0
      %v3797 = vadd.f32 %v3716, %v3796
      %v3798 = vpop.f32.mrb[0].mxu0
      %3799 = vmatprep.mubr.f32.mxu0 0.0
      %3800 = vmatmul.mubr.f32.gmra.mrb[0].mxu0 %v3728
      %v3801 = vpop.f32.mrb[0].mxu0
      %v3802 = vadd.f32 %v3721, %v3801
      %v3803 = vpop.f32.mrb[0].mxu0
      %3804 = vdwg.mxu0
      %s3805 = scalar_lea.vmem %s2, 32
      %v3806 = vld [vmem:[%s3805] sm:$0xff]
      %v3807 = vld [vmem:[%s3805 + $0x8] sm:$0xff]
      %v3808 = vld [vmem:[%s11 + $0x2] sm:$0x1]
      %v3809 = vlaneseq
      %v3810 = vshrl.u32 %v3809, 7
      %v3811 = vsub.s32 0, %v3810
      %v3812 = vrot.slane %v3808, %v3811
      %v3813 = vmul.f32 %v3604, %v3812
      %v3814 = vmul.f32 %v3605, %v3812
      %v3815 = vmul.f32 %v3606, %v3812
      %v3816 = vmul.f32 %v3607, %v3812
      %v3817 = vmul.f32 %v3608, %v3812
      %v3818 = vmul.f32 %v3609, %v3812
      %v3819 = vmul.f32 %v3610, %v3812
      %v3820 = vmul.f32 %v3611, %v3812
      %v3822 = vsel %vm1171, %v3806, 0
      %v3825 = vsel %vm1171, %v3807, 0
      %3827 = vmatprep.subr.mxu0 0.0
      %3828 = vmatpush1.msra.mxu0 %v3813
      %3829 = vmatprep.subr.mxu0 0.0
      %3830 = vmatpush1.msra.mxu0 %v3814
      %3831 = vmatprep.subr.mxu0 0.0
      %3832 = vmatpush1.msra.mxu0 %v3815
      %3833 = vmatprep.subr.mxu0 0.0
      %3834 = vmatpush1.msra.mxu0 %v3816
      %3835 = vmatprep.subr.mxu0 0.0
      %3836 = vmatpush1.msra.mxu0 %v3817
      %3837 = vmatprep.subr.mxu0 0.0
      %3838 = vmatpush1.msra.mxu0 %v3818
      %3839 = vmatprep.subr.mxu0 0.0
      %3840 = vmatpush1.msra.mxu0 %v3819
      %3841 = vmatprep.subr.mxu0 0.0
      %3842 = vmatpush1.msra.mxu0 %v3820
      %3843 = vmatprep.subr.mxu0 0.0
      %3844 = vmatpush1.msra.mxu0 0.0
      %3845 = vmatprep.subr.mxu0 0.0
      %3846 = vmatpush1.msra.mxu0 0.0
      %3847 = vmatprep.subr.mxu0 0.0
      %3848 = vmatpush1.msra.mxu0 0.0
      %3849 = vmatprep.subr.mxu0 0.0
      %3850 = vmatpush1.msra.mxu0 0.0
      %3851 = vmatprep.subr.mxu0 0.0
      %3852 = vmatpush1.msra.mxu0 0.0
      %3853 = vmatprep.subr.mxu0 0.0
      %3854 = vmatpush1.msra.mxu0 0.0
      %3855 = vmatprep.subr.mxu0 0.0
      %3856 = vmatpush1.msra.mxu0 0.0
      %3857 = vmatprep.subr.mxu0 0.0
      %3858 = vmatpush1.msra.mxu0 0.0
      %3859 = vmatprep.subr.mxu0 0.0
      %3860 = vmatpush1.msra.mxu0 0.0
      %3861 = vmatprep.subr.mxu0 0.0
      %3862 = vmatpush1.msra.mxu0 0.0
      %3863 = vmatprep.subr.mxu0 0.0
      %3864 = vmatpush1.msra.mxu0 0.0
      %3865 = vmatprep.subr.mxu0 0.0
      %3866 = vmatpush1.msra.mxu0 0.0
      %3867 = vmatprep.subr.mxu0 0.0
      %3868 = vmatpush1.msra.mxu0 0.0
      %3869 = vmatprep.subr.mxu0 0.0
      %3870 = vmatpush1.msra.mxu0 0.0
      %3871 = vmatprep.subr.mxu0 0.0
      %3872 = vmatpush1.msra.mxu0 0.0
      %3873 = vmatprep.subr.mxu0 0.0
      %3874 = vmatpush1.msra.mxu0 0.0
      %3875 = vmatprep.subr.mxu0 0.0
      %3876 = vmatpush1.msra.mxu0 0.0
      %3877 = vmatprep.subr.mxu0 0.0
      %3878 = vmatpush1.msra.mxu0 0.0
      %3879 = vmatprep.subr.mxu0 0.0
      %3880 = vmatpush1.msra.mxu0 0.0
      %3881 = vmatprep.subr.mxu0 0.0
      %3882 = vmatpush1.msra.mxu0 0.0
      %3883 = vmatprep.subr.mxu0 0.0
      %3884 = vmatpush1.msra.mxu0 0.0
      %3885 = vmatprep.subr.mxu0 0.0
      %3886 = vmatpush1.msra.mxu0 0.0
      %3887 = vmatprep.subr.mxu0 0.0
      %3888 = vmatpush1.msra.mxu0 0.0
      %3889 = vmatprep.subr.mxu0 0.0
      %3890 = vmatpush1.msra.mxu0 0.0
      %3891 = vmatprep.mubr.f32.mxu0 0.0
      %3892 = vmatmul.mubr.f32.gmra.mrb[0].mxu0 %v3822
      %v3893 = vpop.f32.mrb[0].mxu0
      %v3894 = vadd.f32 0.0, %v3893
      %v3895 = vpop.f32.mrb[0].mxu0
      %3896 = vmatprep.mubr.f32.mxu0 0.0
      %3897 = vmatmul.mubr.f32.gmra.mrb[0].mxu0 %v3825
      %v3898 = vpop.f32.mrb[0].mxu0
      %v3899 = vadd.f32 0.0, %v3898
      %v3900 = vpop.f32.mrb[0].mxu0
      %3901 = vdwg.mxu0
      %v3902 = vadd.f32 %v3797, %v3894
      %v3903 = vadd.f32 %v3802, %v3899
      %s3904 = scalar_lea.vmem %s2, 48
      %v3905 = vld [vmem:[%s3904] sm:$0xff]
      %v3906 = vld [vmem:[%s3904 + $0x8] sm:$0xff]
      %v3907 = vld [vmem:[%s11 + $0x3] sm:$0x1]
      %v3908 = vlaneseq
      %v3909 = vshrl.u32 %v3908, 7
      %v3910 = vsub.s32 0, %v3909
      %v3911 = vrot.slane %v3907, %v3910
      %v3912 = vmul.f32 %v3604, %v3911
      %v3913 = vmul.f32 %v3605, %v3911
      %v3914 = vmul.f32 %v3606, %v3911
      %v3915 = vmul.f32 %v3607, %v3911
      %v3916 = vmul.f32 %v3608, %v3911
      %v3917 = vmul.f32 %v3609, %v3911
      %v3918 = vmul.f32 %v3610, %v3911
      %v3919 = vmul.f32 %v3611, %v3911
      %v3921 = vsel %vm1171, %v3905, 0
      %v3924 = vsel %vm1171, %v3906, 0
      %3926 = vmatprep.subr.mxu0 0.0
      %3927 = vmatpush1.msra.mxu0 %v3912
      %3928 = vmatprep.subr.mxu0 0.0
      %3929 = vmatpush1.msra.mxu0 %v3913
      %3930 = vmatprep.subr.mxu0 0.0
      %3931 = vmatpush1.msra.mxu0 %v3914
      %3932 = vmatprep.subr.mxu0 0.0
      %3933 = vmatpush1.msra.mxu0 %v3915
      %3934 = vmatprep.subr.mxu0 0.0
      %3935 = vmatpush1.msra.mxu0 %v3916
      %3936 = vmatprep.subr.mxu0 0.0
      %3937 = vmatpush1.msra.mxu0 %v3917
      %3938 = vmatprep.subr.mxu0 0.0
      %3939 = vmatpush1.msra.mxu0 %v3918
      %3940 = vmatprep.subr.mxu0 0.0
      %3941 = vmatpush1.msra.mxu0 %v3919
      %3942 = vmatprep.subr.mxu0 0.0
      %3943 = vmatpush1.msra.mxu0 0.0
      %3944 = vmatprep.subr.mxu0 0.0
      %3945 = vmatpush1.msra.mxu0 0.0
      %3946 = vmatprep.subr.mxu0 0.0
      %3947 = vmatpush1.msra.mxu0 0.0
      %3948 = vmatprep.subr.mxu0 0.0
      %3949 = vmatpush1.msra.mxu0 0.0
      %3950 = vmatprep.subr.mxu0 0.0
      %3951 = vmatpush1.msra.mxu0 0.0
      %3952 = vmatprep.subr.mxu0 0.0
      %3953 = vmatpush1.msra.mxu0 0.0
      %3954 = vmatprep.subr.mxu0 0.0
      %3955 = vmatpush1.msra.mxu0 0.0
      %3956 = vmatprep.subr.mxu0 0.0
      %3957 = vmatpush1.msra.mxu0 0.0
      %3958 = vmatprep.subr.mxu0 0.0
      %3959 = vmatpush1.msra.mxu0 0.0
      %3960 = vmatprep.subr.mxu0 0.0
      %3961 = vmatpush1.msra.mxu0 0.0
      %3962 = vmatprep.subr.mxu0 0.0
      %3963 = vmatpush1.msra.mxu0 0.0
      %3964 = vmatprep.subr.mxu0 0.0
      %3965 = vmatpush1.msra.mxu0 0.0
      %3966 = vmatprep.subr.mxu0 0.0
      %3967 = vmatpush1.msra.mxu0 0.0
      %3968 = vmatprep.subr.mxu0 0.0
      %3969 = vmatpush1.msra.mxu0 0.0
      %3970 = vmatprep.subr.mxu0 0.0
      %3971 = vmatpush1.msra.mxu0 0.0
      %3972 = vmatprep.subr.mxu0 0.0
      %3973 = vmatpush1.msra.mxu0 0.0
      %3974 = vmatprep.subr.mxu0 0.0
      %3975 = vmatpush1.msra.mxu0 0.0
      %3976 = vmatprep.subr.mxu0 0.0
      %3977 = vmatpush1.msra.mxu0 0.0
      %3978 = vmatprep.subr.mxu0 0.0
      %3979 = vmatpush1.msra.mxu0 0.0
      %3980 = vmatprep.subr.mxu0 0.0
      %3981 = vmatpush1.msra.mxu0 0.0
      %3982 = vmatprep.subr.mxu0 0.0
      %3983 = vmatpush1.msra.mxu0 0.0
      %3984 = vmatprep.subr.mxu0 0.0
      %3985 = vmatpush1.msra.mxu0 0.0
      %3986 = vmatprep.subr.mxu0 0.0
      %3987 = vmatpush1.msra.mxu0 0.0
      %3988 = vmatprep.subr.mxu0 0.0
      %3989 = vmatpush1.msra.mxu0 0.0
      %3990 = vmatprep.mubr.f32.mxu0 0.0
      %3991 = vmatmul.mubr.f32.gmra.mrb[0].mxu0 %v3921
      %v3992 = vpop.f32.mrb[0].mxu0
      %v3993 = vadd.f32 0.0, %v3992
      %v3994 = vpop.f32.mrb[0].mxu0
      %3995 = vmatprep.mubr.f32.mxu0 0.0
      %3996 = vmatmul.mubr.f32.gmra.mrb[0].mxu0 %v3924
      %v3997 = vpop.f32.mrb[0].mxu0
      %v3998 = vadd.f32 0.0, %v3997
      %v3999 = vpop.f32.mrb[0].mxu0
      %4000 = vdwg.mxu0
      %v4001 = vadd.f32 %v3902, %v3993
      %v4002 = vadd.f32 %v3903, %v3998
      %s4003 = scalar_lea.vmem %s2, 64
      %v4004 = vld [vmem:[%s4003] sm:$0xff]
      %v4005 = vld [vmem:[%s4003 + $0x8] sm:$0xff]
      %v4006 = vld [vmem:[%s11 + $0x4] sm:$0x1]
      %v4007 = vlaneseq
      %v4008 = vshrl.u32 %v4007, 7
      %v4009 = vsub.s32 0, %v4008
      %v4010 = vrot.slane %v4006, %v4009
      %v4011 = vmul.f32 %v3604, %v4010
      %v4012 = vmul.f32 %v3605, %v4010
      %v4013 = vmul.f32 %v3606, %v4010
      %v4014 = vmul.f32 %v3607, %v4010
      %v4015 = vmul.f32 %v3608, %v4010
      %v4016 = vmul.f32 %v3609, %v4010
      %v4017 = vmul.f32 %v3610, %v4010
      %v4018 = vmul.f32 %v3611, %v4010
      %v4020 = vsel %vm1171, %v4004, 0
      %v4023 = vsel %vm1171, %v4005, 0
      %4025 = vmatprep.subr.mxu0 0.0
      %4026 = vmatpush1.msra.mxu0 %v4011
      %4027 = vmatprep.subr.mxu0 0.0
      %4028 = vmatpush1.msra.mxu0 %v4012
      %4029 = vmatprep.subr.mxu0 0.0
      %4030 = vmatpush1.msra.mxu0 %v4013
      %4031 = vmatprep.subr.mxu0 0.0
      %4032 = vmatpush1.msra.mxu0 %v4014
      %4033 = vmatprep.subr.mxu0 0.0
      %4034 = vmatpush1.msra.mxu0 %v4015
      %4035 = vmatprep.subr.mxu0 0.0
      %4036 = vmatpush1.msra.mxu0 %v4016
      %4037 = vmatprep.subr.mxu0 0.0
      %4038 = vmatpush1.msra.mxu0 %v4017
      %4039 = vmatprep.subr.mxu0 0.0
      %4040 = vmatpush1.msra.mxu0 %v4018
      %4041 = vmatprep.subr.mxu0 0.0
      %4042 = vmatpush1.msra.mxu0 0.0
      %4043 = vmatprep.subr.mxu0 0.0
      %4044 = vmatpush1.msra.mxu0 0.0
      %4045 = vmatprep.subr.mxu0 0.0
      %4046 = vmatpush1.msra.mxu0 0.0
      %4047 = vmatprep.subr.mxu0 0.0
      %4048 = vmatpush1.msra.mxu0 0.0
      %4049 = vmatprep.subr.mxu0 0.0
      %4050 = vmatpush1.msra.mxu0 0.0
      %4051 = vmatprep.subr.mxu0 0.0
      %4052 = vmatpush1.msra.mxu0 0.0
      %4053 = vmatprep.subr.mxu0 0.0
      %4054 = vmatpush1.msra.mxu0 0.0
      %4055 = vmatprep.subr.mxu0 0.0
      %4056 = vmatpush1.msra.mxu0 0.0
      %4057 = vmatprep.subr.mxu0 0.0
      %4058 = vmatpush1.msra.mxu0 0.0
      %4059 = vmatprep.subr.mxu0 0.0
      %4060 = vmatpush1.msra.mxu0 0.0
      %4061 = vmatprep.subr.mxu0 0.0
      %4062 = vmatpush1.msra.mxu0 0.0
      %4063 = vmatprep.subr.mxu0 0.0
      %4064 = vmatpush1.msra.mxu0 0.0
      %4065 = vmatprep.subr.mxu0 0.0
      %4066 = vmatpush1.msra.mxu0 0.0
      %4067 = vmatprep.subr.mxu0 0.0
      %4068 = vmatpush1.msra.mxu0 0.0
      %4069 = vmatprep.subr.mxu0 0.0
      %4070 = vmatpush1.msra.mxu0 0.0
      %4071 = vmatprep.subr.mxu0 0.0
      %4072 = vmatpush1.msra.mxu0 0.0
      %4073 = vmatprep.subr.mxu0 0.0
      %4074 = vmatpush1.msra.mxu0 0.0
      %4075 = vmatprep.subr.mxu0 0.0
      %4076 = vmatpush1.msra.mxu0 0.0
      %4077 = vmatprep.subr.mxu0 0.0
      %4078 = vmatpush1.msra.mxu0 0.0
      %4079 = vmatprep.subr.mxu0 0.0
      %4080 = vmatpush1.msra.mxu0 0.0
      %4081 = vmatprep.subr.mxu0 0.0
      %4082 = vmatpush1.msra.mxu0 0.0
      %4083 = vmatprep.subr.mxu0 0.0
      %4084 = vmatpush1.msra.mxu0 0.0
      %4085 = vmatprep.subr.mxu0 0.0
      %4086 = vmatpush1.msra.mxu0 0.0
      %4087 = vmatprep.subr.mxu0 0.0
      %4088 = vmatpush1.msra.mxu0 0.0
      %4089 = vmatprep.mubr.f32.mxu0 0.0
      %4090 = vmatmul.mubr.f32.gmra.mrb[0].mxu0 %v4020
      %v4091 = vpop.f32.mrb[0].mxu0
      %v4092 = vadd.f32 0.0, %v4091
      %v4093 = vpop.f32.mrb[0].mxu0
      %4094 = vmatprep.mubr.f32.mxu0 0.0
      %4095 = vmatmul.mubr.f32.gmra.mrb[0].mxu0 %v4023
      %v4096 = vpop.f32.mrb[0].mxu0
      %v4097 = vadd.f32 0.0, %v4096
      %v4098 = vpop.f32.mrb[0].mxu0
      %4099 = vdwg.mxu0
      %v4100 = vadd.f32 %v4001, %v4092
      %v4101 = vadd.f32 %v4002, %v4097
      %s4102 = scalar_lea.vmem %s2, 80
      %v4103 = vld [vmem:[%s4102] sm:$0xff]
      %v4104 = vld [vmem:[%s4102 + $0x8] sm:$0xff]
      %v4105 = vld [vmem:[%s11 + $0x5] sm:$0x1]
      %v4106 = vlaneseq
      %v4107 = vshrl.u32 %v4106, 7
      %v4108 = vsub.s32 0, %v4107
      %v4109 = vrot.slane %v4105, %v4108
      %v4110 = vmul.f32 %v3604, %v4109
      %v4111 = vmul.f32 %v3605, %v4109
      %v4112 = vmul.f32 %v3606, %v4109
      %v4113 = vmul.f32 %v3607, %v4109
      %v4114 = vmul.f32 %v3608, %v4109
      %v4115 = vmul.f32 %v3609, %v4109
      %v4116 = vmul.f32 %v3610, %v4109
      %v4117 = vmul.f32 %v3611, %v4109
      %v4119 = vsel %vm1171, %v4103, 0
      %v4122 = vsel %vm1171, %v4104, 0
      %4124 = vmatprep.subr.mxu0 0.0
      %4125 = vmatpush1.msra.mxu0 %v4110
      %4126 = vmatprep.subr.mxu0 0.0
      %4127 = vmatpush1.msra.mxu0 %v4111
      %4128 = vmatprep.subr.mxu0 0.0
      %4129 = vmatpush1.msra.mxu0 %v4112
      %4130 = vmatprep.subr.mxu0 0.0
      %4131 = vmatpush1.msra.mxu0 %v4113
      %4132 = vmatprep.subr.mxu0 0.0
      %4133 = vmatpush1.msra.mxu0 %v4114
      %4134 = vmatprep.subr.mxu0 0.0
      %4135 = vmatpush1.msra.mxu0 %v4115
      %4136 = vmatprep.subr.mxu0 0.0
      %4137 = vmatpush1.msra.mxu0 %v4116
      %4138 = vmatprep.subr.mxu0 0.0
      %4139 = vmatpush1.msra.mxu0 %v4117
      %4140 = vmatprep.subr.mxu0 0.0
      %4141 = vmatpush1.msra.mxu0 0.0
      %4142 = vmatprep.subr.mxu0 0.0
      %4143 = vmatpush1.msra.mxu0 0.0
      %4144 = vmatprep.subr.mxu0 0.0
      %4145 = vmatpush1.msra.mxu0 0.0
      %4146 = vmatprep.subr.mxu0 0.0
      %4147 = vmatpush1.msra.mxu0 0.0
      %4148 = vmatprep.subr.mxu0 0.0
      %4149 = vmatpush1.msra.mxu0 0.0
      %4150 = vmatprep.subr.mxu0 0.0
      %4151 = vmatpush1.msra.mxu0 0.0
      %4152 = vmatprep.subr.mxu0 0.0
      %4153 = vmatpush1.msra.mxu0 0.0
      %4154 = vmatprep.subr.mxu0 0.0
      %4155 = vmatpush1.msra.mxu0 0.0
      %4156 = vmatprep.subr.mxu0 0.0
      %4157 = vmatpush1.msra.mxu0 0.0
      %4158 = vmatprep.subr.mxu0 0.0
      %4159 = vmatpush1.msra.mxu0 0.0
      %4160 = vmatprep.subr.mxu0 0.0
      %4161 = vmatpush1.msra.mxu0 0.0
      %4162 = vmatprep.subr.mxu0 0.0
      %4163 = vmatpush1.msra.mxu0 0.0
      %4164 = vmatprep.subr.mxu0 0.0
      %4165 = vmatpush1.msra.mxu0 0.0
      %4166 = vmatprep.subr.mxu0 0.0
      %4167 = vmatpush1.msra.mxu0 0.0
      %4168 = vmatprep.subr.mxu0 0.0
      %4169 = vmatpush1.msra.mxu0 0.0
      %4170 = vmatprep.subr.mxu0 0.0
      %4171 = vmatpush1.msra.mxu0 0.0
      %4172 = vmatprep.subr.mxu0 0.0
      %4173 = vmatpush1.msra.mxu0 0.0
      %4174 = vmatprep.subr.mxu0 0.0
      %4175 = vmatpush1.msra.mxu0 0.0
      %4176 = vmatprep.subr.mxu0 0.0
      %4177 = vmatpush1.msra.mxu0 0.0
      %4178 = vmatprep.subr.mxu0 0.0
      %4179 = vmatpush1.msra.mxu0 0.0
      %4180 = vmatprep.subr.mxu0 0.0
      %4181 = vmatpush1.msra.mxu0 0.0
      %4182 = vmatprep.subr.mxu0 0.0
      %4183 = vmatpush1.msra.mxu0 0.0
      %4184 = vmatprep.subr.mxu0 0.0
      %4185 = vmatpush1.msra.mxu0 0.0
      %4186 = vmatprep.subr.mxu0 0.0
      %4187 = vmatpush1.msra.mxu0 0.0
      %4188 = vmatprep.mubr.f32.mxu0 0.0
      %4189 = vmatmul.mubr.f32.gmra.mrb[0].mxu0 %v4119
      %v4190 = vpop.f32.mrb[0].mxu0
      %v4191 = vadd.f32 0.0, %v4190
      %v4192 = vpop.f32.mrb[0].mxu0
      %4193 = vmatprep.mubr.f32.mxu0 0.0
      %4194 = vmatmul.mubr.f32.gmra.mrb[0].mxu0 %v4122
      %v4195 = vpop.f32.mrb[0].mxu0
      %v4196 = vadd.f32 0.0, %v4195
      %v4197 = vpop.f32.mrb[0].mxu0
      %4198 = vdwg.mxu0
      %v4199 = vadd.f32 %v4100, %v4191
      %v4200 = vadd.f32 %v4101, %v4196
      %s4201 = scalar_lea.vmem %s2, 96
      %v4202 = vld [vmem:[%s4201] sm:$0xff]
      %v4203 = vld [vmem:[%s4201 + $0x8] sm:$0xff]
      %v4204 = vld [vmem:[%s11 + $0x6] sm:$0x1]
      %v4205 = vlaneseq
      %v4206 = vshrl.u32 %v4205, 7
      %v4207 = vsub.s32 0, %v4206
      %v4208 = vrot.slane %v4204, %v4207
      %v4209 = vmul.f32 %v3604, %v4208
      %v4210 = vmul.f32 %v3605, %v4208
      %v4211 = vmul.f32 %v3606, %v4208
      %v4212 = vmul.f32 %v3607, %v4208
      %v4213 = vmul.f32 %v3608, %v4208
      %v4214 = vmul.f32 %v3609, %v4208
      %v4215 = vmul.f32 %v3610, %v4208
      %v4216 = vmul.f32 %v3611, %v4208
      %v4218 = vsel %vm1171, %v4202, 0
      %v4221 = vsel %vm1171, %v4203, 0
      %4223 = vmatprep.subr.mxu0 0.0
      %4224 = vmatpush1.msra.mxu0 %v4209
      %4225 = vmatprep.subr.mxu0 0.0
      %4226 = vmatpush1.msra.mxu0 %v4210
      %4227 = vmatprep.subr.mxu0 0.0
      %4228 = vmatpush1.msra.mxu0 %v4211
      %4229 = vmatprep.subr.mxu0 0.0
      %4230 = vmatpush1.msra.mxu0 %v4212
      %4231 = vmatprep.subr.mxu0 0.0
      %4232 = vmatpush1.msra.mxu0 %v4213
      %4233 = vmatprep.subr.mxu0 0.0
      %4234 = vmatpush1.msra.mxu0 %v4214
      %4235 = vmatprep.subr.mxu0 0.0
      %4236 = vmatpush1.msra.mxu0 %v4215
      %4237 = vmatprep.subr.mxu0 0.0
      %4238 = vmatpush1.msra.mxu0 %v4216
      %4239 = vmatprep.subr.mxu0 0.0
      %4240 = vmatpush1.msra.mxu0 0.0
      %4241 = vmatprep.subr.mxu0 0.0
      %4242 = vmatpush1.msra.mxu0 0.0
      %4243 = vmatprep.subr.mxu0 0.0
      %4244 = vmatpush1.msra.mxu0 0.0
      %4245 = vmatprep.subr.mxu0 0.0
      %4246 = vmatpush1.msra.mxu0 0.0
      %4247 = vmatprep.subr.mxu0 0.0
      %4248 = vmatpush1.msra.mxu0 0.0
      %4249 = vmatprep.subr.mxu0 0.0
      %4250 = vmatpush1.msra.mxu0 0.0
      %4251 = vmatprep.subr.mxu0 0.0
      %4252 = vmatpush1.msra.mxu0 0.0
      %4253 = vmatprep.subr.mxu0 0.0
      %4254 = vmatpush1.msra.mxu0 0.0
      %4255 = vmatprep.subr.mxu0 0.0
      %4256 = vmatpush1.msra.mxu0 0.0
      %4257 = vmatprep.subr.mxu0 0.0
      %4258 = vmatpush1.msra.mxu0 0.0
      %4259 = vmatprep.subr.mxu0 0.0
      %4260 = vmatpush1.msra.mxu0 0.0
      %4261 = vmatprep.subr.mxu0 0.0
      %4262 = vmatpush1.msra.mxu0 0.0
      %4263 = vmatprep.subr.mxu0 0.0
      %4264 = vmatpush1.msra.mxu0 0.0
      %4265 = vmatprep.subr.mxu0 0.0
      %4266 = vmatpush1.msra.mxu0 0.0
      %4267 = vmatprep.subr.mxu0 0.0
      %4268 = vmatpush1.msra.mxu0 0.0
      %4269 = vmatprep.subr.mxu0 0.0
      %4270 = vmatpush1.msra.mxu0 0.0
      %4271 = vmatprep.subr.mxu0 0.0
      %4272 = vmatpush1.msra.mxu0 0.0
      %4273 = vmatprep.subr.mxu0 0.0
      %4274 = vmatpush1.msra.mxu0 0.0
      %4275 = vmatprep.subr.mxu0 0.0
      %4276 = vmatpush1.msra.mxu0 0.0
      %4277 = vmatprep.subr.mxu0 0.0
      %4278 = vmatpush1.msra.mxu0 0.0
      %4279 = vmatprep.subr.mxu0 0.0
      %4280 = vmatpush1.msra.mxu0 0.0
      %4281 = vmatprep.subr.mxu0 0.0
      %4282 = vmatpush1.msra.mxu0 0.0
      %4283 = vmatprep.subr.mxu0 0.0
      %4284 = vmatpush1.msra.mxu0 0.0
      %4285 = vmatprep.subr.mxu0 0.0
      %4286 = vmatpush1.msra.mxu0 0.0
      %4287 = vmatprep.mubr.f32.mxu0 0.0
      %4288 = vmatmul.mubr.f32.gmra.mrb[0].mxu0 %v4218
      %v4289 = vpop.f32.mrb[0].mxu0
      %v4290 = vadd.f32 0.0, %v4289
      %v4291 = vpop.f32.mrb[0].mxu0
      %4292 = vmatprep.mubr.f32.mxu0 0.0
      %4293 = vmatmul.mubr.f32.gmra.mrb[0].mxu0 %v4221
      %v4294 = vpop.f32.mrb[0].mxu0
      %v4295 = vadd.f32 0.0, %v4294
      %v4296 = vpop.f32.mrb[0].mxu0
      %4297 = vdwg.mxu0
      %v4298 = vadd.f32 %v4199, %v4290
      %v4299 = vadd.f32 %v4200, %v4295
      %s4300 = scalar_lea.vmem %s2, 112
      %v4301 = vld [vmem:[%s4300] sm:$0xff]
      %v4302 = vld [vmem:[%s4300 + $0x8] sm:$0xff]
      %v4303 = vld [vmem:[%s11 + $0x7] sm:$0x1]
      %v4304 = vlaneseq
      %v4305 = vshrl.u32 %v4304, 7
      %v4306 = vsub.s32 0, %v4305
      %v4307 = vrot.slane %v4303, %v4306
      %v4308 = vmul.f32 %v3604, %v4307
      %v4309 = vmul.f32 %v3605, %v4307
      %v4310 = vmul.f32 %v3606, %v4307
      %v4311 = vmul.f32 %v3607, %v4307
      %v4312 = vmul.f32 %v3608, %v4307
      %v4313 = vmul.f32 %v3609, %v4307
      %v4314 = vmul.f32 %v3610, %v4307
      %v4315 = vmul.f32 %v3611, %v4307
      %v4317 = vsel %vm1171, %v4301, 0
      %v4320 = vsel %vm1171, %v4302, 0
      %4322 = vmatprep.subr.mxu0 0.0
      %4323 = vmatpush1.msra.mxu0 %v4308
      %4324 = vmatprep.subr.mxu0 0.0
      %4325 = vmatpush1.msra.mxu0 %v4309
      %4326 = vmatprep.subr.mxu0 0.0
      %4327 = vmatpush1.msra.mxu0 %v4310
      %4328 = vmatprep.subr.mxu0 0.0
      %4329 = vmatpush1.msra.mxu0 %v4311
      %4330 = vmatprep.subr.mxu0 0.0
      %4331 = vmatpush1.msra.mxu0 %v4312
      %4332 = vmatprep.subr.mxu0 0.0
      %4333 = vmatpush1.msra.mxu0 %v4313
      %4334 = vmatprep.subr.mxu0 0.0
      %4335 = vmatpush1.msra.mxu0 %v4314
      %4336 = vmatprep.subr.mxu0 0.0
      %4337 = vmatpush1.msra.mxu0 %v4315
      %4338 = vmatprep.subr.mxu0 0.0
      %4339 = vmatpush1.msra.mxu0 0.0
      %4340 = vmatprep.subr.mxu0 0.0
      %4341 = vmatpush1.msra.mxu0 0.0
      %4342 = vmatprep.subr.mxu0 0.0
      %4343 = vmatpush1.msra.mxu0 0.0
      %4344 = vmatprep.subr.mxu0 0.0
      %4345 = vmatpush1.msra.mxu0 0.0
      %4346 = vmatprep.subr.mxu0 0.0
      %4347 = vmatpush1.msra.mxu0 0.0
      %4348 = vmatprep.subr.mxu0 0.0
      %4349 = vmatpush1.msra.mxu0 0.0
      %4350 = vmatprep.subr.mxu0 0.0
      %4351 = vmatpush1.msra.mxu0 0.0
      %4352 = vmatprep.subr.mxu0 0.0
      %4353 = vmatpush1.msra.mxu0 0.0
      %4354 = vmatprep.subr.mxu0 0.0
      %4355 = vmatpush1.msra.mxu0 0.0
      %4356 = vmatprep.subr.mxu0 0.0
      %4357 = vmatpush1.msra.mxu0 0.0
      %4358 = vmatprep.subr.mxu0 0.0
      %4359 = vmatpush1.msra.mxu0 0.0
      %4360 = vmatprep.subr.mxu0 0.0
      %4361 = vmatpush1.msra.mxu0 0.0
      %4362 = vmatprep.subr.mxu0 0.0
      %4363 = vmatpush1.msra.mxu0 0.0
      %4364 = vmatprep.subr.mxu0 0.0
      %4365 = vmatpush1.msra.mxu0 0.0
      %4366 = vmatprep.subr.mxu0 0.0
      %4367 = vmatpush1.msra.mxu0 0.0
      %4368 = vmatprep.subr.mxu0 0.0
      %4369 = vmatpush1.msra.mxu0 0.0
      %4370 = vmatprep.subr.mxu0 0.0
      %4371 = vmatpush1.msra.mxu0 0.0
      %4372 = vmatprep.subr.mxu0 0.0
      %4373 = vmatpush1.msra.mxu0 0.0
      %4374 = vmatprep.subr.mxu0 0.0
      %4375 = vmatpush1.msra.mxu0 0.0
      %4376 = vmatprep.subr.mxu0 0.0
      %4377 = vmatpush1.msra.mxu0 0.0
      %4378 = vmatprep.subr.mxu0 0.0
      %4379 = vmatpush1.msra.mxu0 0.0
      %4380 = vmatprep.subr.mxu0 0.0
      %4381 = vmatpush1.msra.mxu0 0.0
      %4382 = vmatprep.subr.mxu0 0.0
      %4383 = vmatpush1.msra.mxu0 0.0
      %4384 = vmatprep.subr.mxu0 0.0
      %4385 = vmatpush1.msra.mxu0 0.0
      %4386 = vmatprep.mubr.f32.mxu0 0.0
      %4387 = vmatmul.mubr.f32.gmra.mrb[0].mxu0 %v4317
      %v4388 = vpop.f32.mrb[0].mxu0
      %v4389 = vadd.f32 0.0, %v4388
      %v4390 = vpop.f32.mrb[0].mxu0
      %4391 = vmatprep.mubr.f32.mxu0 0.0
      %4392 = vmatmul.mubr.f32.gmra.mrb[0].mxu0 %v4320
      %v4393 = vpop.f32.mrb[0].mxu0
      %v4394 = vadd.f32 0.0, %v4393
      %v4395 = vpop.f32.mrb[0].mxu0
      %4396 = vdwg.mxu0
      %v4397 = vadd.f32 %v4298, %v4389
      %v4398 = vadd.f32 %v4299, %v4394
      %s4399 = scalar_lea.vmem %s2, 128
      %v4400 = vld [vmem:[%s4399] sm:$0xff]
      %v4401 = vld [vmem:[%s4399 + $0x8] sm:$0xff]
      %v4402 = vld [vmem:[%s11 + $0x8] sm:$0x1]
      %v4403 = vlaneseq
      %v4404 = vshrl.u32 %v4403, 7
      %v4405 = vsub.s32 0, %v4404
      %v4406 = vrot.slane %v4402, %v4405
      %v4407 = vmul.f32 %v3604, %v4406
      %v4408 = vmul.f32 %v3605, %v4406
      %v4409 = vmul.f32 %v3606, %v4406
      %v4410 = vmul.f32 %v3607, %v4406
      %v4411 = vmul.f32 %v3608, %v4406
      %v4412 = vmul.f32 %v3609, %v4406
      %v4413 = vmul.f32 %v3610, %v4406
      %v4414 = vmul.f32 %v3611, %v4406
      %v4416 = vsel %vm1171, %v4400, 0
      %v4419 = vsel %vm1171, %v4401, 0
      %4421 = vmatprep.subr.mxu0 0.0
      %4422 = vmatpush1.msra.mxu0 %v4407
      %4423 = vmatprep.subr.mxu0 0.0
      %4424 = vmatpush1.msra.mxu0 %v4408
      %4425 = vmatprep.subr.mxu0 0.0
      %4426 = vmatpush1.msra.mxu0 %v4409
      %4427 = vmatprep.subr.mxu0 0.0
      %4428 = vmatpush1.msra.mxu0 %v4410
      %4429 = vmatprep.subr.mxu0 0.0
      %4430 = vmatpush1.msra.mxu0 %v4411
      %4431 = vmatprep.subr.mxu0 0.0
      %4432 = vmatpush1.msra.mxu0 %v4412
      %4433 = vmatprep.subr.mxu0 0.0
      %4434 = vmatpush1.msra.mxu0 %v4413
      %4435 = vmatprep.subr.mxu0 0.0
      %4436 = vmatpush1.msra.mxu0 %v4414
      %4437 = vmatprep.subr.mxu0 0.0
      %4438 = vmatpush1.msra.mxu0 0.0
      %4439 = vmatprep.subr.mxu0 0.0
      %4440 = vmatpush1.msra.mxu0 0.0
      %4441 = vmatprep.subr.mxu0 0.0
      %4442 = vmatpush1.msra.mxu0 0.0
      %4443 = vmatprep.subr.mxu0 0.0
      %4444 = vmatpush1.msra.mxu0 0.0
      %4445 = vmatprep.subr.mxu0 0.0
      %4446 = vmatpush1.msra.mxu0 0.0
      %4447 = vmatprep.subr.mxu0 0.0
      %4448 = vmatpush1.msra.mxu0 0.0
      %4449 = vmatprep.subr.mxu0 0.0
      %4450 = vmatpush1.msra.mxu0 0.0
      %4451 = vmatprep.subr.mxu0 0.0
      %4452 = vmatpush1.msra.mxu0 0.0
      %4453 = vmatprep.subr.mxu0 0.0
      %4454 = vmatpush1.msra.mxu0 0.0
      %4455 = vmatprep.subr.mxu0 0.0
      %4456 = vmatpush1.msra.mxu0 0.0
      %4457 = vmatprep.subr.mxu0 0.0
      %4458 = vmatpush1.msra.mxu0 0.0
      %4459 = vmatprep.subr.mxu0 0.0
      %4460 = vmatpush1.msra.mxu0 0.0
      %4461 = vmatprep.subr.mxu0 0.0
      %4462 = vmatpush1.msra.mxu0 0.0
      %4463 = vmatprep.subr.mxu0 0.0
      %4464 = vmatpush1.msra.mxu0 0.0
      %4465 = vmatprep.subr.mxu0 0.0
      %4466 = vmatpush1.msra.mxu0 0.0
      %4467 = vmatprep.subr.mxu0 0.0
      %4468 = vmatpush1.msra.mxu0 0.0
      %4469 = vmatprep.subr.mxu0 0.0
      %4470 = vmatpush1.msra.mxu0 0.0
      %4471 = vmatprep.subr.mxu0 0.0
      %4472 = vmatpush1.msra.mxu0 0.0
      %4473 = vmatprep.subr.mxu0 0.0
      %4474 = vmatpush1.msra.mxu0 0.0
      %4475 = vmatprep.subr.mxu0 0.0
      %4476 = vmatpush1.msra.mxu0 0.0
      %4477 = vmatprep.subr.mxu0 0.0
      %4478 = vmatpush1.msra.mxu0 0.0
      %4479 = vmatprep.subr.mxu0 0.0
      %4480 = vmatpush1.msra.mxu0 0.0
      %4481 = vmatprep.subr.mxu0 0.0
      %4482 = vmatpush1.msra.mxu0 0.0
      %4483 = vmatprep.subr.mxu0 0.0
      %4484 = vmatpush1.msra.mxu0 0.0
      %4485 = vmatprep.mubr.f32.mxu0 0.0
      %4486 = vmatmul.mubr.f32.gmra.mrb[0].mxu0 %v4416
      %v4487 = vpop.f32.mrb[0].mxu0
      %v4488 = vadd.f32 0.0, %v4487
      %v4489 = vpop.f32.mrb[0].mxu0
      %4490 = vmatprep.mubr.f32.mxu0 0.0
      %4491 = vmatmul.mubr.f32.gmra.mrb[0].mxu0 %v4419
      %v4492 = vpop.f32.mrb[0].mxu0
      %v4493 = vadd.f32 0.0, %v4492
      %v4494 = vpop.f32.mrb[0].mxu0
      %4495 = vdwg.mxu0
      %v4496 = vadd.f32 %v4397, %v4488
      %v4497 = vadd.f32 %v4398, %v4493
      %v4498 = vld [vmem:[%s12] sm:$0x1]
      %v4500 = vlaneseq
      %v4501 = vshrl.u32 %v4500, 7
      %v4502 = vsub.s32 0, %v4501
      %v4503 = vrot.slane %v4498, %v4502
      %v4505 = vadd.f32 %v4496, %v4503
      %v4506 = vadd.f32 %v4497, %v4503
      %v4507 = vxor.u32 %v4505, 2147483648
      %v4508 = vxor.u32 %v4506, 2147483648
      %v4509 = vmul.f32 %v4507, 1.442695
      %v4510 = vpow.pop %v4509
      %v4511 = vmul.f32 %v4508, 1.442695
      %v4512 = vpow.pop %v4511
      %v4513 = vadd.f32 %v4510, 1.0
      %v4514 = vadd.f32 %v4512, 1.0
      %v4515 = vrcp.pop %v4513
      %v4516 = vmul.f32 1.0, %v4515
      %v4517 = vrcp.pop %v4514
      %v4518 = vmul.f32 1.0, %v4517
      %v4519 = vmul.f32 %v4505, %v4516
      %v4520 = vmul.f32 %v4506, %v4518
      %vm4521 = vcmask 261120
      %v4522 = vsel %vm4521, %v4519, 0.0
      %v4523 = vsel %vm4521, %v4520, 0.0
      %v4524 = vadd.f32 %v4522, %v4523
      %v4525 = vrot.slane %v4524, 4
      %v4526 = vadd.f32 %v4524, %v4525
      %v4527 = vrot.slane %v4526, 2
      %v4528 = vadd.f32 %v4526, %v4527
      %v4529 = vrot.slane %v4528, 1
      %v4530 = vadd.f32 %v4528, %v4529
      %v4531 = vmul.f32 %v4530, 0.0625
      %v4532 = vld [vmem:[%s13] sm:$0xff]
      %v4533 = vld [vmem:[%s13 + $0x8] sm:$0xff]
      %v4534 = vld [vmem:[%s13 + $0x10] sm:$0xff]
      %v4535 = vld [vmem:[%s13 + $0x18] sm:$0xff]
      %v4536 = vld [vmem:[%s14] sm:$0x1]
      %v4538 = vsel %vm4521, %v4531, 0
      %4540 = vmatprep.subr.mxu0 0.0
      %4541 = vmatpush1.msra.mxu0 %v4532
      %4542 = vmatprep.subr.mxu0 0.0
      %4543 = vmatpush1.msra.mxu0 %v4533
      %4544 = vmatprep.subr.mxu0 0.0
      %4545 = vmatpush1.msra.mxu0 %v4534
      %4546 = vmatprep.subr.mxu0 0.0
      %4547 = vmatpush1.msra.mxu0 %v4535
      %4548 = vmatprep.subr.mxu0 0.0
      %4549 = vmatpush1.msra.mxu0 0.0
      %4550 = vmatprep.subr.mxu0 0.0
      %4551 = vmatpush1.msra.mxu0 0.0
      %4552 = vmatprep.subr.mxu0 0.0
      %4553 = vmatpush1.msra.mxu0 0.0
      %4554 = vmatprep.subr.mxu0 0.0
      %4555 = vmatpush1.msra.mxu0 0.0
      %4556 = vmatprep.subr.mxu0 0.0
      %4557 = vmatpush1.msra.mxu0 0.0
      %4558 = vmatprep.subr.mxu0 0.0
      %4559 = vmatpush1.msra.mxu0 0.0
      %4560 = vmatprep.subr.mxu0 0.0
      %4561 = vmatpush1.msra.mxu0 0.0
      %4562 = vmatprep.subr.mxu0 0.0
      %4563 = vmatpush1.msra.mxu0 0.0
      %4564 = vmatprep.subr.mxu0 0.0
      %4565 = vmatpush1.msra.mxu0 0.0
      %4566 = vmatprep.subr.mxu0 0.0
      %4567 = vmatpush1.msra.mxu0 0.0
      %4568 = vmatprep.subr.mxu0 0.0
      %4569 = vmatpush1.msra.mxu0 0.0
      %4570 = vmatprep.subr.mxu0 0.0
      %4571 = vmatpush1.msra.mxu0 0.0
      %4572 = vmatprep.subr.mxu0 0.0
      %4573 = vmatpush1.msra.mxu0 0.0
      %4574 = vmatprep.subr.mxu0 0.0
      %4575 = vmatpush1.msra.mxu0 0.0
      %4576 = vmatprep.subr.mxu0 0.0
      %4577 = vmatpush1.msra.mxu0 0.0
      %4578 = vmatprep.subr.mxu0 0.0
      %4579 = vmatpush1.msra.mxu0 0.0
      %4580 = vmatprep.subr.mxu0 0.0
      %4581 = vmatpush1.msra.mxu0 0.0
      %4582 = vmatprep.subr.mxu0 0.0
      %4583 = vmatpush1.msra.mxu0 0.0
      %4584 = vmatprep.subr.mxu0 0.0
      %4585 = vmatpush1.msra.mxu0 0.0
      %4586 = vmatprep.subr.mxu0 0.0
      %4587 = vmatpush1.msra.mxu0 0.0
      %4588 = vmatprep.subr.mxu0 0.0
      %4589 = vmatpush1.msra.mxu0 0.0
      %4590 = vmatprep.subr.mxu0 0.0
      %4591 = vmatpush1.msra.mxu0 0.0
      %4592 = vmatprep.subr.mxu0 0.0
      %4593 = vmatpush1.msra.mxu0 0.0
      %4594 = vmatprep.subr.mxu0 0.0
      %4595 = vmatpush1.msra.mxu0 0.0
      %4596 = vmatprep.subr.mxu0 0.0
      %4597 = vmatpush1.msra.mxu0 0.0
      %4598 = vmatprep.subr.mxu0 0.0
      %4599 = vmatpush1.msra.mxu0 0.0
      %4600 = vmatprep.subr.mxu0 0.0
      %4601 = vmatpush1.msra.mxu0 0.0
      %4602 = vmatprep.subr.mxu0 0.0
      %4603 = vmatpush1.msra.mxu0 0.0
      %4604 = vmatprep.mubr.f32.mxu0 0.0
      %4605 = vmatmul.mubr.f32.gmra.mrb[0].mxu0 %v4538
      %v4606 = vpop.f32.mrb[0].mxu0
      %v4607 = vadd.f32 %v4536, %v4606
      %v4608 = vpop.f32.mrb[0].mxu0
      %4609 = vdwg.mxu0
      %v4610 = vxor.u32 %v4607, 2147483648
      %v4611 = vmul.f32 %v4610, 1.442695
      %v4612 = vpow.pop %v4611
      %v4613 = vadd.f32 %v4612, 1.0
      %v4614 = vrcp.pop %v4613
      %v4615 = vmul.f32 1.0, %v4614
      %v4616 = vmul.f32 %v4607, %v4615
      %v4617 = vld [vmem:[%s15] sm:$0x3]
      %v4618 = vld [vmem:[%s16] sm:$0x1]
      %vm4619 = vcmask 15360
      %v4621 = vsel %vm4619, %v4616, 0
      %vm4623 = vcmask 1041408
      %v4625 = vsel %vm4623, %v4617, 0
      %4627 = vmatprep.subr.mxu0 0.0
      %4628 = vmatpush1.msra.mxu0 %v4625
      %4629 = vmatprep.subr.mxu0 0.0
      %4630 = vmatpush1.msra.mxu0 0.0
      %4631 = vmatprep.subr.mxu0 0.0
      %4632 = vmatpush1.msra.mxu0 0.0
      %4633 = vmatprep.subr.mxu0 0.0
      %4634 = vmatpush1.msra.mxu0 0.0
      %4635 = vmatprep.subr.mxu0 0.0
      %4636 = vmatpush1.msra.mxu0 0.0
      %4637 = vmatprep.subr.mxu0 0.0
      %4638 = vmatpush1.msra.mxu0 0.0
      %4639 = vmatprep.subr.mxu0 0.0
      %4640 = vmatpush1.msra.mxu0 0.0
      %4641 = vmatprep.subr.mxu0 0.0
      %4642 = vmatpush1.msra.mxu0 0.0
      %4643 = vmatprep.subr.mxu0 0.0
      %4644 = vmatpush1.msra.mxu0 0.0
      %4645 = vmatprep.subr.mxu0 0.0
      %4646 = vmatpush1.msra.mxu0 0.0
      %4647 = vmatprep.subr.mxu0 0.0
      %4648 = vmatpush1.msra.mxu0 0.0
      %4649 = vmatprep.subr.mxu0 0.0
      %4650 = vmatpush1.msra.mxu0 0.0
      %4651 = vmatprep.subr.mxu0 0.0
      %4652 = vmatpush1.msra.mxu0 0.0
      %4653 = vmatprep.subr.mxu0 0.0
      %4654 = vmatpush1.msra.mxu0 0.0
      %4655 = vmatprep.subr.mxu0 0.0
      %4656 = vmatpush1.msra.mxu0 0.0
      %4657 = vmatprep.subr.mxu0 0.0
      %4658 = vmatpush1.msra.mxu0 0.0
      %4659 = vmatprep.subr.mxu0 0.0
      %4660 = vmatpush1.msra.mxu0 0.0
      %4661 = vmatprep.subr.mxu0 0.0
      %4662 = vmatpush1.msra.mxu0 0.0
      %4663 = vmatprep.subr.mxu0 0.0
      %4664 = vmatpush1.msra.mxu0 0.0
      %4665 = vmatprep.subr.mxu0 0.0
      %4666 = vmatpush1.msra.mxu0 0.0
      %4667 = vmatprep.subr.mxu0 0.0
      %4668 = vmatpush1.msra.mxu0 0.0
      %4669 = vmatprep.subr.mxu0 0.0
      %4670 = vmatpush1.msra.mxu0 0.0
      %4671 = vmatprep.subr.mxu0 0.0
      %4672 = vmatpush1.msra.mxu0 0.0
      %4673 = vmatprep.subr.mxu0 0.0
      %4674 = vmatpush1.msra.mxu0 0.0
      %4675 = vmatprep.subr.mxu0 0.0
      %4676 = vmatpush1.msra.mxu0 0.0
      %4677 = vmatprep.subr.mxu0 0.0
      %4678 = vmatpush1.msra.mxu0 0.0
      %4679 = vmatprep.subr.mxu0 0.0
      %4680 = vmatpush1.msra.mxu0 0.0
      %4681 = vmatprep.subr.mxu0 0.0
      %4682 = vmatpush1.msra.mxu0 0.0
      %4683 = vmatprep.subr.mxu0 0.0
      %4684 = vmatpush1.msra.mxu0 0.0
      %4685 = vmatprep.subr.mxu0 0.0
      %4686 = vmatpush1.msra.mxu0 0.0
      %4687 = vmatprep.subr.mxu0 0.0
      %4688 = vmatpush1.msra.mxu0 0.0
      %4689 = vmatprep.subr.mxu0 0.0
      %4690 = vmatpush1.msra.mxu0 0.0
      %4691 = vmatprep.mubr.f32.mxu0 0.0
      %4692 = vmatmul.mubr.f32.gmra.mrb[0].mxu0 %v4621
      %v4693 = vpop.f32.mrb[0].mxu0
      %v4694 = vadd.f32 %v4618, %v4693
      %v4695 = vpop.f32.mrb[0].mxu0
      %4696 = vdwg.mxu0
      %v4697 = vxor.u32 %v4694, 2147483648
      %v4698 = vmul.f32 %v4697, 1.442695
      %v4699 = vpow.pop %v4698
      %v4700 = vadd.f32 %v4699, 1.0
      %v4701 = vrcp.pop %v4700
      %v4702 = vmul.f32 1.0, %v4701
      %v4703 = vlaneseq
      %v4704 = vshrl.u32 %v4703, 7
      %v4705 = vsub.s32 0, %v4704
      %v4706 = vrot.slane %v4702, %v4705
      %v4707 = vmul.f32 %v4519, %v4706
      %v4708 = vmul.f32 %v4520, %v4706
      %v4709 = vld [vmem:[%s17] sm:$0xff]
      %v4710 = vld [vmem:[%s17 + $0x8] sm:$0xff]
      %v4711 = vld [vmem:[%s17 + $0x10] sm:$0xff]
      %v4712 = vld [vmem:[%s17 + $0x18] sm:$0xff]
      %v4713 = vld [vmem:[%s18] sm:$0x1]
      %v4715 = vlaneseq
      %v4716 = vshrl.u32 %v4715, 7
      %v4717 = vsub.s32 0, %v4716
      %v4718 = vrot.slane %v4713, %v4717
      %v4721 = vsel %vm4521, %v4707, 0
      %v4724 = vsel %vm4521, %v4708, 0
      %4726 = vmatprep.subr.mxu0 0.0
      %4727 = vmatpush1.msra.mxu0 %v4709
      %4728 = vmatprep.subr.mxu0 0.0
      %4729 = vmatpush1.msra.mxu0 %v4710
      %4730 = vmatprep.subr.mxu0 0.0
      %4731 = vmatpush1.msra.mxu0 %v4711
      %4732 = vmatprep.subr.mxu0 0.0
      %4733 = vmatpush1.msra.mxu0 %v4712
      %4734 = vmatprep.subr.mxu0 0.0
      %4735 = vmatpush1.msra.mxu0 0.0
      %4736 = vmatprep.subr.mxu0 0.0
      %4737 = vmatpush1.msra.mxu0 0.0
      %4738 = vmatprep.subr.mxu0 0.0
      %4739 = vmatpush1.msra.mxu0 0.0
      %4740 = vmatprep.subr.mxu0 0.0
      %4741 = vmatpush1.msra.mxu0 0.0
      %4742 = vmatprep.subr.mxu0 0.0
      %4743 = vmatpush1.msra.mxu0 0.0
      %4744 = vmatprep.subr.mxu0 0.0
      %4745 = vmatpush1.msra.mxu0 0.0
      %4746 = vmatprep.subr.mxu0 0.0
      %4747 = vmatpush1.msra.mxu0 0.0
      %4748 = vmatprep.subr.mxu0 0.0
      %4749 = vmatpush1.msra.mxu0 0.0
      %4750 = vmatprep.subr.mxu0 0.0
      %4751 = vmatpush1.msra.mxu0 0.0
      %4752 = vmatprep.subr.mxu0 0.0
      %4753 = vmatpush1.msra.mxu0 0.0
      %4754 = vmatprep.subr.mxu0 0.0
      %4755 = vmatpush1.msra.mxu0 0.0
      %4756 = vmatprep.subr.mxu0 0.0
      %4757 = vmatpush1.msra.mxu0 0.0
      %4758 = vmatprep.subr.mxu0 0.0
      %4759 = vmatpush1.msra.mxu0 0.0
      %4760 = vmatprep.subr.mxu0 0.0
      %4761 = vmatpush1.msra.mxu0 0.0
      %4762 = vmatprep.subr.mxu0 0.0
      %4763 = vmatpush1.msra.mxu0 0.0
      %4764 = vmatprep.subr.mxu0 0.0
      %4765 = vmatpush1.msra.mxu0 0.0
      %4766 = vmatprep.subr.mxu0 0.0
      %4767 = vmatpush1.msra.mxu0 0.0
      %4768 = vmatprep.subr.mxu0 0.0
      %4769 = vmatpush1.msra.mxu0 0.0
      %4770 = vmatprep.subr.mxu0 0.0
      %4771 = vmatpush1.msra.mxu0 0.0
      %4772 = vmatprep.subr.mxu0 0.0
      %4773 = vmatpush1.msra.mxu0 0.0
      %4774 = vmatprep.subr.mxu0 0.0
      %4775 = vmatpush1.msra.mxu0 0.0
      %4776 = vmatprep.subr.mxu0 0.0
      %4777 = vmatpush1.msra.mxu0 0.0
      %4778 = vmatprep.subr.mxu0 0.0
      %4779 = vmatpush1.msra.mxu0 0.0
      %4780 = vmatprep.subr.mxu0 0.0
      %4781 = vmatpush1.msra.mxu0 0.0
      %4782 = vmatprep.subr.mxu0 0.0
      %4783 = vmatpush1.msra.mxu0 0.0
      %4784 = vmatprep.subr.mxu0 0.0
      %4785 = vmatpush1.msra.mxu0 0.0
      %4786 = vmatprep.subr.mxu0 0.0
      %4787 = vmatpush1.msra.mxu0 0.0
      %4788 = vmatprep.subr.mxu0 0.0
      %4789 = vmatpush1.msra.mxu0 0.0
      %4790 = vmatprep.mubr.f32.mxu0 0.0
      %4791 = vmatmul.mubr.f32.gmra.mrb[0].mxu0 %v4721
      %v4792 = vpop.f32.mrb[0].mxu0
      %v4793 = vadd.f32 %v4718, %v4792
      %v4794 = vpop.f32.mrb[0].mxu0
      %4795 = vmatprep.mubr.f32.mxu0 0.0
      %4796 = vmatmul.mubr.f32.gmra.mrb[0].mxu0 %v4724
      %v4797 = vpop.f32.mrb[0].mxu0
      %v4798 = vadd.f32 %v4718, %v4797
      %v4799 = vpop.f32.mrb[0].mxu0
      %4800 = vdwg.mxu0
      %v4801 = vld [vmem:[%s19] sm:$0xff]
      %v4802 = vld [vmem:[%s19 + $0x8] sm:$0xff]
      %v4803 = vld [vmem:[%s20] sm:$0x1]
      %v4805 = vlaneseq
      %v4806 = vshrl.u32 %v4805, 7
      %v4807 = vsub.s32 0, %v4806
      %v4808 = vrot.slane %v4803, %v4807
      %v4811 = vsel %vm3281, %v4793, 0
      %v4814 = vsel %vm3281, %v4798, 0
      %4816 = vmatprep.subr.mxu0 0.0
      %4817 = vmatpush1.msra.mxu0 %v4801
      %4818 = vmatprep.subr.mxu0 0.0
      %4819 = vmatpush1.msra.mxu0 %v4802
      %4820 = vmatprep.subr.mxu0 0.0
      %4821 = vmatpush1.msra.mxu0 0.0
      %4822 = vmatprep.subr.mxu0 0.0
      %4823 = vmatpush1.msra.mxu0 0.0
      %4824 = vmatprep.subr.mxu0 0.0
      %4825 = vmatpush1.msra.mxu0 0.0
      %4826 = vmatprep.subr.mxu0 0.0
      %4827 = vmatpush1.msra.mxu0 0.0
      %4828 = vmatprep.subr.mxu0 0.0
      %4829 = vmatpush1.msra.mxu0 0.0
      %4830 = vmatprep.subr.mxu0 0.0
      %4831 = vmatpush1.msra.mxu0 0.0
      %4832 = vmatprep.subr.mxu0 0.0
      %4833 = vmatpush1.msra.mxu0 0.0
      %4834 = vmatprep.subr.mxu0 0.0
      %4835 = vmatpush1.msra.mxu0 0.0
      %4836 = vmatprep.subr.mxu0 0.0
      %4837 = vmatpush1.msra.mxu0 0.0
      %4838 = vmatprep.subr.mxu0 0.0
      %4839 = vmatpush1.msra.mxu0 0.0
      %4840 = vmatprep.subr.mxu0 0.0
      %4841 = vmatpush1.msra.mxu0 0.0
      %4842 = vmatprep.subr.mxu0 0.0
      %4843 = vmatpush1.msra.mxu0 0.0
      %4844 = vmatprep.subr.mxu0 0.0
      %4845 = vmatpush1.msra.mxu0 0.0
      %4846 = vmatprep.subr.mxu0 0.0
      %4847 = vmatpush1.msra.mxu0 0.0
      %4848 = vmatprep.subr.mxu0 0.0
      %4849 = vmatpush1.msra.mxu0 0.0
      %4850 = vmatprep.subr.mxu0 0.0
      %4851 = vmatpush1.msra.mxu0 0.0
      %4852 = vmatprep.subr.mxu0 0.0
      %4853 = vmatpush1.msra.mxu0 0.0
      %4854 = vmatprep.subr.mxu0 0.0
      %4855 = vmatpush1.msra.mxu0 0.0
      %4856 = vmatprep.subr.mxu0 0.0
      %4857 = vmatpush1.msra.mxu0 0.0
      %4858 = vmatprep.subr.mxu0 0.0
      %4859 = vmatpush1.msra.mxu0 0.0
      %4860 = vmatprep.subr.mxu0 0.0
      %4861 = vmatpush1.msra.mxu0 0.0
      %4862 = vmatprep.subr.mxu0 0.0
      %4863 = vmatpush1.msra.mxu0 0.0
      %4864 = vmatprep.subr.mxu0 0.0
      %4865 = vmatpush1.msra.mxu0 0.0
      %4866 = vmatprep.subr.mxu0 0.0
      %4867 = vmatpush1.msra.mxu0 0.0
      %4868 = vmatprep.subr.mxu0 0.0
      %4869 = vmatpush1.msra.mxu0 0.0
      %4870 = vmatprep.subr.mxu0 0.0
      %4871 = vmatpush1.msra.mxu0 0.0
      %4872 = vmatprep.subr.mxu0 0.0
      %4873 = vmatpush1.msra.mxu0 0.0
      %4874 = vmatprep.subr.mxu0 0.0
      %4875 = vmatpush1.msra.mxu0 0.0
      %4876 = vmatprep.subr.mxu0 0.0
      %4877 = vmatpush1.msra.mxu0 0.0
      %4878 = vmatprep.subr.mxu0 0.0
      %4879 = vmatpush1.msra.mxu0 0.0
      %4880 = vmatprep.mubr.f32.mxu0 0.0
      %4881 = vmatmul.mubr.f32.gmra.mrb[0].mxu0 %v4811
      %v4882 = vpop.f32.mrb[0].mxu0
      %v4883 = vadd.f32 %v4808, %v4882
      %v4884 = vpop.f32.mrb[0].mxu0
      %4885 = vmatprep.mubr.f32.mxu0 0.0
      %4886 = vmatmul.mubr.f32.gmra.mrb[0].mxu0 %v4814
      %v4887 = vpop.f32.mrb[0].mxu0
      %v4888 = vadd.f32 %v4808, %v4887
      %v4889 = vpop.f32.mrb[0].mxu0
      %4890 = vdwg.mxu0
      %v4891 = vxor.u32 %v4883, 2147483648
      %v4892 = vxor.u32 %v4888, 2147483648
      %v4893 = vmul.f32 %v4891, 1.442695
      %v4894 = vpow.pop %v4893
      %v4895 = vmul.f32 %v4892, 1.442695
      %v4896 = vpow.pop %v4895
      %v4897 = vadd.f32 %v4894, 1.0
      %v4898 = vadd.f32 %v4896, 1.0
      %v4899 = vrcp.pop %v4897
      %v4900 = vmul.f32 1.0, %v4899
      %v4901 = vrcp.pop %v4898
      %v4902 = vmul.f32 1.0, %v4901
      %v4903 = vmul.f32 %v4883, %v4900
      %v4904 = vmul.f32 %v4888, %v4902
      %v4905 = vsel %vm1171, %v4903, 0.0
      %v4906 = vsel %vm1171, %v4904, 0.0
      %v4907 = vadd.f32 %v4905, %v4906
      %v4908 = vrot.slane %v4907, 4
      %v4909 = vadd.f32 %v4907, %v4908
      %v4910 = vrot.slane %v4909, 2
      %v4911 = vadd.f32 %v4909, %v4910
      %v4912 = vrot.slane %v4911, 1
      %v4913 = vadd.f32 %v4911, %v4912
      %v4914 = vmul.f32 %v4913, 0.0625
      %v4915 = vld [vmem:[%s21] sm:$0xff]
      %v4916 = vld [vmem:[%s21 + $0x8] sm:$0xff]
      %v4917 = vld [vmem:[%s21 + $0x10] sm:$0xff]
      %v4918 = vld [vmem:[%s21 + $0x18] sm:$0xff]
      %v4919 = vld [vmem:[%s21 + $0x20] sm:$0xff]
      %v4920 = vld [vmem:[%s21 + $0x28] sm:$0xff]
      %v4921 = vld [vmem:[%s21 + $0x30] sm:$0xff]
      %v4922 = vld [vmem:[%s21 + $0x38] sm:$0xff]
      %v4923 = vld [vmem:[#allocation2] sm:$0x1]
      %v4925 = vsel %vm1171, %v4914, 0
      %4927 = vmatprep.subr.mxu0 0.0
      %4928 = vmatpush1.msra.mxu0 %v4915
      %4929 = vmatprep.subr.mxu0 0.0
      %4930 = vmatpush1.msra.mxu0 %v4916
      %4931 = vmatprep.subr.mxu0 0.0
      %4932 = vmatpush1.msra.mxu0 %v4917
      %4933 = vmatprep.subr.mxu0 0.0
      %4934 = vmatpush1.msra.mxu0 %v4918
      %4935 = vmatprep.subr.mxu0 0.0
      %4936 = vmatpush1.msra.mxu0 %v4919
      %4937 = vmatprep.subr.mxu0 0.0
      %4938 = vmatpush1.msra.mxu0 %v4920
      %4939 = vmatprep.subr.mxu0 0.0
      %4940 = vmatpush1.msra.mxu0 %v4921
      %4941 = vmatprep.subr.mxu0 0.0
      %4942 = vmatpush1.msra.mxu0 %v4922
      %4943 = vmatprep.subr.mxu0 0.0
      %4944 = vmatpush1.msra.mxu0 0.0
      %4945 = vmatprep.subr.mxu0 0.0
      %4946 = vmatpush1.msra.mxu0 0.0
      %4947 = vmatprep.subr.mxu0 0.0
      %4948 = vmatpush1.msra.mxu0 0.0
      %4949 = vmatprep.subr.mxu0 0.0
      %4950 = vmatpush1.msra.mxu0 0.0
      %4951 = vmatprep.subr.mxu0 0.0
      %4952 = vmatpush1.msra.mxu0 0.0
      %4953 = vmatprep.subr.mxu0 0.0
      %4954 = vmatpush1.msra.mxu0 0.0
      %4955 = vmatprep.subr.mxu0 0.0
      %4956 = vmatpush1.msra.mxu0 0.0
      %4957 = vmatprep.subr.mxu0 0.0
      %4958 = vmatpush1.msra.mxu0 0.0
      %4959 = vmatprep.subr.mxu0 0.0
      %4960 = vmatpush1.msra.mxu0 0.0
      %4961 = vmatprep.subr.mxu0 0.0
      %4962 = vmatpush1.msra.mxu0 0.0
      %4963 = vmatprep.subr.mxu0 0.0
      %4964 = vmatpush1.msra.mxu0 0.0
      %4965 = vmatprep.subr.mxu0 0.0
      %4966 = vmatpush1.msra.mxu0 0.0
      %4967 = vmatprep.subr.mxu0 0.0
      %4968 = vmatpush1.msra.mxu0 0.0
      %4969 = vmatprep.subr.mxu0 0.0
      %4970 = vmatpush1.msra.mxu0 0.0
      %4971 = vmatprep.subr.mxu0 0.0
      %4972 = vmatpush1.msra.mxu0 0.0
      %4973 = vmatprep.subr.mxu0 0.0
      %4974 = vmatpush1.msra.mxu0 0.0
      %4975 = vmatprep.subr.mxu0 0.0
      %4976 = vmatpush1.msra.mxu0 0.0
      %4977 = vmatprep.subr.mxu0 0.0
      %4978 = vmatpush1.msra.mxu0 0.0
      %4979 = vmatprep.subr.mxu0 0.0
      %4980 = vmatpush1.msra.mxu0 0.0
      %4981 = vmatprep.subr.mxu0 0.0
      %4982 = vmatpush1.msra.mxu0 0.0
      %4983 = vmatprep.subr.mxu0 0.0
      %4984 = vmatpush1.msra.mxu0 0.0
      %4985 = vmatprep.subr.mxu0 0.0
      %4986 = vmatpush1.msra.mxu0 0.0
      %4987 = vmatprep.subr.mxu0 0.0
      %4988 = vmatpush1.msra.mxu0 0.0
      %4989 = vmatprep.subr.mxu0 0.0
      %4990 = vmatpush1.msra.mxu0 0.0
      %4991 = vmatprep.mubr.f32.mxu0 0.0
      %4992 = vmatmul.mubr.f32.gmra.mrb[0].mxu0 %v4925
      %v4993 = vpop.f32.mrb[0].mxu0
      %v4994 = vadd.f32 %v4923, %v4993
      %v4995 = vpop.f32.mrb[0].mxu0
      %4996 = vdwg.mxu0
      %vm4997 = vcmask 0
      %4998 = vst.msk [vmem:[%s708] sm:$0x1] %vm4997, %v4994
      %p4999 = scmp.lt.s32.totalorder %s36, 1
      %s5000 = scalar_select %p4999, %s36, 1
      %s5001 = scalar_lea.vmem %s23, %s5000
      // Predicated region
      $region113: #{efficientnet_forward.1} parent=111 // pred_check
        %p5002 = pneg %p542
      $region114: #{efficientnet_forward.1} parent=111 // pred_check_branch
        %5004 = sbr.rel (%p5002) target = $region116
      $region115: #{efficientnet_forward.1} parent=111 // pred_region
        _
      $region116: #{efficientnet_forward.1} parent=111 // pred_fallthru
        _
    $region112: #{efficientnet_forward.1} parent=5 // pred_fallthru
      _
    %p5005 = scmp.le.s32.totalorder 2, %s31
    // Predicated region
    $region117: #{efficientnet_forward.1} parent=5 // pred_check
      %p5006 = pneg %p5005
    $region118: #{efficientnet_forward.1} parent=5 // pred_check_branch
      %5008 = sbr.rel (%p5006) target = $region120
    $region119: #{efficientnet_forward.1} parent=5 // pred_region
      %s5009 = ssub.s32 %s31, 2
      // Predicated region
      $region121: #{efficientnet_forward.1} parent=119 // pred_check
        %p5010 = pneg %p548
      $region122: #{efficientnet_forward.1} parent=119 // pred_check_branch
        %5012 = sbr.rel (%p5010) target = $region124
      $region123: #{efficientnet_forward.1} parent=119 // pred_region
        %p5013 = scmp.lt.s32.totalorder %s37, 1
        %s5014 = scalar_select %p5013, %s37, 1
        %s5015 = scalar_lea.vmem %s23, %s5014
      $region124: #{efficientnet_forward.1} parent=119 // pred_fallthru
        _
    $region120: #{efficientnet_forward.1} parent=5 // pred_fallthru
      _
  $region6: #{efficientnet_forward.1} parent=0 // loop_footer
    %s35 = sadd.s32 1, %s31
  $region7: #{efficientnet_forward.1} parent=0 // loop_footer_branch
    %30 = sbr.rel target = $region3
  $region8: #{efficientnet_forward.1} parent=0 // loop_exit
    _

</llo_original>
